<compile_context>
chip_gen: v7x
topology: tpu7x:2x2x1
jax: 0.10.0
libtpu: 0.0.40
codegen_flags: <defaults>
</compile_context>

<pallas_src>
import functools
import numpy as np

import jax
import jax.numpy as jnp
from jax.experimental import pallas as pl
from jax.experimental.pallas import tpu as pltpu


# ----------------------------------------------------------------------------
# sin-cos positional embedding (same as MAE / ClimaX get_2d_sincos_pos_embed)
# ----------------------------------------------------------------------------
def _get_1d_sincos(embed_dim, pos):
    omega = np.arange(embed_dim // 2, dtype=np.float64)
    omega /= embed_dim / 2.0
    omega = 1.0 / 10000 ** omega
    pos = pos.reshape(-1)
    out = np.einsum("m,d->md", pos, omega)
    return np.concatenate([np.sin(out), np.cos(out)], axis=1)


def get_2d_sincos_pos_embed(embed_dim, grid_h, grid_w):
    gh = np.arange(grid_h, dtype=np.float32)
    gw = np.arange(grid_w, dtype=np.float32)
    grid = np.meshgrid(gw, gh)                    # w goes first (MAE convention)
    grid = np.stack(grid, axis=0).reshape([2, 1, grid_h, grid_w])
    emb_h = _get_1d_sincos(embed_dim // 2, grid[0])
    emb_w = _get_1d_sincos(embed_dim // 2, grid[1])
    return np.concatenate([emb_h, emb_w], axis=1).astype(np.float32)  # (grid_h*grid_w, D)


# ----------------------------------------------------------------------------
# in-kernel math helpers (traced inside Pallas kernels)
# ----------------------------------------------------------------------------
def _tanh_gelu(x):
    # tanh-approx GELU (single EUP tanh); ~1e-3 max deviation from nn.GELU's exact erf form.
    c = 0.7978845608028654  # sqrt(2/pi)
    return 0.5 * x * (1.0 + jnp.tanh(c * (x + 0.044715 * x * x * x)))


def _layernorm(x_f32, w_ref, b_ref, eps=1e-5):
    mu = jnp.mean(x_f32, axis=-1, keepdims=True)
    var = jnp.mean(jnp.square(x_f32 - mu), axis=-1, keepdims=True)
    return (x_f32 - mu) * jax.lax.rsqrt(var + eps) * w_ref[...] + b_ref[...]


# ----------------------------------------------------------------------------
# spec / grid helpers
# ----------------------------------------------------------------------------
def _bb(shape, dtype):
    return int(np.prod(shape)) * jnp.dtype(dtype).itemsize


def _whole_spec(a):
    zeros = (0,) * a.ndim
    return pl.BlockSpec(a.shape, lambda *_: zeros)


def _row_tile(m, tm_max, align):
    """Largest aligned row tile <= tm_max, small enough that the grid has >=2 steps
    (when m allows) so the 'parallel' axis can shard across v7x's two TensorCores."""
    tm = min(tm_max, m)
    if m > align:
        half = -(-((m + 1) // 2) // align) * align
        tm = min(tm, half)
    return tm, pl.cdiv(m, tm)


def _cparams(grid_rank, block_bytes):
    # explicit scoped-VMEM budget: double-buffered blocks + margin, floored at the
    # 32 MiB default and capped at v7x's 64 MiB physical VMEM.
    needed = 2 * int(block_bytes) + (4 << 20)
    limit = int(min(64 << 20, max(32 << 20, needed)))
    return pltpu.CompilerParams(
        dimension_semantics=("parallel",) * grid_rank,
        vmem_limit_bytes=limit)


# ----------------------------------------------------------------------------
# Pallas kernels
# ----------------------------------------------------------------------------
def _linear_kernel(x_ref, w_ref, b_ref, o_ref):
    # y = x @ w + b  (bf16 operands, f32 accumulation)
    y = jnp.dot(x_ref[...], w_ref[...], preferred_element_type=jnp.float32) + b_ref[...]
    o_ref[...] = y.astype(o_ref.dtype)


def _attn_block_kernel(x_ref, ln_w_ref, ln_b_ref, qkv_w_ref, qkv_b_ref,
                       proj_w_ref, proj_b_ref, o_ref, *, num_heads, scale):
    # one batch per grid step: out = x + proj(attention(LN1(x)))
    x = x_ref[...].astype(jnp.float32)                                   # (N, D)
    n, d = x.shape
    hd = d // num_heads
    xn = _layernorm(x, ln_w_ref, ln_b_ref).astype(jnp.bfloat16)
    qkv = jnp.dot(xn, qkv_w_ref[...], preferred_element_type=jnp.float32) + qkv_b_ref[...]
    acc = jnp.zeros((n, d), jnp.float32)
    for h in range(num_heads):
        q = qkv[:, h * hd:(h + 1) * hd].astype(jnp.bfloat16)             # (N, hd)
        k = qkv[:, d + h * hd: d + (h + 1) * hd].astype(jnp.bfloat16)
        v = qkv[:, 2 * d + h * hd: 2 * d + (h + 1) * hd].astype(jnp.bfloat16)
        # scores = q @ k^T via NT dot_general (no materialized transpose), bf16 MXU / f32 acc
        s = jax.lax.dot_general(q, k, (((1,), (1,)), ((), ())),
                                preferred_element_type=jnp.float32) * scale   # (N, N)
        s = s - jnp.max(s, axis=-1, keepdims=True)
        p = jnp.exp(s)
        p = p * pl.reciprocal(jnp.sum(p, axis=-1, keepdims=True), approx=True)
        oh = jnp.dot(p.astype(jnp.bfloat16), v, preferred_element_type=jnp.float32)  # (N, hd)
        # per-head slice of the output projection folds the head concat into the matmul
        acc = acc + jnp.dot(oh.astype(jnp.bfloat16), proj_w_ref[h],
                            preferred_element_type=jnp.float32)
    o_ref[...] = (x + acc + proj_b_ref[...]).astype(o_ref.dtype)


def _mlp_block_kernel(x_ref, ln_w_ref, ln_b_ref, fc1_w_ref, fc1_b_ref,
                      fc2_w_ref, fc2_b_ref, o_ref):
    # out = x + fc2(GELU(fc1(LN2(x)))); the (tm, hidden) activation never leaves VMEM.
    x = x_ref[...].astype(jnp.float32)
    xn = _layernorm(x, ln_w_ref, ln_b_ref).astype(jnp.bfloat16)
    h = jnp.dot(xn, fc1_w_ref[...], preferred_element_type=jnp.float32) + fc1_b_ref[...]
    h = _tanh_gelu(h).astype(jnp.bfloat16)
    y = jnp.dot(h, fc2_w_ref[...], preferred_element_type=jnp.float32) + fc2_b_ref[...]
    o_ref[...] = (x + y).astype(o_ref.dtype)


def _norm_head_kernel(x_ref, nw_ref, nb_ref, hw_ref, hb_ref, o_ref, *, depth):
    # final LayerNorm + whole decoder head ((Linear -> GELU) x depth), weights stacked (L, D, D)
    y = _layernorm(x_ref[...].astype(jnp.float32), nw_ref, nb_ref)
    for i in range(depth):
        y = jnp.dot(y.astype(jnp.bfloat16), hw_ref[i],
                    preferred_element_type=jnp.float32) + hb_ref[i]
        y = _tanh_gelu(y)
    o_ref[...] = y.astype(o_ref.dtype)


def _convT_kernel(wT_ref, colsT_ref, b_ref, o_ref):
    # (Cout, K) @ (K, tm) -> (Cout, tm); lane dim is the big B*H*W axis (lane-dense stores)
    o_ref[...] = (jnp.dot(wT_ref[...], colsT_ref[...],
                          preferred_element_type=jnp.float32) + b_ref[...])


# ----------------------------------------------------------------------------
# pallas_call wrappers
# ----------------------------------------------------------------------------
def _row_tiled_call(kernel, x2d, others, out_cols, out_dtype, *, extra_bytes=0, tm_max=256):
    m, k = x2d.shape
    tm, steps = _row_tile(m, tm_max, 16)
    in_specs = [pl.BlockSpec((tm, k), lambda i: (i, 0))]
    in_specs += [_whole_spec(a) for a in others]
    out_spec = pl.BlockSpec((tm, out_cols), lambda i: (i, 0))
    blk_bytes = (_bb((tm, k), x2d.dtype) + _bb((tm, out_cols), out_dtype)
                 + sum(_bb(a.shape, a.dtype) for a in others) + extra_bytes)
    return pl.pallas_call(
        kernel,
        out_shape=jax.ShapeDtypeStruct((m, out_cols), out_dtype),
        grid=(steps,),
        in_specs=in_specs,
        out_specs=out_spec,
        compiler_params=_cparams(1, blk_bytes),
    )(x2d, *others)


def pallas_patch_embed(cols2d, w, b):
    return _row_tiled_call(_linear_kernel, cols2d, (w, b), w.shape[1], jnp.bfloat16)


def pallas_attn_block(xf, blk, batch, n_tok, d, num_heads):
    kern = functools.partial(_attn_block_kernel, num_heads=num_heads,
                             scale=float((d // num_heads) ** -0.5))
    others = (blk["ln1_w"], blk["ln1_b"], blk["qkv_w"], blk["qkv_b"],
              blk["proj_w"], blk["proj_b"])
    tok_spec = pl.BlockSpec((n_tok, d), lambda b: (b, 0))
    blk_bytes = (2 * _bb((n_tok, d), xf.dtype)
                 + sum(_bb(a.shape, a.dtype) for a in others)
                 + _bb((n_tok, 3 * d), jnp.float32))            # fused qkv intermediate
    return pl.pallas_call(
        kern,
        out_shape=jax.ShapeDtypeStruct((batch * n_tok, d), xf.dtype),
        grid=(batch,),
        in_specs=[tok_spec] + [_whole_spec(a) for a in others],
        out_specs=tok_spec,
        compiler_params=_cparams(1, blk_bytes),
    )(xf, *others)


def pallas_mlp_block(xf, blk):
    hidden = blk["fc1_w"].shape[1]
    others = (blk["ln2_w"], blk["ln2_b"], blk["fc1_w"], blk["fc1_b"],
              blk["fc2_w"], blk["fc2_b"])
    return _row_tiled_call(_mlp_block_kernel, xf, others, xf.shape[1], xf.dtype,
                           extra_bytes=4 * 256 * hidden)


def pallas_norm_head(xf, params):
    depth = params["head_w"].shape[0]
    kern = functools.partial(_norm_head_kernel, depth=depth)
    others = (params["norm_w"], params["norm_b"], params["head_w"], params["head_b"])
    return _row_tiled_call(kern, xf, others, xf.shape[1], xf.dtype)


def pallas_conv_matmul_T(wT, colsT, b_col):
    cout, k = wT.shape
    m = colsT.shape[1]
    tm, steps = _row_tile(m, 512, 128)
    blk_bytes = (_bb(wT.shape, wT.dtype) + _bb((k, tm), colsT.dtype)
                 + _bb(b_col.shape, b_col.dtype) + _bb((cout, tm), jnp.float32))
    return pl.pallas_call(
        _convT_kernel,
        out_shape=jax.ShapeDtypeStruct((cout, m), jnp.float32),
        grid=(steps,),
        in_specs=[_whole_spec(wT),
                  pl.BlockSpec((k, tm), lambda i: (0, i)),
                  _whole_spec(b_col)],
        out_specs=pl.BlockSpec((cout, tm), lambda i: (0, i)),
        compiler_params=_cparams(1, blk_bytes),
    )(wT, colsT, b_col)


# ----------------------------------------------------------------------------
# JAX glue: patchify (im2col for the stride=patch conv), unpatchify, periodic conv
# ----------------------------------------------------------------------------
def patchify_im2col(x, p):
    # NCHW -> (B, num_patches, C*p*p), inner order (c, ph, pw) matching torch Conv2d flattening.
    b, c, h, w = x.shape
    hh, ww = h // p, w // p
    x = x.reshape(b, c, hh, p, ww, p)
    x = x.transpose(0, 2, 4, 1, 3, 5)          # (B, hh, ww, C, p, p)
    return x.reshape(b, hh * ww, c * p * p)


def unpatchify(patches, p, h, w):
    b, n, d = patches.shape
    hh, ww = h // p, w // p
    c = n * d // (h * w)
    x = patches.reshape(b, hh, ww, p, p, c)
    x = jnp.transpose(x, (0, 5, 1, 3, 2, 4))   # 'nhwpqc->nchpwq'
    return x.reshape(b, c, h, w)


def periodic_conv2d(x, wT, b_col, pad):
    # circular pad in W, zero pad in H, then valid conv = bf16 im2col + transposed Pallas matmul.
    b, cin, h, w = x.shape
    k = 2 * pad + 1
    xp = jnp.concatenate([x[:, :, :, -pad:], x, x[:, :, :, :pad]], axis=-1)
    xp = jnp.pad(xp, ((0, 0), (0, 0), (pad, pad), (0, 0)))
    taps = [xp[:, :, kh:kh + h, kw:kw + w] for kh in range(k) for kw in range(k)]
    cols = jnp.stack(taps, axis=2)                                     # (B, Cin, k*k, H, W) bf16
    colsT = cols.transpose(1, 2, 0, 3, 4).reshape(cin * k * k, b * h * w)
    cout = wT.shape[0]
    out = pallas_conv_matmul_T(wT, colsT, b_col)                       # (Cout, B*H*W) f32
    return out.reshape(cout, b, h, w).transpose(1, 0, 2, 3)            # (B, Cout, H, W)


# ----------------------------------------------------------------------------
# full forward
# ----------------------------------------------------------------------------
def vit_forward(x, params, cfg):
    # x: (B, in_channels*history, H, W)  (the unsqueeze(1).flatten(1,2) is a no-op)
    batch = x.shape[0]
    p = cfg["patch_size"]
    d = cfg["embed_dim"]
    h, w = cfg["img_size"]
    nh = cfg["num_heads"]

    cols = patchify_im2col(x.astype(jnp.bfloat16), p)                  # (B, Np, Cin*p*p) bf16
    n_tok = cols.shape[1]
    tok = pallas_patch_embed(cols.reshape(batch * n_tok, -1), params["pe_w"], params["pe_b"])
    tok = (tok.reshape(batch, n_tok, d).astype(jnp.float32)
           + params["pos_embed"]).astype(jnp.bfloat16)                 # pos_drop = identity (eval)

    xf = tok.reshape(batch * n_tok, d)
    for blk in params["blocks"]:
        xf = pallas_attn_block(xf, blk, batch, n_tok, d, nh)           # LN1+QKV+attn+proj+res
        xf = pallas_mlp_block(xf, blk)                                 # LN2+fc1+GELU+fc2+res

    y = pallas_norm_head(xf, params)                                   # norm + head stack, bf16
    img = unpatchify(y.reshape(batch, n_tok, d), p, h, w)              # (B, Cfin, H, W) bf16
    return periodic_conv2d(img, params["final_wT"], params["final_b"], pad=3)


# ----------------------------------------------------------------------------
# deterministic parameter init (shapes from the module __init__); weights stored bf16
# ----------------------------------------------------------------------------
def init_params(key, cfg):
    d = cfg["embed_dim"]
    p = cfg["patch_size"]
    cin = cfg["in_channels"] * cfg["history"]
    h, w = cfg["img_size"]
    hh, ww = h // p, w // p
    n_tok = hh * ww
    hidden = int(d * cfg["mlp_ratio"])
    nh = cfg["num_heads"]
    hd = d // nh
    cfin = n_tok * d // (h * w)
    cout = cfg["out_channels"]

    keys = iter(jax.random.split(key, 256))

    def tn(shape, std=0.02):
        return std * jax.random.truncated_normal(next(keys), -2.0, 2.0, shape, jnp.float32)

    def bf(a):
        return a.astype(jnp.bfloat16)

    params = {}
    pe_w = tn((d, cin, p, p))                                  # torch Conv2d weight shape
    params["pe_w"] = bf(pe_w.reshape(d, cin * p * p).T)        # (Cin*p*p, D) bf16
    params["pe_b"] = jnp.zeros((1, d), jnp.float32)
    params["pos_embed"] = jnp.asarray(get_2d_sincos_pos_embed(d, hh, ww))[None]   # (1, Np, D)

    blocks = []
    for _ in range(cfg["depth"]):
        blocks.append(dict(
            ln1_w=jnp.ones((1, d), jnp.float32), ln1_b=jnp.zeros((1, d), jnp.float32),
            qkv_w=bf(tn((d, 3 * d))), qkv_b=jnp.zeros((1, 3 * d), jnp.float32),
            # proj weight pre-split per head: (num_heads, hd, D) so the kernel indexes [h]
            proj_w=bf(tn((d, d)).reshape(nh, hd, d)), proj_b=jnp.zeros((1, d), jnp.float32),
            ln2_w=jnp.ones((1, d), jnp.float32), ln2_b=jnp.zeros((1, d), jnp.float32),
            fc1_w=bf(tn((d, hidden))), fc1_b=jnp.zeros((1, hidden), jnp.float32),
            fc2_w=bf(tn((hidden, d))), fc2_b=jnp.zeros((1, d), jnp.float32),
        ))
    params["blocks"] = blocks

    params["norm_w"] = jnp.ones((1, d), jnp.float32)
    params["norm_b"] = jnp.zeros((1, d), jnp.float32)
    params["head_w"] = bf(jnp.stack([tn((d, d)) for _ in range(cfg["decoder_depth"])]))
    params["head_b"] = jnp.zeros((cfg["decoder_depth"], 1, d), jnp.float32)

    params["final_wT"] = bf(tn((cout, cfin, 7, 7)).reshape(cout, cfin * 49))
    params["final_b"] = jnp.zeros((cout, 1), jnp.float32)
    return params


# ----------------------------------------------------------------------------
if __name__ == "__main__":
    cfg = dict(
        img_size=(16, 16),
        patch_size=4,
        in_channels=4,
        history=1,
        out_channels=3,
        embed_dim=32,
        depth=2,
        decoder_depth=2,
        num_heads=4,
        mlp_ratio=4.0,
    )

    key = jax.random.PRNGKey(0)
    pkey, xkey = jax.random.split(key)
    params = init_params(pkey, cfg)

    B = 2
    x = jax.random.normal(
        xkey, (B, cfg["in_channels"] * cfg["history"], cfg["img_size"][0], cfg["img_size"][1]),
        jnp.float32)

    fwd = jax.jit(lambda xx, pp: vit_forward(xx, pp, cfg))
    out = fwd(x, params)
    jax.block_until_ready(out)

    assert out.shape == (B, cfg["out_channels"], cfg["img_size"][0], cfg["img_size"][1]), out.shape
    assert bool(jnp.all(jnp.isfinite(out)))
    print("KERNEL_OK")
</pallas_src>

<mosaic_0001>
module attributes {stable_mosaic.version = 11 : i64} {
  func.func @_linear_kernel(%arg0: i32, %arg1: memref<16x64xbf16, #tpu.memory_space<vmem>>, %arg2: memref<64x32xbf16, #tpu.memory_space<vmem>>, %arg3: memref<1x32xf32, #tpu.memory_space<vmem>>, %arg4: memref<16x32xbf16, #tpu.memory_space<vmem>>) attributes {dimension_semantics = [#tpu.dimension_semantics<parallel>], iteration_bounds = array<i64: 2>, scalar_prefetch = 0 : i64, scratch_operands = 0 : i64, tpu.core_type = #tpu.core_type<tc>, window_params = [{transform_indices = @transform_0, window_bounds = array<i64: 16, 64>}, {pipeline_mode = #tpu.pipeline_mode<synchronous>, transform_indices = @transform_1, window_bounds = array<i64: 64, 32>}, {pipeline_mode = #tpu.pipeline_mode<synchronous>, transform_indices = @transform_2, window_bounds = array<i64: 1, 32>}, {transform_indices = @transform_3, window_bounds = array<i64: 16, 32>}]} {
    %c0 = arith.constant 0 : index
    %c0_0 = arith.constant 0 : index
    %0 = vector.load %arg1[%c0, %c0_0] : memref<16x64xbf16, #tpu.memory_space<vmem>>, vector<16x64xbf16>
    %c0_1 = arith.constant 0 : index
    %c0_2 = arith.constant 0 : index
    %1 = vector.load %arg2[%c0_1, %c0_2] : memref<64x32xbf16, #tpu.memory_space<vmem>>, vector<64x32xbf16>
    %cst = arith.constant dense<0.000000e+00> : vector<16x32xf32>
    %2 = tpu.matmul %0, %1, %cst {dimension_numbers = #tpu.dot_dimension_numbers<[1], [0], [0], [1], [0, 0, 1, 1], [], []>} : vector<16x64xbf16>, vector<64x32xbf16>, vector<16x32xf32> -> vector<16x32xf32>
    %c0_3 = arith.constant 0 : index
    %c0_4 = arith.constant 0 : index
    %3 = vector.load %arg3[%c0_3, %c0_4] : memref<1x32xf32, #tpu.memory_space<vmem>>, vector<1x32xf32>
    %4 = vector.broadcast %3 : vector<1x32xf32> to vector<16x32xf32>
    %5 = arith.addf %2, %4 : vector<16x32xf32>
    %6 = arith.truncf %5 : vector<16x32xf32> to vector<16x32xbf16>
    %c0_5 = arith.constant 0 : index
    %c0_6 = arith.constant 0 : index
    %7 = vector.load %arg4[%c0_5, %c0_6] : memref<16x32xbf16, #tpu.memory_space<vmem>>, vector<16x32xbf16>
    tpu.vector_store %arg4[%c0_5, %c0_6], %6 {strides = array<i32>} : memref<16x32xbf16, #tpu.memory_space<vmem>>, vector<16x32xbf16>,
    return
  }
  func.func @transform_0(%arg0: i32) -> (i32, i32) {
    %c0_i32 = arith.constant 0 : i32
    %c0_i32_0 = arith.constant 0 : i32
    return %arg0, %c0_i32 : i32, i32
  }
  func.func @transform_1(%arg0: i32) -> (i32, i32) {
    %c0_i32 = arith.constant 0 : i32
    %c0_i32_0 = arith.constant 0 : i32
    %c0_i32_1 = arith.constant 0 : i32
    return %c0_i32, %c0_i32_0 : i32, i32
  }
  func.func @transform_2(%arg0: i32) -> (i32, i32) {
    %c0_i32 = arith.constant 0 : i32
    %c0_i32_0 = arith.constant 0 : i32
    %c0_i32_1 = arith.constant 0 : i32
    return %c0_i32, %c0_i32_0 : i32, i32
  }
  func.func @transform_3(%arg0: i32) -> (i32, i32) {
    %c0_i32 = arith.constant 0 : i32
    %c0_i32_0 = arith.constant 0 : i32
    return %arg0, %c0_i32 : i32, i32
  }
}

module attributes {stable_mosaic.version = 11 : i64} {
  func.func @_attn_block_kernel(%arg0: i32, %arg1: memref<16x32xbf16, #tpu.memory_space<vmem>>, %arg2: memref<1x32xf32, #tpu.memory_space<vmem>>, %arg3: memref<1x32xf32, #tpu.memory_space<vmem>>, %arg4: memref<32x96xbf16, #tpu.memory_space<vmem>>, %arg5: memref<1x96xf32, #tpu.memory_space<vmem>>, %arg6: memref<4x8x32xbf16, #tpu.memory_space<vmem>>, %arg7: memref<1x32xf32, #tpu.memory_space<vmem>>, %arg8: memref<16x32xbf16, #tpu.memory_space<vmem>>) attributes {dimension_semantics = [#tpu.dimension_semantics<parallel>], iteration_bounds = array<i64: 2>, scalar_prefetch = 0 : i64, scratch_operands = 0 : i64, tpu.core_type = #tpu.core_type<tc>, window_params = [{transform_indices = @transform_0, window_bounds = array<i64: 16, 32>}, {pipeline_mode = #tpu.pipeline_mode<synchronous>, transform_indices = @transform_1, window_bounds = array<i64: 1, 32>}, {pipeline_mode = #tpu.pipeline_mode<synchronous>, transform_indices = @transform_2, window_bounds = array<i64: 1, 32>}, {pipeline_mode = #tpu.pipeline_mode<synchronous>, transform_indices = @transform_3, window_bounds = array<i64: 32, 96>}, {pipeline_mode = #tpu.pipeline_mode<synchronous>, transform_indices = @transform_4, window_bounds = array<i64: 1, 96>}, {pipeline_mode = #tpu.pipeline_mode<synchronous>, transform_indices = @transform_5, window_bounds = array<i64: 4, 8, 32>}, {pipeline_mode = #tpu.pipeline_mode<synchronous>, transform_indices = @transform_6, window_bounds = array<i64: 1, 32>}, {transform_indices = @transform_7, window_bounds = array<i64: 16, 32>}]} {
    %c0 = arith.constant 0 : index
    %c0_0 = arith.constant 0 : index
    %0 = vector.load %arg1[%c0, %c0_0] : memref<16x32xbf16, #tpu.memory_space<vmem>>, vector<16x32xbf16>
    %1 = arith.extf %0 : vector<16x32xbf16> to vector<16x32xf32>
    %cst = arith.constant dense<0.000000e+00> : vector<16xf32>
    %2 = vector.multi_reduction <add>, %1, %cst [1] : vector<16x32xf32> to vector<16xf32>
    %3 = vector.shape_cast %2 : vector<16xf32> to vector<16x1xf32>
    %cst_1 = arith.constant 3.200000e+01 : f32
    %4 = vector.broadcast %cst_1 : f32 to vector<16x1xf32>
    %5 = arith.divf %3, %4 : vector<16x1xf32>
    %6 = vector.broadcast %5 : vector<16x1xf32> to vector<16x32xf32>
    %7 = arith.subf %1, %6 : vector<16x32xf32>
    %8 = arith.mulf %7, %7 : vector<16x32xf32>
    %cst_2 = arith.constant dense<0.000000e+00> : vector<16xf32>
    %9 = vector.multi_reduction <add>, %8, %cst_2 [1] : vector<16x32xf32> to vector<16xf32>
    %10 = vector.shape_cast %9 : vector<16xf32> to vector<16x1xf32>
    %cst_3 = arith.constant 3.200000e+01 : f32
    %11 = vector.broadcast %cst_3 : f32 to vector<16x1xf32>
    %12 = arith.divf %10, %11 : vector<16x1xf32>
    %13 = vector.broadcast %5 : vector<16x1xf32> to vector<16x32xf32>
    %14 = arith.subf %1, %13 : vector<16x32xf32>
    %cst_4 = arith.constant 9.99999974E-6 : f32
    %15 = vector.broadcast %cst_4 : f32 to vector<16x1xf32>
    %16 = arith.addf %12, %15 : vector<16x1xf32>
    %17 = math.rsqrt %16 : vector<16x1xf32>
    %18 = vector.broadcast %17 : vector<16x1xf32> to vector<16x32xf32>
    %19 = arith.mulf %14, %18 : vector<16x32xf32>
    %c0_5 = arith.constant 0 : index
    %c0_6 = arith.constant 0 : index
    %20 = vector.load %arg2[%c0_5, %c0_6] : memref<1x32xf32, #tpu.memory_space<vmem>>, vector<1x32xf32>
    %21 = vector.broadcast %20 : vector<1x32xf32> to vector<16x32xf32>
    %22 = arith.mulf %19, %21 : vector<16x32xf32>
    %c0_7 = arith.constant 0 : index
    %c0_8 = arith.constant 0 : index
    %23 = vector.load %arg3[%c0_7, %c0_8] : memref<1x32xf32, #tpu.memory_space<vmem>>, vector<1x32xf32>
    %24 = vector.broadcast %23 : vector<1x32xf32> to vector<16x32xf32>
    %25 = arith.addf %22, %24 : vector<16x32xf32>
    %26 = arith.truncf %25 : vector<16x32xf32> to vector<16x32xbf16>
    %c0_9 = arith.constant 0 : index
    %c0_10 = arith.constant 0 : index
    %27 = vector.load %arg4[%c0_9, %c0_10] : memref<32x96xbf16, #tpu.memory_space<vmem>>, vector<32x96xbf16>
    %cst_11 = arith.constant dense<0.000000e+00> : vector<16x96xf32>
    %28 = tpu.matmul %26, %27, %cst_11 {dimension_numbers = #tpu.dot_dimension_numbers<[1], [0], [0], [1], [0, 0, 1, 1], [], []>} : vector<16x32xbf16>, vector<32x96xbf16>, vector<16x96xf32> -> vector<16x96xf32>
    %c0_12 = arith.constant 0 : index
    %c0_13 = arith.constant 0 : index
    %29 = vector.load %arg5[%c0_12, %c0_13] : memref<1x96xf32, #tpu.memory_space<vmem>>, vector<1x96xf32>
    %30 = vector.broadcast %29 : vector<1x96xf32> to vector<16x96xf32>
    %31 = arith.addf %28, %30 : vector<16x96xf32>
    %cst_14 = arith.constant 0.000000e+00 : f32
    %32 = vector.broadcast %cst_14 : f32 to vector<16x32xf32>
    %33 = vector.extract_strided_slice %31 {offsets = [0, 0], sizes = [16, 8], strides = [1, 1]} : vector<16x96xf32> to vector<16x8xf32>
    %34 = arith.truncf %33 : vector<16x8xf32> to vector<16x8xbf16>
    %35 = vector.extract_strided_slice %31 {offsets = [0, 32], sizes = [16, 8], strides = [1, 1]} : vector<16x96xf32> to vector<16x8xf32>
    %36 = arith.truncf %35 : vector<16x8xf32> to vector<16x8xbf16>
    %37 = vector.extract_strided_slice %31 {offsets = [0, 64], sizes = [16, 8], strides = [1, 1]} : vector<16x96xf32> to vector<16x8xf32>
    %38 = arith.truncf %37 : vector<16x8xf32> to vector<16x8xbf16>
    %cst_15 = arith.constant dense<0.000000e+00> : vector<16x16xf32>
    %39 = tpu.matmul %34, %36, %cst_15 {dimension_numbers = #tpu.dot_dimension_numbers<[1], [1], [0], [0], [0, 0, 1, 0], [], []>} : vector<16x8xbf16>, vector<16x8xbf16>, vector<16x16xf32> -> vector<16x16xf32>
    %cst_16 = arith.constant 0.353553385 : f32
    %40 = vector.broadcast %cst_16 : f32 to vector<16x16xf32>
    %41 = arith.mulf %39, %40 : vector<16x16xf32>
    %cst_17 = arith.constant dense<0xFF800000> : vector<16xf32>
    %42 = vector.multi_reduction <maximumf>, %41, %cst_17 [1] : vector<16x16xf32> to vector<16xf32>
    %43 = vector.shape_cast %42 : vector<16xf32> to vector<16x1xf32>
    %44 = vector.broadcast %43 : vector<16x1xf32> to vector<16x16xf32>
    %45 = arith.subf %41, %44 : vector<16x16xf32>
    %46 = math.exp %45 : vector<16x16xf32>
    %cst_18 = arith.constant dense<0.000000e+00> : vector<16xf32>
    %47 = vector.multi_reduction <add>, %46, %cst_18 [1] : vector<16x16xf32> to vector<16xf32>
    %48 = vector.shape_cast %47 : vector<16xf32> to vector<16x1xf32>
    %49 = tpu.reciprocal %48 {approx = true} : vector<16x1xf32> -> vector<16x1xf32>
    %50 = vector.broadcast %49 : vector<16x1xf32> to vector<16x16xf32>
    %51 = arith.mulf %46, %50 : vector<16x16xf32>
    %52 = arith.truncf %51 : vector<16x16xf32> to vector<16x16xbf16>
    %cst_19 = arith.constant dense<0.000000e+00> : vector<16x8xf32>
    %53 = tpu.matmul %52, %38, %cst_19 {dimension_numbers = #tpu.dot_dimension_numbers<[1], [0], [0], [1], [0, 0, 1, 1], [], []>} : vector<16x16xbf16>, vector<16x8xbf16>, vector<16x8xf32> -> vector<16x8xf32>
    %54 = arith.truncf %53 : vector<16x8xf32> to vector<16x8xbf16>
    %c0_20 = arith.constant 0 : index
    %c0_21 = arith.constant 0 : index
    %c0_22 = arith.constant 0 : index
    %55 = vector.load %arg6[%c0_20, %c0_21, %c0_22] : memref<4x8x32xbf16, #tpu.memory_space<vmem>>, vector<1x8x32xbf16>
    %56 = vector.shape_cast %55 : vector<1x8x32xbf16> to vector<8x32xbf16>
    %cst_23 = arith.constant dense<0.000000e+00> : vector<16x32xf32>
    %57 = tpu.matmul %54, %56, %cst_23 {dimension_numbers = #tpu.dot_dimension_numbers<[1], [0], [0], [1], [0, 0, 1, 1], [], []>} : vector<16x8xbf16>, vector<8x32xbf16>, vector<16x32xf32> -> vector<16x32xf32>
    %58 = arith.addf %32, %57 : vector<16x32xf32>
    %59 = vector.extract_strided_slice %31 {offsets = [0, 8], sizes = [16, 8], strides = [1, 1]} : vector<16x96xf32> to vector<16x8xf32>
    %60 = arith.truncf %59 : vector<16x8xf32> to vector<16x8xbf16>
    %61 = vector.extract_strided_slice %31 {offsets = [0, 40], sizes = [16, 8], strides = [1, 1]} : vector<16x96xf32> to vector<16x8xf32>
    %62 = arith.truncf %61 : vector<16x8xf32> to vector<16x8xbf16>
    %63 = vector.extract_strided_slice %31 {offsets = [0, 72], sizes = [16, 8], strides = [1, 1]} : vector<16x96xf32> to vector<16x8xf32>
    %64 = arith.truncf %63 : vector<16x8xf32> to vector<16x8xbf16>
    %cst_24 = arith.constant dense<0.000000e+00> : vector<16x16xf32>
    %65 = tpu.matmul %60, %62, %cst_24 {dimension_numbers = #tpu.dot_dimension_numbers<[1], [1], [0], [0], [0, 0, 1, 0], [], []>} : vector<16x8xbf16>, vector<16x8xbf16>, vector<16x16xf32> -> vector<16x16xf32>
    %cst_25 = arith.constant 0.353553385 : f32
    %66 = vector.broadcast %cst_25 : f32 to vector<16x16xf32>
    %67 = arith.mulf %65, %66 : vector<16x16xf32>
    %cst_26 = arith.constant dense<0xFF800000> : vector<16xf32>
    %68 = vector.multi_reduction <maximumf>, %67, %cst_26 [1] : vector<16x16xf32> to vector<16xf32>
    %69 = vector.shape_cast %68 : vector<16xf32> to vector<16x1xf32>
    %70 = vector.broadcast %69 : vector<16x1xf32> to vector<16x16xf32>
    %71 = arith.subf %67, %70 : vector<16x16xf32>
    %72 = math.exp %71 : vector<16x16xf32>
    %cst_27 = arith.constant dense<0.000000e+00> : vector<16xf32>
    %73 = vector.multi_reduction <add>, %72, %cst_27 [1] : vector<16x16xf32> to vector<16xf32>
    %74 = vector.shape_cast %73 : vector<16xf32> to vector<16x1xf32>
    %75 = tpu.reciprocal %74 {approx = true} : vector<16x1xf32> -> vector<16x1xf32>
    %76 = vector.broadcast %75 : vector<16x1xf32> to vector<16x16xf32>
    %77 = arith.mulf %72, %76 : vector<16x16xf32>
    %78 = arith.truncf %77 : vector<16x16xf32> to vector<16x16xbf16>
    %cst_28 = arith.constant dense<0.000000e+00> : vector<16x8xf32>
    %79 = tpu.matmul %78, %64, %cst_28 {dimension_numbers = #tpu.dot_dimension_numbers<[1], [0], [0], [1], [0, 0, 1, 1], [], []>} : vector<16x16xbf16>, vector<16x8xbf16>, vector<16x8xf32> -> vector<16x8xf32>
    %80 = arith.truncf %79 : vector<16x8xf32> to vector<16x8xbf16>
    %c1 = arith.constant 1 : index
    %c0_29 = arith.constant 0 : index
    %c0_30 = arith.constant 0 : index
    %81 = vector.load %arg6[%c1, %c0_29, %c0_30] : memref<4x8x32xbf16, #tpu.memory_space<vmem>>, vector<1x8x32xbf16>
    %82 = vector.shape_cast %81 : vector<1x8x32xbf16> to vector<8x32xbf16>
    %cst_31 = arith.constant dense<0.000000e+00> : vector<16x32xf32>
    %83 = tpu.matmul %80, %82, %cst_31 {dimension_numbers = #tpu.dot_dimension_numbers<[1], [0], [0], [1], [0, 0, 1, 1], [], []>} : vector<16x8xbf16>, vector<8x32xbf16>, vector<16x32xf32> -> vector<16x32xf32>
    %84 = arith.addf %58, %83 : vector<16x32xf32>
    %85 = vector.extract_strided_slice %31 {offsets = [0, 16], sizes = [16, 8], strides = [1, 1]} : vector<16x96xf32> to vector<16x8xf32>
    %86 = arith.truncf %85 : vector<16x8xf32> to vector<16x8xbf16>
    %87 = vector.extract_strided_slice %31 {offsets = [0, 48], sizes = [16, 8], strides = [1, 1]} : vector<16x96xf32> to vector<16x8xf32>
    %88 = arith.truncf %87 : vector<16x8xf32> to vector<16x8xbf16>
    %89 = vector.extract_strided_slice %31 {offsets = [0, 80], sizes = [16, 8], strides = [1, 1]} : vector<16x96xf32> to vector<16x8xf32>
    %90 = arith.truncf %89 : vector<16x8xf32> to vector<16x8xbf16>
    %cst_32 = arith.constant dense<0.000000e+00> : vector<16x16xf32>
    %91 = tpu.matmul %86, %88, %cst_32 {dimension_numbers = #tpu.dot_dimension_numbers<[1], [1], [0], [0], [0, 0, 1, 0], [], []>} : vector<16x8xbf16>, vector<16x8xbf16>, vector<16x16xf32> -> vector<16x16xf32>
    %cst_33 = arith.constant 0.353553385 : f32
    %92 = vector.broadcast %cst_33 : f32 to vector<16x16xf32>
    %93 = arith.mulf %91, %92 : vector<16x16xf32>
    %cst_34 = arith.constant dense<0xFF800000> : vector<16xf32>
    %94 = vector.multi_reduction <maximumf>, %93, %cst_34 [1] : vector<16x16xf32> to vector<16xf32>
    %95 = vector.shape_cast %94 : vector<16xf32> to vector<16x1xf32>
    %96 = vector.broadcast %95 : vector<16x1xf32> to vector<16x16xf32>
    %97 = arith.subf %93, %96 : vector<16x16xf32>
    %98 = math.exp %97 : vector<16x16xf32>
    %cst_35 = arith.constant dense<0.000000e+00> : vector<16xf32>
    %99 = vector.multi_reduction <add>, %98, %cst_35 [1] : vector<16x16xf32> to vector<16xf32>
    %100 = vector.shape_cast %99 : vector<16xf32> to vector<16x1xf32>
    %101 = tpu.reciprocal %100 {approx = true} : vector<16x1xf32> -> vector<16x1xf32>
    %102 = vector.broadcast %101 : vector<16x1xf32> to vector<16x16xf32>
    %103 = arith.mulf %98, %102 : vector<16x16xf32>
    %104 = arith.truncf %103 : vector<16x16xf32> to vector<16x16xbf16>
    %cst_36 = arith.constant dense<0.000000e+00> : vector<16x8xf32>
    %105 = tpu.matmul %104, %90, %cst_36 {dimension_numbers = #tpu.dot_dimension_numbers<[1], [0], [0], [1], [0, 0, 1, 1], [], []>} : vector<16x16xbf16>, vector<16x8xbf16>, vector<16x8xf32> -> vector<16x8xf32>
    %106 = arith.truncf %105 : vector<16x8xf32> to vector<16x8xbf16>
    %c2 = arith.constant 2 : index
    %c0_37 = arith.constant 0 : index
    %c0_38 = arith.constant 0 : index
    %107 = vector.load %arg6[%c2, %c0_37, %c0_38] : memref<4x8x32xbf16, #tpu.memory_space<vmem>>, vector<1x8x32xbf16>
    %108 = vector.shape_cast %107 : vector<1x8x32xbf16> to vector<8x32xbf16>
    %cst_39 = arith.constant dense<0.000000e+00> : vector<16x32xf32>
    %109 = tpu.matmul %106, %108, %cst_39 {dimension_numbers = #tpu.dot_dimension_numbers<[1], [0], [0], [1], [0, 0, 1, 1], [], []>} : vector<16x8xbf16>, vector<8x32xbf16>, vector<16x32xf32> -> vector<16x32xf32>
    %110 = arith.addf %84, %109 : vector<16x32xf32>
    %111 = vector.extract_strided_slice %31 {offsets = [0, 24], sizes = [16, 8], strides = [1, 1]} : vector<16x96xf32> to vector<16x8xf32>
    %112 = arith.truncf %111 : vector<16x8xf32> to vector<16x8xbf16>
    %113 = vector.extract_strided_slice %31 {offsets = [0, 56], sizes = [16, 8], strides = [1, 1]} : vector<16x96xf32> to vector<16x8xf32>
    %114 = arith.truncf %113 : vector<16x8xf32> to vector<16x8xbf16>
    %115 = vector.extract_strided_slice %31 {offsets = [0, 88], sizes = [16, 8], strides = [1, 1]} : vector<16x96xf32> to vector<16x8xf32>
    %116 = arith.truncf %115 : vector<16x8xf32> to vector<16x8xbf16>
    %cst_40 = arith.constant dense<0.000000e+00> : vector<16x16xf32>
    %117 = tpu.matmul %112, %114, %cst_40 {dimension_numbers = #tpu.dot_dimension_numbers<[1], [1], [0], [0], [0, 0, 1, 0], [], []>} : vector<16x8xbf16>, vector<16x8xbf16>, vector<16x16xf32> -> vector<16x16xf32>
    %cst_41 = arith.constant 0.353553385 : f32
    %118 = vector.broadcast %cst_41 : f32 to vector<16x16xf32>
    %119 = arith.mulf %117, %118 : vector<16x16xf32>
    %cst_42 = arith.constant dense<0xFF800000> : vector<16xf32>
    %120 = vector.multi_reduction <maximumf>, %119, %cst_42 [1] : vector<16x16xf32> to vector<16xf32>
    %121 = vector.shape_cast %120 : vector<16xf32> to vector<16x1xf32>
    %122 = vector.broadcast %121 : vector<16x1xf32> to vector<16x16xf32>
    %123 = arith.subf %119, %122 : vector<16x16xf32>
    %124 = math.exp %123 : vector<16x16xf32>
    %cst_43 = arith.constant dense<0.000000e+00> : vector<16xf32>
    %125 = vector.multi_reduction <add>, %124, %cst_43 [1] : vector<16x16xf32> to vector<16xf32>
    %126 = vector.shape_cast %125 : vector<16xf32> to vector<16x1xf32>
    %127 = tpu.reciprocal %126 {approx = true} : vector<16x1xf32> -> vector<16x1xf32>
    %128 = vector.broadcast %127 : vector<16x1xf32> to vector<16x16xf32>
    %129 = arith.mulf %124, %128 : vector<16x16xf32>
    %130 = arith.truncf %129 : vector<16x16xf32> to vector<16x16xbf16>
    %cst_44 = arith.constant dense<0.000000e+00> : vector<16x8xf32>
    %131 = tpu.matmul %130, %116, %cst_44 {dimension_numbers = #tpu.dot_dimension_numbers<[1], [0], [0], [1], [0, 0, 1, 1], [], []>} : vector<16x16xbf16>, vector<16x8xbf16>, vector<16x8xf32> -> vector<16x8xf32>
    %132 = arith.truncf %131 : vector<16x8xf32> to vector<16x8xbf16>
    %c3 = arith.constant 3 : index
    %c0_45 = arith.constant 0 : index
    %c0_46 = arith.constant 0 : index
    %133 = vector.load %arg6[%c3, %c0_45, %c0_46] : memref<4x8x32xbf16, #tpu.memory_space<vmem>>, vector<1x8x32xbf16>
    %134 = vector.shape_cast %133 : vector<1x8x32xbf16> to vector<8x32xbf16>
    %cst_47 = arith.constant dense<0.000000e+00> : vector<16x32xf32>
    %135 = tpu.matmul %132, %134, %cst_47 {dimension_numbers = #tpu.dot_dimension_numbers<[1], [0], [0], [1], [0, 0, 1, 1], [], []>} : vector<16x8xbf16>, vector<8x32xbf16>, vector<16x32xf32> -> vector<16x32xf32>
    %136 = arith.addf %110, %135 : vector<16x32xf32>
    %137 = arith.addf %1, %136 : vector<16x32xf32>
    %c0_48 = arith.constant 0 : index
    %c0_49 = arith.constant 0 : index
    %138 = vector.load %arg7[%c0_48, %c0_49] : memref<1x32xf32, #tpu.memory_space<vmem>>, vector<1x32xf32>
    %139 = vector.broadcast %138 : vector<1x32xf32> to vector<16x32xf32>
    %140 = arith.addf %137, %139 : vector<16x32xf32>
    %141 = arith.truncf %140 : vector<16x32xf32> to vector<16x32xbf16>
    %c0_50 = arith.constant 0 : index
    %c0_51 = arith.constant 0 : index
    %142 = vector.load %arg8[%c0_50, %c0_51] : memref<16x32xbf16, #tpu.memory_space<vmem>>, vector<16x32xbf16>
    tpu.vector_store %arg8[%c0_50, %c0_51], %141 {strides = array<i32>} : memref<16x32xbf16, #tpu.memory_space<vmem>>, vector<16x32xbf16>,
    return
  }
  func.func @transform_0(%arg0: i32) -> (i32, i32) {
    %c0_i32 = arith.constant 0 : i32
    %c0_i32_0 = arith.constant 0 : i32
    return %arg0, %c0_i32 : i32, i32
  }
  func.func @transform_1(%arg0: i32) -> (i32, i32) {
    %c0_i32 = arith.constant 0 : i32
    %c0_i32_0 = arith.constant 0 : i32
    %c0_i32_1 = arith.constant 0 : i32
    return %c0_i32, %c0_i32_0 : i32, i32
  }
  func.func @transform_2(%arg0: i32) -> (i32, i32) {
    %c0_i32 = arith.constant 0 : i32
    %c0_i32_0 = arith.constant 0 : i32
    %c0_i32_1 = arith.constant 0 : i32
    return %c0_i32, %c0_i32_0 : i32, i32
  }
  func.func @transform_3(%arg0: i32) -> (i32, i32) {
    %c0_i32 = arith.constant 0 : i32
    %c0_i32_0 = arith.constant 0 : i32
    %c0_i32_1 = arith.constant 0 : i32
    return %c0_i32, %c0_i32_0 : i32, i32
  }
  func.func @transform_4(%arg0: i32) -> (i32, i32) {
    %c0_i32 = arith.constant 0 : i32
    %c0_i32_0 = arith.constant 0 : i32
    %c0_i32_1 = arith.constant 0 : i32
    return %c0_i32, %c0_i32_0 : i32, i32
  }
  func.func @transform_5(%arg0: i32) -> (i32, i32, i32) {
    %c0_i32 = arith.constant 0 : i32
    %c0_i32_0 = arith.constant 0 : i32
    %c0_i32_1 = arith.constant 0 : i32
    %c0_i32_2 = arith.constant 0 : i32
    return %c0_i32, %c0_i32_0, %c0_i32_1 : i32, i32, i32
  }
  func.func @transform_6(%arg0: i32) -> (i32, i32) {
    %c0_i32 = arith.constant 0 : i32
    %c0_i32_0 = arith.constant 0 : i32
    %c0_i32_1 = arith.constant 0 : i32
    return %c0_i32, %c0_i32_0 : i32, i32
  }
  func.func @transform_7(%arg0: i32) -> (i32, i32) {
    %c0_i32 = arith.constant 0 : i32
    %c0_i32_0 = arith.constant 0 : i32
    return %arg0, %c0_i32 : i32, i32
  }
}

module attributes {stable_mosaic.version = 11 : i64} {
  func.func @_mlp_block_kernel(%arg0: i32, %arg1: memref<16x32xbf16, #tpu.memory_space<vmem>>, %arg2: memref<1x32xf32, #tpu.memory_space<vmem>>, %arg3: memref<1x32xf32, #tpu.memory_space<vmem>>, %arg4: memref<32x128xbf16, #tpu.memory_space<vmem>>, %arg5: memref<1x128xf32, #tpu.memory_space<vmem>>, %arg6: memref<128x32xbf16, #tpu.memory_space<vmem>>, %arg7: memref<1x32xf32, #tpu.memory_space<vmem>>, %arg8: memref<16x32xbf16, #tpu.memory_space<vmem>>) attributes {dimension_semantics = [#tpu.dimension_semantics<parallel>], iteration_bounds = array<i64: 2>, scalar_prefetch = 0 : i64, scratch_operands = 0 : i64, tpu.core_type = #tpu.core_type<tc>, window_params = [{transform_indices = @transform_0, window_bounds = array<i64: 16, 32>}, {pipeline_mode = #tpu.pipeline_mode<synchronous>, transform_indices = @transform_1, window_bounds = array<i64: 1, 32>}, {pipeline_mode = #tpu.pipeline_mode<synchronous>, transform_indices = @transform_2, window_bounds = array<i64: 1, 32>}, {pipeline_mode = #tpu.pipeline_mode<synchronous>, transform_indices = @transform_3, window_bounds = array<i64: 32, 128>}, {pipeline_mode = #tpu.pipeline_mode<synchronous>, transform_indices = @transform_4, window_bounds = array<i64: 1, 128>}, {pipeline_mode = #tpu.pipeline_mode<synchronous>, transform_indices = @transform_5, window_bounds = array<i64: 128, 32>}, {pipeline_mode = #tpu.pipeline_mode<synchronous>, transform_indices = @transform_6, window_bounds = array<i64: 1, 32>}, {transform_indices = @transform_7, window_bounds = array<i64: 16, 32>}]} {
    %c0 = arith.constant 0 : index
    %c0_0 = arith.constant 0 : index
    %0 = vector.load %arg1[%c0, %c0_0] : memref<16x32xbf16, #tpu.memory_space<vmem>>, vector<16x32xbf16>
    %1 = arith.extf %0 : vector<16x32xbf16> to vector<16x32xf32>
    %cst = arith.constant dense<0.000000e+00> : vector<16xf32>
    %2 = vector.multi_reduction <add>, %1, %cst [1] : vector<16x32xf32> to vector<16xf32>
    %3 = vector.shape_cast %2 : vector<16xf32> to vector<16x1xf32>
    %cst_1 = arith.constant 3.200000e+01 : f32
    %4 = vector.broadcast %cst_1 : f32 to vector<16x1xf32>
    %5 = arith.divf %3, %4 : vector<16x1xf32>
    %6 = vector.broadcast %5 : vector<16x1xf32> to vector<16x32xf32>
    %7 = arith.subf %1, %6 : vector<16x32xf32>
    %8 = arith.mulf %7, %7 : vector<16x32xf32>
    %cst_2 = arith.constant dense<0.000000e+00> : vector<16xf32>
    %9 = vector.multi_reduction <add>, %8, %cst_2 [1] : vector<16x32xf32> to vector<16xf32>
    %10 = vector.shape_cast %9 : vector<16xf32> to vector<16x1xf32>
    %cst_3 = arith.constant 3.200000e+01 : f32
    %11 = vector.broadcast %cst_3 : f32 to vector<16x1xf32>
    %12 = arith.divf %10, %11 : vector<16x1xf32>
    %13 = vector.broadcast %5 : vector<16x1xf32> to vector<16x32xf32>
    %14 = arith.subf %1, %13 : vector<16x32xf32>
    %cst_4 = arith.constant 9.99999974E-6 : f32
    %15 = vector.broadcast %cst_4 : f32 to vector<16x1xf32>
    %16 = arith.addf %12, %15 : vector<16x1xf32>
    %17 = math.rsqrt %16 : vector<16x1xf32>
    %18 = vector.broadcast %17 : vector<16x1xf32> to vector<16x32xf32>
    %19 = arith.mulf %14, %18 : vector<16x32xf32>
    %c0_5 = arith.constant 0 : index
    %c0_6 = arith.constant 0 : index
    %20 = vector.load %arg2[%c0_5, %c0_6] : memref<1x32xf32, #tpu.memory_space<vmem>>, vector<1x32xf32>
    %21 = vector.broadcast %20 : vector<1x32xf32> to vector<16x32xf32>
    %22 = arith.mulf %19, %21 : vector<16x32xf32>
    %c0_7 = arith.constant 0 : index
    %c0_8 = arith.constant 0 : index
    %23 = vector.load %arg3[%c0_7, %c0_8] : memref<1x32xf32, #tpu.memory_space<vmem>>, vector<1x32xf32>
    %24 = vector.broadcast %23 : vector<1x32xf32> to vector<16x32xf32>
    %25 = arith.addf %22, %24 : vector<16x32xf32>
    %26 = arith.truncf %25 : vector<16x32xf32> to vector<16x32xbf16>
    %c0_9 = arith.constant 0 : index
    %c0_10 = arith.constant 0 : index
    %27 = vector.load %arg4[%c0_9, %c0_10] : memref<32x128xbf16, #tpu.memory_space<vmem>>, vector<32x128xbf16>
    %cst_11 = arith.constant dense<0.000000e+00> : vector<16x128xf32>
    %28 = tpu.matmul %26, %27, %cst_11 {dimension_numbers = #tpu.dot_dimension_numbers<[1], [0], [0], [1], [0, 0, 1, 1], [], []>} : vector<16x32xbf16>, vector<32x128xbf16>, vector<16x128xf32> -> vector<16x128xf32>
    %c0_12 = arith.constant 0 : index
    %c0_13 = arith.constant 0 : index
    %29 = vector.load %arg5[%c0_12, %c0_13] : memref<1x128xf32, #tpu.memory_space<vmem>>, vector<1x128xf32>
    %30 = vector.broadcast %29 : vector<1x128xf32> to vector<16x128xf32>
    %31 = arith.addf %28, %30 : vector<16x128xf32>
    %cst_14 = arith.constant 5.000000e-01 : f32
    %32 = vector.broadcast %cst_14 : f32 to vector<16x128xf32>
    %33 = arith.mulf %32, %31 : vector<16x128xf32>
    %cst_15 = arith.constant 4.471500e-02 : f32
    %34 = vector.broadcast %cst_15 : f32 to vector<16x128xf32>
    %35 = arith.mulf %34, %31 : vector<16x128xf32>
    %36 = arith.mulf %35, %31 : vector<16x128xf32>
    %37 = arith.mulf %36, %31 : vector<16x128xf32>
    %38 = arith.addf %31, %37 : vector<16x128xf32>
    %cst_16 = arith.constant 0.797884583 : f32
    %39 = vector.broadcast %cst_16 : f32 to vector<16x128xf32>
    %40 = arith.mulf %39, %38 : vector<16x128xf32>
    %41 = math.tanh %40 : vector<16x128xf32>
    %cst_17 = arith.constant 1.000000e+00 : f32
    %42 = vector.broadcast %cst_17 : f32 to vector<16x128xf32>
    %43 = arith.addf %42, %41 : vector<16x128xf32>
    %44 = arith.mulf %33, %43 : vector<16x128xf32>
    %45 = arith.truncf %44 : vector<16x128xf32> to vector<16x128xbf16>
    %c0_18 = arith.constant 0 : index
    %c0_19 = arith.constant 0 : index
    %46 = vector.load %arg6[%c0_18, %c0_19] : memref<128x32xbf16, #tpu.memory_space<vmem>>, vector<128x32xbf16>
    %cst_20 = arith.constant dense<0.000000e+00> : vector<16x32xf32>
    %47 = tpu.matmul %45, %46, %cst_20 {dimension_numbers = #tpu.dot_dimension_numbers<[1], [0], [0], [1], [0, 0, 1, 1], [], []>} : vector<16x128xbf16>, vector<128x32xbf16>, vector<16x32xf32> -> vector<16x32xf32>
    %c0_21 = arith.constant 0 : index
    %c0_22 = arith.constant 0 : index
    %48 = vector.load %arg7[%c0_21, %c0_22] : memref<1x32xf32, #tpu.memory_space<vmem>>, vector<1x32xf32>
    %49 = vector.broadcast %48 : vector<1x32xf32> to vector<16x32xf32>
    %50 = arith.addf %47, %49 : vector<16x32xf32>
    %51 = arith.addf %1, %50 : vector<16x32xf32>
    %52 = arith.truncf %51 : vector<16x32xf32> to vector<16x32xbf16>
    %c0_23 = arith.constant 0 : index
    %c0_24 = arith.constant 0 : index
    %53 = vector.load %arg8[%c0_23, %c0_24] : memref<16x32xbf16, #tpu.memory_space<vmem>>, vector<16x32xbf16>
    tpu.vector_store %arg8[%c0_23, %c0_24], %52 {strides = array<i32>} : memref<16x32xbf16, #tpu.memory_space<vmem>>, vector<16x32xbf16>,
    return
  }
  func.func @transform_0(%arg0: i32) -> (i32, i32) {
    %c0_i32 = arith.constant 0 : i32
    %c0_i32_0 = arith.constant 0 : i32
    return %arg0, %c0_i32 : i32, i32
  }
  func.func @transform_1(%arg0: i32) -> (i32, i32) {
    %c0_i32 = arith.constant 0 : i32
    %c0_i32_0 = arith.constant 0 : i32
    %c0_i32_1 = arith.constant 0 : i32
    return %c0_i32, %c0_i32_0 : i32, i32
  }
  func.func @transform_2(%arg0: i32) -> (i32, i32) {
    %c0_i32 = arith.constant 0 : i32
    %c0_i32_0 = arith.constant 0 : i32
    %c0_i32_1 = arith.constant 0 : i32
    return %c0_i32, %c0_i32_0 : i32, i32
  }
  func.func @transform_3(%arg0: i32) -> (i32, i32) {
    %c0_i32 = arith.constant 0 : i32
    %c0_i32_0 = arith.constant 0 : i32
    %c0_i32_1 = arith.constant 0 : i32
    return %c0_i32, %c0_i32_0 : i32, i32
  }
  func.func @transform_4(%arg0: i32) -> (i32, i32) {
    %c0_i32 = arith.constant 0 : i32
    %c0_i32_0 = arith.constant 0 : i32
    %c0_i32_1 = arith.constant 0 : i32
    return %c0_i32, %c0_i32_0 : i32, i32
  }
  func.func @transform_5(%arg0: i32) -> (i32, i32) {
    %c0_i32 = arith.constant 0 : i32
    %c0_i32_0 = arith.constant 0 : i32
    %c0_i32_1 = arith.constant 0 : i32
    return %c0_i32, %c0_i32_0 : i32, i32
  }
  func.func @transform_6(%arg0: i32) -> (i32, i32) {
    %c0_i32 = arith.constant 0 : i32
    %c0_i32_0 = arith.constant 0 : i32
    %c0_i32_1 = arith.constant 0 : i32
    return %c0_i32, %c0_i32_0 : i32, i32
  }
  func.func @transform_7(%arg0: i32) -> (i32, i32) {
    %c0_i32 = arith.constant 0 : i32
    %c0_i32_0 = arith.constant 0 : i32
    return %arg0, %c0_i32 : i32, i32
  }
}

module attributes {stable_mosaic.version = 11 : i64} {
  func.func @_norm_head_kernel(%arg0: i32, %arg1: memref<16x32xbf16, #tpu.memory_space<vmem>>, %arg2: memref<1x32xf32, #tpu.memory_space<vmem>>, %arg3: memref<1x32xf32, #tpu.memory_space<vmem>>, %arg4: memref<2x32x32xbf16, #tpu.memory_space<vmem>>, %arg5: memref<2x1x32xf32, #tpu.memory_space<vmem>>, %arg6: memref<16x32xbf16, #tpu.memory_space<vmem>>) attributes {dimension_semantics = [#tpu.dimension_semantics<parallel>], iteration_bounds = array<i64: 2>, scalar_prefetch = 0 : i64, scratch_operands = 0 : i64, tpu.core_type = #tpu.core_type<tc>, window_params = [{transform_indices = @transform_0, window_bounds = array<i64: 16, 32>}, {pipeline_mode = #tpu.pipeline_mode<synchronous>, transform_indices = @transform_1, window_bounds = array<i64: 1, 32>}, {pipeline_mode = #tpu.pipeline_mode<synchronous>, transform_indices = @transform_2, window_bounds = array<i64: 1, 32>}, {pipeline_mode = #tpu.pipeline_mode<synchronous>, transform_indices = @transform_3, window_bounds = array<i64: 2, 32, 32>}, {pipeline_mode = #tpu.pipeline_mode<synchronous>, transform_indices = @transform_4, window_bounds = array<i64: 2, 1, 32>}, {transform_indices = @transform_5, window_bounds = array<i64: 16, 32>}]} {
    %c0 = arith.constant 0 : index
    %c0_0 = arith.constant 0 : index
    %0 = vector.load %arg1[%c0, %c0_0] : memref<16x32xbf16, #tpu.memory_space<vmem>>, vector<16x32xbf16>
    %1 = arith.extf %0 : vector<16x32xbf16> to vector<16x32xf32>
    %cst = arith.constant dense<0.000000e+00> : vector<16xf32>
    %2 = vector.multi_reduction <add>, %1, %cst [1] : vector<16x32xf32> to vector<16xf32>
    %3 = vector.shape_cast %2 : vector<16xf32> to vector<16x1xf32>
    %cst_1 = arith.constant 3.200000e+01 : f32
    %4 = vector.broadcast %cst_1 : f32 to vector<16x1xf32>
    %5 = arith.divf %3, %4 : vector<16x1xf32>
    %6 = vector.broadcast %5 : vector<16x1xf32> to vector<16x32xf32>
    %7 = arith.subf %1, %6 : vector<16x32xf32>
    %8 = arith.mulf %7, %7 : vector<16x32xf32>
    %cst_2 = arith.constant dense<0.000000e+00> : vector<16xf32>
    %9 = vector.multi_reduction <add>, %8, %cst_2 [1] : vector<16x32xf32> to vector<16xf32>
    %10 = vector.shape_cast %9 : vector<16xf32> to vector<16x1xf32>
    %cst_3 = arith.constant 3.200000e+01 : f32
    %11 = vector.broadcast %cst_3 : f32 to vector<16x1xf32>
    %12 = arith.divf %10, %11 : vector<16x1xf32>
    %13 = vector.broadcast %5 : vector<16x1xf32> to vector<16x32xf32>
    %14 = arith.subf %1, %13 : vector<16x32xf32>
    %cst_4 = arith.constant 9.99999974E-6 : f32
    %15 = vector.broadcast %cst_4 : f32 to vector<16x1xf32>
    %16 = arith.addf %12, %15 : vector<16x1xf32>
    %17 = math.rsqrt %16 : vector<16x1xf32>
    %18 = vector.broadcast %17 : vector<16x1xf32> to vector<16x32xf32>
    %19 = arith.mulf %14, %18 : vector<16x32xf32>
    %c0_5 = arith.constant 0 : index
    %c0_6 = arith.constant 0 : index
    %20 = vector.load %arg2[%c0_5, %c0_6] : memref<1x32xf32, #tpu.memory_space<vmem>>, vector<1x32xf32>
    %21 = vector.broadcast %20 : vector<1x32xf32> to vector<16x32xf32>
    %22 = arith.mulf %19, %21 : vector<16x32xf32>
    %c0_7 = arith.constant 0 : index
    %c0_8 = arith.constant 0 : index
    %23 = vector.load %arg3[%c0_7, %c0_8] : memref<1x32xf32, #tpu.memory_space<vmem>>, vector<1x32xf32>
    %24 = vector.broadcast %23 : vector<1x32xf32> to vector<16x32xf32>
    %25 = arith.addf %22, %24 : vector<16x32xf32>
    %26 = arith.truncf %25 : vector<16x32xf32> to vector<16x32xbf16>
    %c0_9 = arith.constant 0 : index
    %c0_10 = arith.constant 0 : index
    %c0_11 = arith.constant 0 : index
    %27 = vector.load %arg4[%c0_9, %c0_10, %c0_11] : memref<2x32x32xbf16, #tpu.memory_space<vmem>>, vector<1x32x32xbf16>
    %28 = vector.shape_cast %27 : vector<1x32x32xbf16> to vector<32x32xbf16>
    %cst_12 = arith.constant dense<0.000000e+00> : vector<16x32xf32>
    %29 = tpu.matmul %26, %28, %cst_12 {dimension_numbers = #tpu.dot_dimension_numbers<[1], [0], [0], [1], [0, 0, 1, 1], [], []>} : vector<16x32xbf16>, vector<32x32xbf16>, vector<16x32xf32> -> vector<16x32xf32>
    %c0_13 = arith.constant 0 : index
    %c0_14 = arith.constant 0 : index
    %c0_15 = arith.constant 0 : index
    %30 = vector.load %arg5[%c0_13, %c0_14, %c0_15] : memref<2x1x32xf32, #tpu.memory_space<vmem>>, vector<1x1x32xf32>
    %31 = vector.shape_cast %30 : vector<1x1x32xf32> to vector<1x32xf32>
    %32 = vector.broadcast %31 : vector<1x32xf32> to vector<16x32xf32>
    %33 = arith.addf %29, %32 : vector<16x32xf32>
    %cst_16 = arith.constant 5.000000e-01 : f32
    %34 = vector.broadcast %cst_16 : f32 to vector<16x32xf32>
    %35 = arith.mulf %34, %33 : vector<16x32xf32>
    %cst_17 = arith.constant 4.471500e-02 : f32
    %36 = vector.broadcast %cst_17 : f32 to vector<16x32xf32>
    %37 = arith.mulf %36, %33 : vector<16x32xf32>
    %38 = arith.mulf %37, %33 : vector<16x32xf32>
    %39 = arith.mulf %38, %33 : vector<16x32xf32>
    %40 = arith.addf %33, %39 : vector<16x32xf32>
    %cst_18 = arith.constant 0.797884583 : f32
    %41 = vector.broadcast %cst_18 : f32 to vector<16x32xf32>
    %42 = arith.mulf %41, %40 : vector<16x32xf32>
    %43 = math.tanh %42 : vector<16x32xf32>
    %cst_19 = arith.constant 1.000000e+00 : f32
    %44 = vector.broadcast %cst_19 : f32 to vector<16x32xf32>
    %45 = arith.addf %44, %43 : vector<16x32xf32>
    %46 = arith.mulf %35, %45 : vector<16x32xf32>
    %47 = arith.truncf %46 : vector<16x32xf32> to vector<16x32xbf16>
    %c1 = arith.constant 1 : index
    %c0_20 = arith.constant 0 : index
    %c0_21 = arith.constant 0 : index
    %48 = vector.load %arg4[%c1, %c0_20, %c0_21] : memref<2x32x32xbf16, #tpu.memory_space<vmem>>, vector<1x32x32xbf16>
    %49 = vector.shape_cast %48 : vector<1x32x32xbf16> to vector<32x32xbf16>
    %cst_22 = arith.constant dense<0.000000e+00> : vector<16x32xf32>
    %50 = tpu.matmul %47, %49, %cst_22 {dimension_numbers = #tpu.dot_dimension_numbers<[1], [0], [0], [1], [0, 0, 1, 1], [], []>} : vector<16x32xbf16>, vector<32x32xbf16>, vector<16x32xf32> -> vector<16x32xf32>
    %c1_23 = arith.constant 1 : index
    %c0_24 = arith.constant 0 : index
    %c0_25 = arith.constant 0 : index
    %51 = vector.load %arg5[%c1_23, %c0_24, %c0_25] : memref<2x1x32xf32, #tpu.memory_space<vmem>>, vector<1x1x32xf32>
    %52 = vector.shape_cast %51 : vector<1x1x32xf32> to vector<1x32xf32>
    %53 = vector.broadcast %52 : vector<1x32xf32> to vector<16x32xf32>
    %54 = arith.addf %50, %53 : vector<16x32xf32>
    %cst_26 = arith.constant 5.000000e-01 : f32
    %55 = vector.broadcast %cst_26 : f32 to vector<16x32xf32>
    %56 = arith.mulf %55, %54 : vector<16x32xf32>
    %cst_27 = arith.constant 4.471500e-02 : f32
    %57 = vector.broadcast %cst_27 : f32 to vector<16x32xf32>
    %58 = arith.mulf %57, %54 : vector<16x32xf32>
    %59 = arith.mulf %58, %54 : vector<16x32xf32>
    %60 = arith.mulf %59, %54 : vector<16x32xf32>
    %61 = arith.addf %54, %60 : vector<16x32xf32>
    %cst_28 = arith.constant 0.797884583 : f32
    %62 = vector.broadcast %cst_28 : f32 to vector<16x32xf32>
    %63 = arith.mulf %62, %61 : vector<16x32xf32>
    %64 = math.tanh %63 : vector<16x32xf32>
    %cst_29 = arith.constant 1.000000e+00 : f32
    %65 = vector.broadcast %cst_29 : f32 to vector<16x32xf32>
    %66 = arith.addf %65, %64 : vector<16x32xf32>
    %67 = arith.mulf %56, %66 : vector<16x32xf32>
    %68 = arith.truncf %67 : vector<16x32xf32> to vector<16x32xbf16>
    %c0_30 = arith.constant 0 : index
    %c0_31 = arith.constant 0 : index
    %69 = vector.load %arg6[%c0_30, %c0_31] : memref<16x32xbf16, #tpu.memory_space<vmem>>, vector<16x32xbf16>
    tpu.vector_store %arg6[%c0_30, %c0_31], %68 {strides = array<i32>} : memref<16x32xbf16, #tpu.memory_space<vmem>>, vector<16x32xbf16>,
    return
  }
  func.func @transform_0(%arg0: i32) -> (i32, i32) {
    %c0_i32 = arith.constant 0 : i32
    %c0_i32_0 = arith.constant 0 : i32
    return %arg0, %c0_i32 : i32, i32
  }
  func.func @transform_1(%arg0: i32) -> (i32, i32) {
    %c0_i32 = arith.constant 0 : i32
    %c0_i32_0 = arith.constant 0 : i32
    %c0_i32_1 = arith.constant 0 : i32
    return %c0_i32, %c0_i32_0 : i32, i32
  }
  func.func @transform_2(%arg0: i32) -> (i32, i32) {
    %c0_i32 = arith.constant 0 : i32
    %c0_i32_0 = arith.constant 0 : i32
    %c0_i32_1 = arith.constant 0 : i32
    return %c0_i32, %c0_i32_0 : i32, i32
  }
  func.func @transform_3(%arg0: i32) -> (i32, i32, i32) {
    %c0_i32 = arith.constant 0 : i32
    %c0_i32_0 = arith.constant 0 : i32
    %c0_i32_1 = arith.constant 0 : i32
    %c0_i32_2 = arith.constant 0 : i32
    return %c0_i32, %c0_i32_0, %c0_i32_1 : i32, i32, i32
  }
  func.func @transform_4(%arg0: i32) -> (i32, i32, i32) {
    %c0_i32 = arith.constant 0 : i32
    %c0_i32_0 = arith.constant 0 : i32
    %c0_i32_1 = arith.constant 0 : i32
    %c0_i32_2 = arith.constant 0 : i32
    return %c0_i32, %c0_i32_0, %c0_i32_1 : i32, i32, i32
  }
  func.func @transform_5(%arg0: i32) -> (i32, i32) {
    %c0_i32 = arith.constant 0 : i32
    %c0_i32_0 = arith.constant 0 : i32
    return %arg0, %c0_i32 : i32, i32
  }
}

module attributes {stable_mosaic.version = 11 : i64} {
  func.func @_convT_kernel(%arg0: i32, %arg1: memref<3x98xbf16, #tpu.memory_space<vmem>>, %arg2: memref<98x256xbf16, #tpu.memory_space<vmem>>, %arg3: memref<3x1xf32, #tpu.memory_space<vmem>>, %arg4: memref<3x256xf32, #tpu.memory_space<vmem>>) attributes {dimension_semantics = [#tpu.dimension_semantics<parallel>], iteration_bounds = array<i64: 2>, scalar_prefetch = 0 : i64, scratch_operands = 0 : i64, tpu.core_type = #tpu.core_type<tc>, window_params = [{pipeline_mode = #tpu.pipeline_mode<synchronous>, transform_indices = @transform_0, window_bounds = array<i64: 3, 98>}, {transform_indices = @transform_1, window_bounds = array<i64: 98, 256>}, {pipeline_mode = #tpu.pipeline_mode<synchronous>, transform_indices = @transform_2, window_bounds = array<i64: 3, 1>}, {transform_indices = @transform_3, window_bounds = array<i64: 3, 256>}]} {
    %c0 = arith.constant 0 : index
    %c0_0 = arith.constant 0 : index
    %0 = vector.load %arg1[%c0, %c0_0] : memref<3x98xbf16, #tpu.memory_space<vmem>>, vector<3x98xbf16>
    %c0_1 = arith.constant 0 : index
    %c0_2 = arith.constant 0 : index
    %1 = vector.load %arg2[%c0_1, %c0_2] : memref<98x256xbf16, #tpu.memory_space<vmem>>, vector<98x256xbf16>
    %cst = arith.constant dense<0.000000e+00> : vector<3x256xf32>
    %2 = tpu.matmul %0, %1, %cst {dimension_numbers = #tpu.dot_dimension_numbers<[1], [0], [0], [1], [0, 0, 1, 1], [], []>} : vector<3x98xbf16>, vector<98x256xbf16>, vector<3x256xf32> -> vector<3x256xf32>
    %c0_3 = arith.constant 0 : index
    %c0_4 = arith.constant 0 : index
    %3 = vector.load %arg3[%c0_3, %c0_4] : memref<3x1xf32, #tpu.memory_space<vmem>>, vector<3x1xf32>
    %4 = vector.broadcast %3 : vector<3x1xf32> to vector<3x256xf32>
    %5 = arith.addf %2, %4 : vector<3x256xf32>
    %c0_5 = arith.constant 0 : index
    %c0_6 = arith.constant 0 : index
    %6 = vector.load %arg4[%c0_5, %c0_6] : memref<3x256xf32, #tpu.memory_space<vmem>>, vector<3x256xf32>
    tpu.vector_store %arg4[%c0_5, %c0_6], %5 {strides = array<i32>} : memref<3x256xf32, #tpu.memory_space<vmem>>, vector<3x256xf32>,
    return
  }
  func.func @transform_0(%arg0: i32) -> (i32, i32) {
    %c0_i32 = arith.constant 0 : i32
    %c0_i32_0 = arith.constant 0 : i32
    %c0_i32_1 = arith.constant 0 : i32
    return %c0_i32, %c0_i32_0 : i32, i32
  }
  func.func @transform_1(%arg0: i32) -> (i32, i32) {
    %c0_i32 = arith.constant 0 : i32
    %c0_i32_0 = arith.constant 0 : i32
    return %c0_i32, %arg0 : i32, i32
  }
  func.func @transform_2(%arg0: i32) -> (i32, i32) {
    %c0_i32 = arith.constant 0 : i32
    %c0_i32_0 = arith.constant 0 : i32
    %c0_i32_1 = arith.constant 0 : i32
    return %c0_i32, %c0_i32_0 : i32, i32
  }
  func.func @transform_3(%arg0: i32) -> (i32, i32) {
    %c0_i32 = arith.constant 0 : i32
    %c0_i32_0 = arith.constant 0 : i32
    return %c0_i32, %arg0 : i32, i32
  }
}

</mosaic_0001>

<llo_original>
// kernel: _lambda_.7
$region0: #{_lambda_.7}
  #allocation0 [shape = 'u32[]', space=smem, size = 0x4, offset = 0x4, fixed_abs, tag = 'smem constant byte address 0x4 - core index']
  #allocation1 [shape = 'u32[144,128]{1,0:T(1,128)}', space=vmem, size = 0x12000, scoped, tag = 'internal scratch']
  %s0 = inlined_call_operand.vmem [shape: bf16[32,64], index: 0, kind: input, shape index: {}]
  %s1 = inlined_call_operand.vmem [shape: bf16[64,32], index: 1, kind: input, shape index: {}]
  %s2 = inlined_call_operand.vmem [shape: f32[1,32], index: 2, kind: input, shape index: {}]
  %s3 = inlined_call_operand.vmem [shape: bf16[32,32], index: 3, kind: output, shape index: {}]
  %s4 = sld [smem:[#allocation0]]
  $region45: #{_lambda_.7} parent=0
    _
  %s6 = ssub.s32 1, %s4
  %s7 = scalar_select 0, %s6, %s4
  loop: start=0, step=1, limit=4
  $region2: #{_lambda_.7} parent=0 // loop_pre_header
    _
  $region3: #{_lambda_.7} parent=0 // loop_header
    %s9 = sphi 0, %s13
    %p10 = scmp.ge.s32.totalorder %s9, 4
    %s19 = sphi 0, %s21
    %s22 = sphi 0, %s19
    %s23 = sphi 0, %s22
    %s39 = sphi 0, %s23
    %s43 = sphi 0, %s43
    %s45 = sphi 0, %s43
    %s46 = sphi 0, %s45
    %s60 = sphi 0, %s46
    %s64 = sphi 0, %s64
    %s66 = sphi 0, %s64
    %s67 = sphi 0, %s66
    %s81 = sphi 0, %s67
    %s87 = sphi 0, %s89
    %s90 = sphi 0, %s87
    %s91 = sphi 0, %s90
    %s107 = sphi 0, %s91
  $region4: #{_lambda_.7} parent=0 // loop_header_branch
    %12 = sbr.rel (%p10) target = $region8
  $region5: #{_lambda_.7} parent=0 // loop_body
    %s14 = ssub.s32 %s9, 1
    %s15 = ssub.s32 %s9, 2
    %s16 = sadd.s32 %s9, 1
    %s17 = ssub.s32 %s9, %s16
    %p18 = scmp.eq.s32.totalorder %s17, 0
    %s20 = sadd.s32 %s19, 1
    %s21 = scalar_select %p18, %s19, %s20
    %p24 = pneg %p18
    %p25 = scmp.eq.s32.totalorder %s9, 1
    %p26 = por %p24, %p25
    %p27 = scmp.ne.s32.totalorder %s19, %s22
    %p28 = scmp.eq.s32.totalorder %s9, 0
    %p29 = por %p27, %p28
    %p30 = scmp.ne.s32.totalorder %s19, %s22
    %p31 = scmp.eq.s32.totalorder %s14, 1
    %p32 = por %p30, %p31
    %p33 = scmp.ne.s32.totalorder %s22, %s23
    %p34 = scmp.eq.s32.totalorder %s14, 0
    %p35 = por %p33, %p34
    %p36 = scmp.ne.s32.totalorder %s22, %s23
    %p37 = scmp.eq.s32.totalorder %s15, 1
    %p38 = por %p36, %p37
    %p40 = scmp.ne.s32.totalorder %s23, %s39
    %p41 = scmp.eq.s32.totalorder %s15, 0
    %p42 = por %p40, %p41
    %s44 = sadd.s32 %s43, 1
    %p47 = scmp.eq.s32.totalorder %s9, 1
    %p48 = scmp.ne.s32.totalorder %s43, %s45
    %p49 = scmp.eq.s32.totalorder %s9, 0
    %p50 = por %p48, %p49
    %p51 = scmp.ne.s32.totalorder %s43, %s45
    %p52 = scmp.eq.s32.totalorder %s14, 1
    %p53 = por %p51, %p52
    %p54 = scmp.ne.s32.totalorder %s45, %s46
    %p55 = scmp.eq.s32.totalorder %s14, 0
    %p56 = por %p54, %p55
    %p57 = scmp.ne.s32.totalorder %s45, %s46
    %p58 = scmp.eq.s32.totalorder %s15, 1
    %p59 = por %p57, %p58
    %p61 = scmp.ne.s32.totalorder %s46, %s60
    %p62 = scmp.eq.s32.totalorder %s15, 0
    %p63 = por %p61, %p62
    %s65 = sadd.s32 %s64, 1
    %p68 = scmp.eq.s32.totalorder %s9, 1
    %p69 = scmp.ne.s32.totalorder %s64, %s66
    %p70 = scmp.eq.s32.totalorder %s9, 0
    %p71 = por %p69, %p70
    %p72 = scmp.ne.s32.totalorder %s64, %s66
    %p73 = scmp.eq.s32.totalorder %s14, 1
    %p74 = por %p72, %p73
    %p75 = scmp.ne.s32.totalorder %s66, %s67
    %p76 = scmp.eq.s32.totalorder %s14, 0
    %p77 = por %p75, %p76
    %p78 = scmp.ne.s32.totalorder %s66, %s67
    %p79 = scmp.eq.s32.totalorder %s15, 1
    %p80 = por %p78, %p79
    %p82 = scmp.ne.s32.totalorder %s67, %s81
    %p83 = scmp.eq.s32.totalorder %s15, 0
    %p84 = por %p82, %p83
    %s85 = ssub.s32 %s9, %s16
    %p86 = scmp.eq.s32.totalorder %s85, 0
    %s88 = sadd.s32 %s87, 1
    %s89 = scalar_select %p86, %s87, %s88
    %p92 = pneg %p86
    %p93 = scmp.eq.s32.totalorder %s9, 1
    %p94 = por %p92, %p93
    %p95 = scmp.ne.s32.totalorder %s87, %s90
    %p96 = scmp.eq.s32.totalorder %s9, 0
    %p97 = por %p95, %p96
    %p98 = scmp.ne.s32.totalorder %s87, %s90
    %p99 = scmp.eq.s32.totalorder %s14, 1
    %p100 = por %p98, %p99
    %p101 = scmp.ne.s32.totalorder %s90, %s91
    %p102 = scmp.eq.s32.totalorder %s14, 0
    %p103 = por %p101, %p102
    %p104 = scmp.ne.s32.totalorder %s90, %s91
    %p105 = scmp.eq.s32.totalorder %s15, 1
    %p106 = por %p104, %p105
    %p108 = scmp.ne.s32.totalorder %s91, %s107
    %p109 = scmp.eq.s32.totalorder %s15, 0
    %p110 = por %p108, %p109
    %p111 = scmp.le.s32.totalorder 1, %s9
    %p112 = scmp.lt.s32.totalorder %s9, 3
    %p113 = pnand %p111, %p112
    %p114 = pneg %p113
    // Predicated region
    $region9: #{_lambda_.7} parent=5 // pred_check
      _
    $region10: #{_lambda_.7} parent=5 // pred_check_branch
      %116 = sbr.rel (%p113) target = $region12
    $region11: #{_lambda_.7} parent=5 // pred_region
      %s117 = ssub.s32 %s9, 1
      // Predicated region
      $region13: #{_lambda_.7} parent=11 // pred_check
        %p118 = pneg %p56
      $region14: #{_lambda_.7} parent=11 // pred_check_branch
        %120 = sbr.rel (%p118) target = $region16
      $region15: #{_lambda_.7} parent=11 // pred_region
        _
      $region16: #{_lambda_.7} parent=11 // pred_fallthru
        _
      // Predicated region
      $region17: #{_lambda_.7} parent=11 // pred_check
        %p121 = pneg %p77
      $region18: #{_lambda_.7} parent=11 // pred_check_branch
        %123 = sbr.rel (%p121) target = $region20
      $region19: #{_lambda_.7} parent=11 // pred_region
        _
      $region20: #{_lambda_.7} parent=11 // pred_fallthru
        _
    $region12: #{_lambda_.7} parent=5 // pred_fallthru
      _
    %p124 = scmp.lt.s32.totalorder %s9, 2
    // Predicated region
    $region21: #{_lambda_.7} parent=5 // pred_check
      %p125 = pneg %p124
    $region22: #{_lambda_.7} parent=5 // pred_check_branch
      %127 = sbr.rel (%p125) target = $region24
    $region23: #{_lambda_.7} parent=5 // pred_region
      // Predicated region
      $region25: #{_lambda_.7} parent=23 // pred_check
        %p128 = pneg %p29
      $region26: #{_lambda_.7} parent=23 // pred_check_branch
        %130 = sbr.rel (%p128) target = $region28
      $region27: #{_lambda_.7} parent=23 // pred_region
        %s131 = smul.u32 2, %s9
        %p132 = scmp.lt.s32.totalorder %s131, 3
        %s133 = scalar_select %p132, %s131, 3
        %s134 = smul.addr %s133, 4
        %s135 = scalar_lea.vmem %s0, %s134
        %s136 = smul.u32 2, %s9
      $region28: #{_lambda_.7} parent=23 // pred_fallthru
        _
    $region24: #{_lambda_.7} parent=5 // pred_fallthru
      _
    %p137 = scmp.le.s32.totalorder 1, %s9
    %p138 = scmp.lt.s32.totalorder %s9, 3
    %p139 = pnand %p137, %p138
    %p140 = pneg %p139
    // Predicated region
    $region29: #{_lambda_.7} parent=5 // pred_check
      _
    $region30: #{_lambda_.7} parent=5 // pred_check_branch
      %142 = sbr.rel (%p139) target = $region32
    $region31: #{_lambda_.7} parent=5 // pred_region
      %s143 = ssub.s32 %s9, 1
      %s144 = smul.u32 2, %s14
      %p145 = scmp.lt.s32.totalorder %s144, 3
      %s146 = scalar_select %p145, %s144, 3
      %s147 = smul.addr %s146, 4
      %s148 = scalar_lea.vmem %s0, %s147
      %p149 = pneg %p35
      %p150 = pneg %p32
      %p151 = pneg %p56
      %p152 = pneg %p53
      %p153 = pneg %p77
      %p154 = pneg %p74
      %p155 = pneg %p103
      %p156 = pneg %p100
      %s157 = smul.u32 2, %s14
      %p158 = scmp.lt.s32.totalorder %s157, 3
      %s159 = scalar_select %p158, %s157, 3
      %s160 = smul.addr %s159, 4
      %s161 = scalar_lea.vmem %s3, %s160
      %s162 = smul.u32 2, %s14
      %p163 = scmp.lt.s32.totalorder %s162, 3
      %s164 = scalar_select %p163, %s162, 3
      %s165 = smul.addr %s164, 4
      %s166 = scalar_lea.vmem %s0, %s165
      %s167 = smul.u32 2, %s14
      %s168 = smul.u32 2, %s14
      %p169 = scmp.lt.s32.totalorder %s168, 3
      %s170 = scalar_select %p169, %s168, 3
      %s171 = smul.addr %s170, 4
      %s172 = scalar_lea.vmem %s3, %s171
      %s173 = smul.u32 2, %s14
      %v175 = vld [vmem:[%s166] sm:$0xf]
      %v176 = vld [vmem:[%s166 + $0x4] sm:$0xf]
      %v177 = vld [vmem:[%s1] sm:$0xf]
      %v178 = vld [vmem:[%s1 + $0x4] sm:$0xf]
      %v179 = vld [vmem:[%s1 + $0x8] sm:$0xf]
      %v180 = vld [vmem:[%s1 + $0xc] sm:$0xf]
      %v181 = vld [vmem:[%s1 + $0x10] sm:$0xf]
      %v182 = vld [vmem:[%s1 + $0x14] sm:$0xf]
      %v183 = vld [vmem:[%s1 + $0x18] sm:$0xf]
      %v184 = vld [vmem:[%s1 + $0x1c] sm:$0xf]
      %v185 = vld [vmem:[%s2] sm:$0x1]
      %v187 = vlaneseq
      %v188 = vshrl.u32 %v187, 7
      %v189 = vsub.s32 0, %v188
      %v190 = vrot.slane %v185, %v189
      %v194 = vunpack.c.l.b16 %v175
      %v195 = vunpack.c.l.b16 %v176
      %v196 = vpack.c.b16 %v195, %v194
      %v205 = vunpack.c.l.b16 %v177
      %v206 = vunpack.c.l.b16 %v178
      %v207 = vunpack.c.l.b16 %v179
      %v208 = vunpack.c.l.b16 %v180
      %v209 = vunpack.c.l.b16 %v181
      %v210 = vunpack.c.l.b16 %v182
      %v211 = vunpack.c.l.b16 %v183
      %v212 = vunpack.c.l.b16 %v184
      %v213 = vpack.c.b16 %v206, %v205
      %v214 = vpack.c.b16 %v208, %v207
      %v215 = vpack.c.b16 %v210, %v209
      %v216 = vpack.c.b16 %v212, %v211
      %vm221 = vcmask 523264
      %v223 = vsel %vm221, %v196, 0
      %225 = vmatprep.subr.bf16.mxu0 0
      %226 = vmatpush1.bf16.msra.mxu0 %v213
      %227 = vmatprep.subr.bf16.mxu0 0
      %228 = vmatpush1.bf16.msra.mxu0 %v214
      %229 = vmatprep.subr.bf16.mxu0 0
      %230 = vmatpush1.bf16.msra.mxu0 %v215
      %231 = vmatprep.subr.bf16.mxu0 0
      %232 = vmatpush1.bf16.msra.mxu0 %v216
      %233 = vmatprep.subr.bf16.mxu0 0
      %234 = vmatpush1.bf16.msra.mxu0 0
      %235 = vmatprep.subr.bf16.mxu0 0
      %236 = vmatpush1.bf16.msra.mxu0 0
      %237 = vmatprep.subr.bf16.mxu0 0
      %238 = vmatpush1.bf16.msra.mxu0 0
      %239 = vmatprep.subr.bf16.mxu0 0
      %240 = vmatpush1.bf16.msra.mxu0 0
      %241 = vmatprep.subr.bf16.mxu0 0
      %242 = vmatpush1.bf16.msra.mxu0 0
      %243 = vmatprep.subr.bf16.mxu0 0
      %244 = vmatpush1.bf16.msra.mxu0 0
      %245 = vmatprep.subr.bf16.mxu0 0
      %246 = vmatpush1.bf16.msra.mxu0 0
      %247 = vmatprep.subr.bf16.mxu0 0
      %248 = vmatpush1.bf16.msra.mxu0 0
      %249 = vmatprep.subr.bf16.mxu0 0
      %250 = vmatpush1.bf16.msra.mxu0 0
      %251 = vmatprep.subr.bf16.mxu0 0
      %252 = vmatpush1.bf16.msra.mxu0 0
      %253 = vmatprep.subr.bf16.mxu0 0
      %254 = vmatpush1.bf16.msra.mxu0 0
      %255 = vmatprep.subr.bf16.mxu0 0
      %256 = vmatpush1.bf16.msra.mxu0 0
      %257 = vmatprep.mubr.bf16.mxu0 0
      %258 = vmatmul.mubr.bf16.gmra.mrb[0].mxu0 %v223
      %v259 = vpop.f32.mrb[0].mxu0
      %v260 = vadd.f32 %v190, %v259
      %v261 = vpop.f32.mrb[0].mxu0
      %v262 = vpop.f32.mrb[0].mxu0
      %v263 = vadd.f32 %v190, %v262
      %v264 = vpop.f32.mrb[0].mxu0
      %265 = vdwg.mxu0
      %v266 = vpack.c.bf16 %v263, %v260
      %v268 = vunpack.c.l.b16 %v266
      %v269 = vunpack.c.h.b16 %v266
      %v270 = vpack.c.b16 %v268, %v268
      %v271 = vpack.c.b16 %v269, %v269
      %vm274 = vcmask 257024
      %275 = vst.msk [vmem:[%s172] sm:$0xf] %vm274, %v270
      %276 = vst.msk [vmem:[%s172 + $0x4] sm:$0xf] %vm274, %v271
      %s277 = smul.u32 2, %s14
      %p278 = scmp.lt.s32.totalorder %s277, 3
      %s279 = scalar_select %p278, %s277, 3
      %s280 = smul.addr %s279, 4
      %s281 = scalar_lea.vmem %s3, %s280
      // Predicated region
      $region33: #{_lambda_.7} parent=31 // pred_check
        %p282 = pneg %p100
      $region34: #{_lambda_.7} parent=31 // pred_check_branch
        %284 = sbr.rel (%p282) target = $region36
      $region35: #{_lambda_.7} parent=31 // pred_region
        %s285 = smul.u32 2, %s14
      $region36: #{_lambda_.7} parent=31 // pred_fallthru
        _
    $region32: #{_lambda_.7} parent=5 // pred_fallthru
      _
    %p286 = scmp.le.s32.totalorder 2, %s9
    // Predicated region
    $region37: #{_lambda_.7} parent=5 // pred_check
      %p287 = pneg %p286
    $region38: #{_lambda_.7} parent=5 // pred_check_branch
      %289 = sbr.rel (%p287) target = $region40
    $region39: #{_lambda_.7} parent=5 // pred_region
      %s290 = ssub.s32 %s9, 2
      // Predicated region
      $region41: #{_lambda_.7} parent=39 // pred_check
        %p291 = pneg %p106
      $region42: #{_lambda_.7} parent=39 // pred_check_branch
        %293 = sbr.rel (%p291) target = $region44
      $region43: #{_lambda_.7} parent=39 // pred_region
        %s294 = smul.u32 2, %s15
        %p295 = scmp.lt.s32.totalorder %s294, 3
        %s296 = scalar_select %p295, %s294, 3
        %s297 = smul.addr %s296, 4
        %s298 = scalar_lea.vmem %s3, %s297
      $region44: #{_lambda_.7} parent=39 // pred_fallthru
        _
    $region40: #{_lambda_.7} parent=5 // pred_fallthru
      _
  $region6: #{_lambda_.7} parent=0 // loop_footer
    %s13 = sadd.s32 1, %s9
  $region7: #{_lambda_.7} parent=0 // loop_footer_branch
    %8 = sbr.rel target = $region3
  $region8: #{_lambda_.7} parent=0 // loop_exit
    _

// kernel: _lambda_.12
$region0: #{_lambda_.12}
  #allocation0 [shape = 'u32[]', space=smem, size = 0x4, offset = 0x4, fixed_abs, tag = 'smem constant byte address 0x4 - core index']
  #allocation1 [shape = 'u32[144,128]{1,0:T(1,128)}', space=vmem, size = 0x12000, scoped, tag = 'internal scratch']
  %s0 = inlined_call_operand.vmem [shape: bf16[32,32], index: 0, kind: input, shape index: {}]
  %s1 = inlined_call_operand.vmem [shape: f32[1,32], index: 1, kind: input, shape index: {}]
  %s2 = inlined_call_operand.vmem [shape: f32[1,32], index: 2, kind: input, shape index: {}]
  %s3 = inlined_call_operand.vmem [shape: bf16[2,32,32], index: 3, kind: input, shape index: {}]
  %s4 = inlined_call_operand.vmem [shape: f32[2,1,32], index: 4, kind: input, shape index: {}]
  %s5 = inlined_call_operand.vmem [shape: bf16[32,32], index: 5, kind: output, shape index: {}]
  %s6 = sld [smem:[#allocation0]]
  $region53: #{_lambda_.12} parent=0
    _
  %s8 = ssub.s32 1, %s6
  %s9 = scalar_select 0, %s8, %s6
  loop: start=0, step=1, limit=4
  $region2: #{_lambda_.12} parent=0 // loop_pre_header
    _
  $region3: #{_lambda_.12} parent=0 // loop_header
    %s11 = sphi 0, %s15
    %p12 = scmp.ge.s32.totalorder %s11, 4
    %s21 = sphi 0, %s23
    %s24 = sphi 0, %s21
    %s25 = sphi 0, %s24
    %s41 = sphi 0, %s25
    %s45 = sphi 0, %s45
    %s47 = sphi 0, %s45
    %s48 = sphi 0, %s47
    %s62 = sphi 0, %s48
    %s66 = sphi 0, %s66
    %s68 = sphi 0, %s66
    %s69 = sphi 0, %s68
    %s83 = sphi 0, %s69
    %s87 = sphi 0, %s87
    %s89 = sphi 0, %s87
    %s90 = sphi 0, %s89
    %s104 = sphi 0, %s90
    %s108 = sphi 0, %s108
    %s110 = sphi 0, %s108
    %s111 = sphi 0, %s110
    %s125 = sphi 0, %s111
    %s131 = sphi 0, %s133
    %s134 = sphi 0, %s131
    %s135 = sphi 0, %s134
    %s151 = sphi 0, %s135
  $region4: #{_lambda_.12} parent=0 // loop_header_branch
    %14 = sbr.rel (%p12) target = $region8
  $region5: #{_lambda_.12} parent=0 // loop_body
    %s16 = ssub.s32 %s11, 1
    %s17 = ssub.s32 %s11, 2
    %s18 = sadd.s32 %s11, 1
    %s19 = ssub.s32 %s11, %s18
    %p20 = scmp.eq.s32.totalorder %s19, 0
    %s22 = sadd.s32 %s21, 1
    %s23 = scalar_select %p20, %s21, %s22
    %p26 = pneg %p20
    %p27 = scmp.eq.s32.totalorder %s11, 1
    %p28 = por %p26, %p27
    %p29 = scmp.ne.s32.totalorder %s21, %s24
    %p30 = scmp.eq.s32.totalorder %s11, 0
    %p31 = por %p29, %p30
    %p32 = scmp.ne.s32.totalorder %s21, %s24
    %p33 = scmp.eq.s32.totalorder %s16, 1
    %p34 = por %p32, %p33
    %p35 = scmp.ne.s32.totalorder %s24, %s25
    %p36 = scmp.eq.s32.totalorder %s16, 0
    %p37 = por %p35, %p36
    %p38 = scmp.ne.s32.totalorder %s24, %s25
    %p39 = scmp.eq.s32.totalorder %s17, 1
    %p40 = por %p38, %p39
    %p42 = scmp.ne.s32.totalorder %s25, %s41
    %p43 = scmp.eq.s32.totalorder %s17, 0
    %p44 = por %p42, %p43
    %s46 = sadd.s32 %s45, 1
    %p49 = scmp.eq.s32.totalorder %s11, 1
    %p50 = scmp.ne.s32.totalorder %s45, %s47
    %p51 = scmp.eq.s32.totalorder %s11, 0
    %p52 = por %p50, %p51
    %p53 = scmp.ne.s32.totalorder %s45, %s47
    %p54 = scmp.eq.s32.totalorder %s16, 1
    %p55 = por %p53, %p54
    %p56 = scmp.ne.s32.totalorder %s47, %s48
    %p57 = scmp.eq.s32.totalorder %s16, 0
    %p58 = por %p56, %p57
    %p59 = scmp.ne.s32.totalorder %s47, %s48
    %p60 = scmp.eq.s32.totalorder %s17, 1
    %p61 = por %p59, %p60
    %p63 = scmp.ne.s32.totalorder %s48, %s62
    %p64 = scmp.eq.s32.totalorder %s17, 0
    %p65 = por %p63, %p64
    %s67 = sadd.s32 %s66, 1
    %p70 = scmp.eq.s32.totalorder %s11, 1
    %p71 = scmp.ne.s32.totalorder %s66, %s68
    %p72 = scmp.eq.s32.totalorder %s11, 0
    %p73 = por %p71, %p72
    %p74 = scmp.ne.s32.totalorder %s66, %s68
    %p75 = scmp.eq.s32.totalorder %s16, 1
    %p76 = por %p74, %p75
    %p77 = scmp.ne.s32.totalorder %s68, %s69
    %p78 = scmp.eq.s32.totalorder %s16, 0
    %p79 = por %p77, %p78
    %p80 = scmp.ne.s32.totalorder %s68, %s69
    %p81 = scmp.eq.s32.totalorder %s17, 1
    %p82 = por %p80, %p81
    %p84 = scmp.ne.s32.totalorder %s69, %s83
    %p85 = scmp.eq.s32.totalorder %s17, 0
    %p86 = por %p84, %p85
    %s88 = sadd.s32 %s87, 1
    %p91 = scmp.eq.s32.totalorder %s11, 1
    %p92 = scmp.ne.s32.totalorder %s87, %s89
    %p93 = scmp.eq.s32.totalorder %s11, 0
    %p94 = por %p92, %p93
    %p95 = scmp.ne.s32.totalorder %s87, %s89
    %p96 = scmp.eq.s32.totalorder %s16, 1
    %p97 = por %p95, %p96
    %p98 = scmp.ne.s32.totalorder %s89, %s90
    %p99 = scmp.eq.s32.totalorder %s16, 0
    %p100 = por %p98, %p99
    %p101 = scmp.ne.s32.totalorder %s89, %s90
    %p102 = scmp.eq.s32.totalorder %s17, 1
    %p103 = por %p101, %p102
    %p105 = scmp.ne.s32.totalorder %s90, %s104
    %p106 = scmp.eq.s32.totalorder %s17, 0
    %p107 = por %p105, %p106
    %s109 = sadd.s32 %s108, 1
    %p112 = scmp.eq.s32.totalorder %s11, 1
    %p113 = scmp.ne.s32.totalorder %s108, %s110
    %p114 = scmp.eq.s32.totalorder %s11, 0
    %p115 = por %p113, %p114
    %p116 = scmp.ne.s32.totalorder %s108, %s110
    %p117 = scmp.eq.s32.totalorder %s16, 1
    %p118 = por %p116, %p117
    %p119 = scmp.ne.s32.totalorder %s110, %s111
    %p120 = scmp.eq.s32.totalorder %s16, 0
    %p121 = por %p119, %p120
    %p122 = scmp.ne.s32.totalorder %s110, %s111
    %p123 = scmp.eq.s32.totalorder %s17, 1
    %p124 = por %p122, %p123
    %p126 = scmp.ne.s32.totalorder %s111, %s125
    %p127 = scmp.eq.s32.totalorder %s17, 0
    %p128 = por %p126, %p127
    %s129 = ssub.s32 %s11, %s18
    %p130 = scmp.eq.s32.totalorder %s129, 0
    %s132 = sadd.s32 %s131, 1
    %s133 = scalar_select %p130, %s131, %s132
    %p136 = pneg %p130
    %p137 = scmp.eq.s32.totalorder %s11, 1
    %p138 = por %p136, %p137
    %p139 = scmp.ne.s32.totalorder %s131, %s134
    %p140 = scmp.eq.s32.totalorder %s11, 0
    %p141 = por %p139, %p140
    %p142 = scmp.ne.s32.totalorder %s131, %s134
    %p143 = scmp.eq.s32.totalorder %s16, 1
    %p144 = por %p142, %p143
    %p145 = scmp.ne.s32.totalorder %s134, %s135
    %p146 = scmp.eq.s32.totalorder %s16, 0
    %p147 = por %p145, %p146
    %p148 = scmp.ne.s32.totalorder %s134, %s135
    %p149 = scmp.eq.s32.totalorder %s17, 1
    %p150 = por %p148, %p149
    %p152 = scmp.ne.s32.totalorder %s135, %s151
    %p153 = scmp.eq.s32.totalorder %s17, 0
    %p154 = por %p152, %p153
    %p155 = scmp.le.s32.totalorder 1, %s11
    %p156 = scmp.lt.s32.totalorder %s11, 3
    %p157 = pnand %p155, %p156
    %p158 = pneg %p157
    // Predicated region
    $region9: #{_lambda_.12} parent=5 // pred_check
      _
    $region10: #{_lambda_.12} parent=5 // pred_check_branch
      %160 = sbr.rel (%p157) target = $region12
    $region11: #{_lambda_.12} parent=5 // pred_region
      %s161 = ssub.s32 %s11, 1
      // Predicated region
      $region13: #{_lambda_.12} parent=11 // pred_check
        %p162 = pneg %p58
      $region14: #{_lambda_.12} parent=11 // pred_check_branch
        %164 = sbr.rel (%p162) target = $region16
      $region15: #{_lambda_.12} parent=11 // pred_region
        _
      $region16: #{_lambda_.12} parent=11 // pred_fallthru
        _
      // Predicated region
      $region17: #{_lambda_.12} parent=11 // pred_check
        %p165 = pneg %p79
      $region18: #{_lambda_.12} parent=11 // pred_check_branch
        %167 = sbr.rel (%p165) target = $region20
      $region19: #{_lambda_.12} parent=11 // pred_region
        _
      $region20: #{_lambda_.12} parent=11 // pred_fallthru
        _
      // Predicated region
      $region21: #{_lambda_.12} parent=11 // pred_check
        %p168 = pneg %p100
      $region22: #{_lambda_.12} parent=11 // pred_check_branch
        %170 = sbr.rel (%p168) target = $region24
      $region23: #{_lambda_.12} parent=11 // pred_region
        _
      $region24: #{_lambda_.12} parent=11 // pred_fallthru
        _
      // Predicated region
      $region25: #{_lambda_.12} parent=11 // pred_check
        %p171 = pneg %p121
      $region26: #{_lambda_.12} parent=11 // pred_check_branch
        %173 = sbr.rel (%p171) target = $region28
      $region27: #{_lambda_.12} parent=11 // pred_region
        _
      $region28: #{_lambda_.12} parent=11 // pred_fallthru
        _
    $region12: #{_lambda_.12} parent=5 // pred_fallthru
      _
    %p174 = scmp.lt.s32.totalorder %s11, 2
    // Predicated region
    $region29: #{_lambda_.12} parent=5 // pred_check
      %p175 = pneg %p174
    $region30: #{_lambda_.12} parent=5 // pred_check_branch
      %177 = sbr.rel (%p175) target = $region32
    $region31: #{_lambda_.12} parent=5 // pred_region
      // Predicated region
      $region33: #{_lambda_.12} parent=31 // pred_check
        %p178 = pneg %p31
      $region34: #{_lambda_.12} parent=31 // pred_check_branch
        %180 = sbr.rel (%p178) target = $region36
      $region35: #{_lambda_.12} parent=31 // pred_region
        %s181 = smul.u32 2, %s11
        %p182 = scmp.lt.s32.totalorder %s181, 3
        %s183 = scalar_select %p182, %s181, 3
        %s184 = smul.addr %s183, 4
        %s185 = scalar_lea.vmem %s0, %s184
        %s186 = smul.u32 2, %s11
      $region36: #{_lambda_.12} parent=31 // pred_fallthru
        _
    $region32: #{_lambda_.12} parent=5 // pred_fallthru
      _
    %p187 = scmp.le.s32.totalorder 1, %s11
    %p188 = scmp.lt.s32.totalorder %s11, 3
    %p189 = pnand %p187, %p188
    %p190 = pneg %p189
    // Predicated region
    $region37: #{_lambda_.12} parent=5 // pred_check
      _
    $region38: #{_lambda_.12} parent=5 // pred_check_branch
      %192 = sbr.rel (%p189) target = $region40
    $region39: #{_lambda_.12} parent=5 // pred_region
      %s193 = ssub.s32 %s11, 1
      %s194 = smul.u32 2, %s16
      %p195 = scmp.lt.s32.totalorder %s194, 3
      %s196 = scalar_select %p195, %s194, 3
      %s197 = smul.addr %s196, 4
      %s198 = scalar_lea.vmem %s0, %s197
      %p199 = pneg %p37
      %p200 = pneg %p34
      %p201 = pneg %p58
      %p202 = pneg %p55
      %p203 = pneg %p79
      %p204 = pneg %p76
      %p205 = pneg %p100
      %p206 = pneg %p97
      %p207 = pneg %p121
      %p208 = pneg %p118
      %p209 = pneg %p147
      %p210 = pneg %p144
      %s211 = smul.u32 2, %s16
      %p212 = scmp.lt.s32.totalorder %s211, 3
      %s213 = scalar_select %p212, %s211, 3
      %s214 = smul.addr %s213, 4
      %s215 = scalar_lea.vmem %s5, %s214
      %s216 = smul.u32 2, %s16
      %p217 = scmp.lt.s32.totalorder %s216, 3
      %s218 = scalar_select %p217, %s216, 3
      %s219 = smul.addr %s218, 4
      %s220 = scalar_lea.vmem %s0, %s219
      %s221 = smul.u32 2, %s16
      %s222 = smul.u32 2, %s16
      %p223 = scmp.lt.s32.totalorder %s222, 3
      %s224 = scalar_select %p223, %s222, 3
      %s225 = smul.addr %s224, 4
      %s226 = scalar_lea.vmem %s5, %s225
      %s227 = smul.u32 2, %s16
      %v229 = vld [vmem:[%s220] sm:$0xf]
      %v230 = vld [vmem:[%s220 + $0x4] sm:$0xf]
      %v231 = vunpack.c.l.bf16 %v229
      %v232 = vunpack.c.l.bf16 %v230
      %vm233 = vcmask 261120
      %v234 = vsel %vm233, %v231, 0.0
      %235 = vadd.xlane.f32.xlu0 %v234
      %v236 = vpop.xlane.xlu0 %235
      %v237 = vsel %vm233, %v232, 0.0
      %238 = vadd.xlane.f32.xlu0 %v237
      %v239 = vpop.xlane.xlu0 %238
      %v240 = vrcp.pop 32.0
      %v241 = vmul.f32 %v236, %v240
      %v242 = vmul.f32 %v239, %v240
      %v243 = vsub.f32 %v231, %v241
      %v244 = vsub.f32 %v232, %v242
      %v245 = vmul.f32 %v243, %v243
      %v246 = vmul.f32 %v244, %v244
      %v247 = vsel %vm233, %v245, 0.0
      %248 = vadd.xlane.f32.xlu0 %v247
      %v249 = vpop.xlane.xlu0 %248
      %v250 = vsel %vm233, %v246, 0.0
      %251 = vadd.xlane.f32.xlu0 %v250
      %v252 = vpop.xlane.xlu0 %251
      %v253 = vmul.f32 %v249, %v240
      %v254 = vmul.f32 %v252, %v240
      %v255 = vadd.f32 %v253, 1e-05
      %v256 = vadd.f32 %v254, 1e-05
      %v257 = vrsqrt.pop %v255
      %v258 = vrsqrt.pop %v256
      %v259 = vmul.f32 %v243, %v257
      %v260 = vmul.f32 %v244, %v258
      %v261 = vld [vmem:[%s1] sm:$0x1]
      %v263 = vlaneseq
      %v264 = vshrl.u32 %v263, 7
      %v265 = vsub.s32 0, %v264
      %v266 = vrot.slane %v261, %v265
      %v268 = vmul.f32 %v259, %v266
      %v269 = vmul.f32 %v260, %v266
      %v270 = vld [vmem:[%s2] sm:$0x1]
      %v272 = vlaneseq
      %v273 = vshrl.u32 %v272, 7
      %v274 = vsub.s32 0, %v273
      %v275 = vrot.slane %v270, %v274
      %v277 = vadd.f32 %v268, %v275
      %v278 = vadd.f32 %v269, %v275
      %v279 = vpack.c.bf16 %v278, %v277
      %v280 = vld [vmem:[%s3] sm:$0xf]
      %v281 = vld [vmem:[%s3 + $0x4] sm:$0xf]
      %v282 = vld [vmem:[%s3 + $0x8] sm:$0xf]
      %v283 = vld [vmem:[%s3 + $0xc] sm:$0xf]
      %v284 = vld [vmem:[%s4] sm:$0x1]
      %v286 = vlaneseq
      %v287 = vshrl.u32 %v286, 7
      %v288 = vsub.s32 0, %v287
      %v289 = vrot.slane %v284, %v288
      %v295 = vunpack.c.l.b16 %v280
      %v296 = vunpack.c.l.b16 %v281
      %v297 = vunpack.c.l.b16 %v282
      %v298 = vunpack.c.l.b16 %v283
      %v299 = vpack.c.b16 %v296, %v295
      %v300 = vpack.c.b16 %v298, %v297
      %v304 = vsel %vm233, %v279, 0
      %306 = vmatprep.subr.bf16.mxu0 0
      %307 = vmatpush1.bf16.msra.mxu0 %v299
      %308 = vmatprep.subr.bf16.mxu0 0
      %309 = vmatpush1.bf16.msra.mxu0 %v300
      %310 = vmatprep.subr.bf16.mxu0 0
      %311 = vmatpush1.bf16.msra.mxu0 0
      %312 = vmatprep.subr.bf16.mxu0 0
      %313 = vmatpush1.bf16.msra.mxu0 0
      %314 = vmatprep.subr.bf16.mxu0 0
      %315 = vmatpush1.bf16.msra.mxu0 0
      %316 = vmatprep.subr.bf16.mxu0 0
      %317 = vmatpush1.bf16.msra.mxu0 0
      %318 = vmatprep.subr.bf16.mxu0 0
      %319 = vmatpush1.bf16.msra.mxu0 0
      %320 = vmatprep.subr.bf16.mxu0 0
      %321 = vmatpush1.bf16.msra.mxu0 0
      %322 = vmatprep.subr.bf16.mxu0 0
      %323 = vmatpush1.bf16.msra.mxu0 0
      %324 = vmatprep.subr.bf16.mxu0 0
      %325 = vmatpush1.bf16.msra.mxu0 0
      %326 = vmatprep.subr.bf16.mxu0 0
      %327 = vmatpush1.bf16.msra.mxu0 0
      %328 = vmatprep.subr.bf16.mxu0 0
      %329 = vmatpush1.bf16.msra.mxu0 0
      %330 = vmatprep.subr.bf16.mxu0 0
      %331 = vmatpush1.bf16.msra.mxu0 0
      %332 = vmatprep.subr.bf16.mxu0 0
      %333 = vmatpush1.bf16.msra.mxu0 0
      %334 = vmatprep.subr.bf16.mxu0 0
      %335 = vmatpush1.bf16.msra.mxu0 0
      %336 = vmatprep.subr.bf16.mxu0 0
      %337 = vmatpush1.bf16.msra.mxu0 0
      %338 = vmatprep.mubr.bf16.mxu0 0
      %339 = vmatmul.mubr.bf16.gmra.mrb[0].mxu0 %v304
      %v340 = vpop.f32.mrb[0].mxu0
      %v341 = vadd.f32 %v289, %v340
      %v342 = vpop.f32.mrb[0].mxu0
      %v343 = vpop.f32.mrb[0].mxu0
      %v344 = vadd.f32 %v289, %v343
      %v345 = vpop.f32.mrb[0].mxu0
      %346 = vdwg.mxu0
      %v347 = vmul.f32 %v341, 0.5
      %v348 = vmul.f32 %v344, 0.5
      %v349 = vmul.f32 %v341, 0.044715
      %v350 = vmul.f32 %v344, 0.044715
      %v351 = vmul.f32 %v349, %v341
      %v352 = vmul.f32 %v350, %v344
      %v353 = vmul.f32 %v351, %v341
      %v354 = vmul.f32 %v352, %v344
      %v355 = vadd.f32 %v341, %v353
      %v356 = vadd.f32 %v344, %v354
      %v357 = vmul.f32 %v355, 0.7978846
      %v358 = vmul.f32 %v356, 0.7978846
      %v359 = vtanh.pop %v357
      %v360 = vtanh.pop %v358
      %v361 = vadd.f32 %v359, 1.0
      %v362 = vadd.f32 %v360, 1.0
      %v363 = vmul.f32 %v347, %v361
      %v364 = vmul.f32 %v348, %v362
      %v365 = vpack.c.bf16 %v364, %v363
      %s366 = scalar_lea.vmem %s3, 16
      %v367 = vld [vmem:[%s366] sm:$0xf]
      %v368 = vld [vmem:[%s366 + $0x4] sm:$0xf]
      %v369 = vld [vmem:[%s366 + $0x8] sm:$0xf]
      %v370 = vld [vmem:[%s366 + $0xc] sm:$0xf]
      %s371 = scalar_lea.vmem %s4, 1
      %v372 = vld [vmem:[%s371] sm:$0x1]
      %v374 = vlaneseq
      %v375 = vshrl.u32 %v374, 7
      %v376 = vsub.s32 0, %v375
      %v377 = vrot.slane %v372, %v376
      %v383 = vunpack.c.l.b16 %v367
      %v384 = vunpack.c.l.b16 %v368
      %v385 = vunpack.c.l.b16 %v369
      %v386 = vunpack.c.l.b16 %v370
      %v387 = vpack.c.b16 %v384, %v383
      %v388 = vpack.c.b16 %v386, %v385
      %v392 = vsel %vm233, %v365, 0
      %394 = vmatprep.subr.bf16.mxu0 0
      %395 = vmatpush1.bf16.msra.mxu0 %v387
      %396 = vmatprep.subr.bf16.mxu0 0
      %397 = vmatpush1.bf16.msra.mxu0 %v388
      %398 = vmatprep.subr.bf16.mxu0 0
      %399 = vmatpush1.bf16.msra.mxu0 0
      %400 = vmatprep.subr.bf16.mxu0 0
      %401 = vmatpush1.bf16.msra.mxu0 0
      %402 = vmatprep.subr.bf16.mxu0 0
      %403 = vmatpush1.bf16.msra.mxu0 0
      %404 = vmatprep.subr.bf16.mxu0 0
      %405 = vmatpush1.bf16.msra.mxu0 0
      %406 = vmatprep.subr.bf16.mxu0 0
      %407 = vmatpush1.bf16.msra.mxu0 0
      %408 = vmatprep.subr.bf16.mxu0 0
      %409 = vmatpush1.bf16.msra.mxu0 0
      %410 = vmatprep.subr.bf16.mxu0 0
      %411 = vmatpush1.bf16.msra.mxu0 0
      %412 = vmatprep.subr.bf16.mxu0 0
      %413 = vmatpush1.bf16.msra.mxu0 0
      %414 = vmatprep.subr.bf16.mxu0 0
      %415 = vmatpush1.bf16.msra.mxu0 0
      %416 = vmatprep.subr.bf16.mxu0 0
      %417 = vmatpush1.bf16.msra.mxu0 0
      %418 = vmatprep.subr.bf16.mxu0 0
      %419 = vmatpush1.bf16.msra.mxu0 0
      %420 = vmatprep.subr.bf16.mxu0 0
      %421 = vmatpush1.bf16.msra.mxu0 0
      %422 = vmatprep.subr.bf16.mxu0 0
      %423 = vmatpush1.bf16.msra.mxu0 0
      %424 = vmatprep.subr.bf16.mxu0 0
      %425 = vmatpush1.bf16.msra.mxu0 0
      %426 = vmatprep.mubr.bf16.mxu0 0
      %427 = vmatmul.mubr.bf16.gmra.mrb[0].mxu0 %v392
      %v428 = vpop.f32.mrb[0].mxu0
      %v429 = vadd.f32 %v377, %v428
      %v430 = vpop.f32.mrb[0].mxu0
      %v431 = vpop.f32.mrb[0].mxu0
      %v432 = vadd.f32 %v377, %v431
      %v433 = vpop.f32.mrb[0].mxu0
      %434 = vdwg.mxu0
      %v435 = vmul.f32 %v429, 0.5
      %v436 = vmul.f32 %v432, 0.5
      %v437 = vmul.f32 %v429, 0.044715
      %v438 = vmul.f32 %v432, 0.044715
      %v439 = vmul.f32 %v437, %v429
      %v440 = vmul.f32 %v438, %v432
      %v441 = vmul.f32 %v439, %v429
      %v442 = vmul.f32 %v440, %v432
      %v443 = vadd.f32 %v429, %v441
      %v444 = vadd.f32 %v432, %v442
      %v445 = vmul.f32 %v443, 0.7978846
      %v446 = vmul.f32 %v444, 0.7978846
      %v447 = vtanh.pop %v445
      %v448 = vtanh.pop %v446
      %v449 = vadd.f32 %v447, 1.0
      %v450 = vadd.f32 %v448, 1.0
      %v451 = vmul.f32 %v435, %v449
      %v452 = vmul.f32 %v436, %v450
      %v453 = vpack.c.bf16 %v452, %v451
      %v455 = vunpack.c.l.b16 %v453
      %v456 = vunpack.c.h.b16 %v453
      %v457 = vpack.c.b16 %v455, %v455
      %v458 = vpack.c.b16 %v456, %v456
      %vm461 = vcmask 257024
      %462 = vst.msk [vmem:[%s226] sm:$0xf] %vm461, %v457
      %463 = vst.msk [vmem:[%s226 + $0x4] sm:$0xf] %vm461, %v458
      %s464 = smul.u32 2, %s16
      %p465 = scmp.lt.s32.totalorder %s464, 3
      %s466 = scalar_select %p465, %s464, 3
      %s467 = smul.addr %s466, 4
      %s468 = scalar_lea.vmem %s5, %s467
      // Predicated region
      $region41: #{_lambda_.12} parent=39 // pred_check
        %p469 = pneg %p144
      $region42: #{_lambda_.12} parent=39 // pred_check_branch
        %471 = sbr.rel (%p469) target = $region44
      $region43: #{_lambda_.12} parent=39 // pred_region
        %s472 = smul.u32 2, %s16
      $region44: #{_lambda_.12} parent=39 // pred_fallthru
        _
    $region40: #{_lambda_.12} parent=5 // pred_fallthru
      _
    %p473 = scmp.le.s32.totalorder 2, %s11
    // Predicated region
    $region45: #{_lambda_.12} parent=5 // pred_check
      %p474 = pneg %p473
    $region46: #{_lambda_.12} parent=5 // pred_check_branch
      %476 = sbr.rel (%p474) target = $region48
    $region47: #{_lambda_.12} parent=5 // pred_region
      %s477 = ssub.s32 %s11, 2
      // Predicated region
      $region49: #{_lambda_.12} parent=47 // pred_check
        %p478 = pneg %p150
      $region50: #{_lambda_.12} parent=47 // pred_check_branch
        %480 = sbr.rel (%p478) target = $region52
      $region51: #{_lambda_.12} parent=47 // pred_region
        %s481 = smul.u32 2, %s17
        %p482 = scmp.lt.s32.totalorder %s481, 3
        %s483 = scalar_select %p482, %s481, 3
        %s484 = smul.addr %s483, 4
        %s485 = scalar_lea.vmem %s5, %s484
      $region52: #{_lambda_.12} parent=47 // pred_fallthru
        _
    $region48: #{_lambda_.12} parent=5 // pred_fallthru
      _
  $region6: #{_lambda_.12} parent=0 // loop_footer
    %s15 = sadd.s32 1, %s11
  $region7: #{_lambda_.12} parent=0 // loop_footer_branch
    %10 = sbr.rel target = $region3
  $region8: #{_lambda_.12} parent=0 // loop_exit
    _

// kernel: _lambda_.9
$region0: #{_lambda_.9}
  #allocation0 [shape = 'u32[]', space=smem, size = 0x4, offset = 0x4, fixed_abs, tag = 'smem constant byte address 0x4 - core index']
  #allocation1 [shape = 'u32[144,128]{1,0:T(1,128)}', space=vmem, size = 0x12000, scoped, tag = 'internal scratch']
  %s0 = inlined_call_operand.vmem [shape: bf16[32,32], index: 0, kind: input, shape index: {}]
  %s1 = inlined_call_operand.vmem [shape: f32[1,32], index: 1, kind: input, shape index: {}]
  %s2 = inlined_call_operand.vmem [shape: f32[1,32], index: 2, kind: input, shape index: {}]
  %s3 = inlined_call_operand.vmem [shape: bf16[32,128], index: 3, kind: input, shape index: {}]
  %s4 = inlined_call_operand.vmem [shape: f32[1,128], index: 4, kind: input, shape index: {}]
  %s5 = inlined_call_operand.vmem [shape: bf16[128,32], index: 5, kind: input, shape index: {}]
  %s6 = inlined_call_operand.vmem [shape: f32[1,32], index: 6, kind: input, shape index: {}]
  %s7 = inlined_call_operand.vmem [shape: bf16[32,32], index: 7, kind: output, shape index: {}]
  %s8 = sld [smem:[#allocation0]]
  $region61: #{_lambda_.9} parent=0
    _
  %s10 = ssub.s32 1, %s8
  %s11 = scalar_select 0, %s10, %s8
  loop: start=0, step=1, limit=4
  $region2: #{_lambda_.9} parent=0 // loop_pre_header
    _
  $region3: #{_lambda_.9} parent=0 // loop_header
    %s13 = sphi 0, %s17
    %p14 = scmp.ge.s32.totalorder %s13, 4
    %s23 = sphi 0, %s25
    %s26 = sphi 0, %s23
    %s27 = sphi 0, %s26
    %s43 = sphi 0, %s27
    %s47 = sphi 0, %s47
    %s49 = sphi 0, %s47
    %s50 = sphi 0, %s49
    %s64 = sphi 0, %s50
    %s68 = sphi 0, %s68
    %s70 = sphi 0, %s68
    %s71 = sphi 0, %s70
    %s85 = sphi 0, %s71
    %s89 = sphi 0, %s89
    %s91 = sphi 0, %s89
    %s92 = sphi 0, %s91
    %s106 = sphi 0, %s92
    %s110 = sphi 0, %s110
    %s112 = sphi 0, %s110
    %s113 = sphi 0, %s112
    %s127 = sphi 0, %s113
    %s131 = sphi 0, %s131
    %s133 = sphi 0, %s131
    %s134 = sphi 0, %s133
    %s148 = sphi 0, %s134
    %s152 = sphi 0, %s152
    %s154 = sphi 0, %s152
    %s155 = sphi 0, %s154
    %s169 = sphi 0, %s155
    %s175 = sphi 0, %s177
    %s178 = sphi 0, %s175
    %s179 = sphi 0, %s178
    %s195 = sphi 0, %s179
  $region4: #{_lambda_.9} parent=0 // loop_header_branch
    %16 = sbr.rel (%p14) target = $region8
  $region5: #{_lambda_.9} parent=0 // loop_body
    %s18 = ssub.s32 %s13, 1
    %s19 = ssub.s32 %s13, 2
    %s20 = sadd.s32 %s13, 1
    %s21 = ssub.s32 %s13, %s20
    %p22 = scmp.eq.s32.totalorder %s21, 0
    %s24 = sadd.s32 %s23, 1
    %s25 = scalar_select %p22, %s23, %s24
    %p28 = pneg %p22
    %p29 = scmp.eq.s32.totalorder %s13, 1
    %p30 = por %p28, %p29
    %p31 = scmp.ne.s32.totalorder %s23, %s26
    %p32 = scmp.eq.s32.totalorder %s13, 0
    %p33 = por %p31, %p32
    %p34 = scmp.ne.s32.totalorder %s23, %s26
    %p35 = scmp.eq.s32.totalorder %s18, 1
    %p36 = por %p34, %p35
    %p37 = scmp.ne.s32.totalorder %s26, %s27
    %p38 = scmp.eq.s32.totalorder %s18, 0
    %p39 = por %p37, %p38
    %p40 = scmp.ne.s32.totalorder %s26, %s27
    %p41 = scmp.eq.s32.totalorder %s19, 1
    %p42 = por %p40, %p41
    %p44 = scmp.ne.s32.totalorder %s27, %s43
    %p45 = scmp.eq.s32.totalorder %s19, 0
    %p46 = por %p44, %p45
    %s48 = sadd.s32 %s47, 1
    %p51 = scmp.eq.s32.totalorder %s13, 1
    %p52 = scmp.ne.s32.totalorder %s47, %s49
    %p53 = scmp.eq.s32.totalorder %s13, 0
    %p54 = por %p52, %p53
    %p55 = scmp.ne.s32.totalorder %s47, %s49
    %p56 = scmp.eq.s32.totalorder %s18, 1
    %p57 = por %p55, %p56
    %p58 = scmp.ne.s32.totalorder %s49, %s50
    %p59 = scmp.eq.s32.totalorder %s18, 0
    %p60 = por %p58, %p59
    %p61 = scmp.ne.s32.totalorder %s49, %s50
    %p62 = scmp.eq.s32.totalorder %s19, 1
    %p63 = por %p61, %p62
    %p65 = scmp.ne.s32.totalorder %s50, %s64
    %p66 = scmp.eq.s32.totalorder %s19, 0
    %p67 = por %p65, %p66
    %s69 = sadd.s32 %s68, 1
    %p72 = scmp.eq.s32.totalorder %s13, 1
    %p73 = scmp.ne.s32.totalorder %s68, %s70
    %p74 = scmp.eq.s32.totalorder %s13, 0
    %p75 = por %p73, %p74
    %p76 = scmp.ne.s32.totalorder %s68, %s70
    %p77 = scmp.eq.s32.totalorder %s18, 1
    %p78 = por %p76, %p77
    %p79 = scmp.ne.s32.totalorder %s70, %s71
    %p80 = scmp.eq.s32.totalorder %s18, 0
    %p81 = por %p79, %p80
    %p82 = scmp.ne.s32.totalorder %s70, %s71
    %p83 = scmp.eq.s32.totalorder %s19, 1
    %p84 = por %p82, %p83
    %p86 = scmp.ne.s32.totalorder %s71, %s85
    %p87 = scmp.eq.s32.totalorder %s19, 0
    %p88 = por %p86, %p87
    %s90 = sadd.s32 %s89, 1
    %p93 = scmp.eq.s32.totalorder %s13, 1
    %p94 = scmp.ne.s32.totalorder %s89, %s91
    %p95 = scmp.eq.s32.totalorder %s13, 0
    %p96 = por %p94, %p95
    %p97 = scmp.ne.s32.totalorder %s89, %s91
    %p98 = scmp.eq.s32.totalorder %s18, 1
    %p99 = por %p97, %p98
    %p100 = scmp.ne.s32.totalorder %s91, %s92
    %p101 = scmp.eq.s32.totalorder %s18, 0
    %p102 = por %p100, %p101
    %p103 = scmp.ne.s32.totalorder %s91, %s92
    %p104 = scmp.eq.s32.totalorder %s19, 1
    %p105 = por %p103, %p104
    %p107 = scmp.ne.s32.totalorder %s92, %s106
    %p108 = scmp.eq.s32.totalorder %s19, 0
    %p109 = por %p107, %p108
    %s111 = sadd.s32 %s110, 1
    %p114 = scmp.eq.s32.totalorder %s13, 1
    %p115 = scmp.ne.s32.totalorder %s110, %s112
    %p116 = scmp.eq.s32.totalorder %s13, 0
    %p117 = por %p115, %p116
    %p118 = scmp.ne.s32.totalorder %s110, %s112
    %p119 = scmp.eq.s32.totalorder %s18, 1
    %p120 = por %p118, %p119
    %p121 = scmp.ne.s32.totalorder %s112, %s113
    %p122 = scmp.eq.s32.totalorder %s18, 0
    %p123 = por %p121, %p122
    %p124 = scmp.ne.s32.totalorder %s112, %s113
    %p125 = scmp.eq.s32.totalorder %s19, 1
    %p126 = por %p124, %p125
    %p128 = scmp.ne.s32.totalorder %s113, %s127
    %p129 = scmp.eq.s32.totalorder %s19, 0
    %p130 = por %p128, %p129
    %s132 = sadd.s32 %s131, 1
    %p135 = scmp.eq.s32.totalorder %s13, 1
    %p136 = scmp.ne.s32.totalorder %s131, %s133
    %p137 = scmp.eq.s32.totalorder %s13, 0
    %p138 = por %p136, %p137
    %p139 = scmp.ne.s32.totalorder %s131, %s133
    %p140 = scmp.eq.s32.totalorder %s18, 1
    %p141 = por %p139, %p140
    %p142 = scmp.ne.s32.totalorder %s133, %s134
    %p143 = scmp.eq.s32.totalorder %s18, 0
    %p144 = por %p142, %p143
    %p145 = scmp.ne.s32.totalorder %s133, %s134
    %p146 = scmp.eq.s32.totalorder %s19, 1
    %p147 = por %p145, %p146
    %p149 = scmp.ne.s32.totalorder %s134, %s148
    %p150 = scmp.eq.s32.totalorder %s19, 0
    %p151 = por %p149, %p150
    %s153 = sadd.s32 %s152, 1
    %p156 = scmp.eq.s32.totalorder %s13, 1
    %p157 = scmp.ne.s32.totalorder %s152, %s154
    %p158 = scmp.eq.s32.totalorder %s13, 0
    %p159 = por %p157, %p158
    %p160 = scmp.ne.s32.totalorder %s152, %s154
    %p161 = scmp.eq.s32.totalorder %s18, 1
    %p162 = por %p160, %p161
    %p163 = scmp.ne.s32.totalorder %s154, %s155
    %p164 = scmp.eq.s32.totalorder %s18, 0
    %p165 = por %p163, %p164
    %p166 = scmp.ne.s32.totalorder %s154, %s155
    %p167 = scmp.eq.s32.totalorder %s19, 1
    %p168 = por %p166, %p167
    %p170 = scmp.ne.s32.totalorder %s155, %s169
    %p171 = scmp.eq.s32.totalorder %s19, 0
    %p172 = por %p170, %p171
    %s173 = ssub.s32 %s13, %s20
    %p174 = scmp.eq.s32.totalorder %s173, 0
    %s176 = sadd.s32 %s175, 1
    %s177 = scalar_select %p174, %s175, %s176
    %p180 = pneg %p174
    %p181 = scmp.eq.s32.totalorder %s13, 1
    %p182 = por %p180, %p181
    %p183 = scmp.ne.s32.totalorder %s175, %s178
    %p184 = scmp.eq.s32.totalorder %s13, 0
    %p185 = por %p183, %p184
    %p186 = scmp.ne.s32.totalorder %s175, %s178
    %p187 = scmp.eq.s32.totalorder %s18, 1
    %p188 = por %p186, %p187
    %p189 = scmp.ne.s32.totalorder %s178, %s179
    %p190 = scmp.eq.s32.totalorder %s18, 0
    %p191 = por %p189, %p190
    %p192 = scmp.ne.s32.totalorder %s178, %s179
    %p193 = scmp.eq.s32.totalorder %s19, 1
    %p194 = por %p192, %p193
    %p196 = scmp.ne.s32.totalorder %s179, %s195
    %p197 = scmp.eq.s32.totalorder %s19, 0
    %p198 = por %p196, %p197
    %p199 = scmp.le.s32.totalorder 1, %s13
    %p200 = scmp.lt.s32.totalorder %s13, 3
    %p201 = pnand %p199, %p200
    %p202 = pneg %p201
    // Predicated region
    $region9: #{_lambda_.9} parent=5 // pred_check
      _
    $region10: #{_lambda_.9} parent=5 // pred_check_branch
      %204 = sbr.rel (%p201) target = $region12
    $region11: #{_lambda_.9} parent=5 // pred_region
      %s205 = ssub.s32 %s13, 1
      // Predicated region
      $region13: #{_lambda_.9} parent=11 // pred_check
        %p206 = pneg %p60
      $region14: #{_lambda_.9} parent=11 // pred_check_branch
        %208 = sbr.rel (%p206) target = $region16
      $region15: #{_lambda_.9} parent=11 // pred_region
        _
      $region16: #{_lambda_.9} parent=11 // pred_fallthru
        _
      // Predicated region
      $region17: #{_lambda_.9} parent=11 // pred_check
        %p209 = pneg %p81
      $region18: #{_lambda_.9} parent=11 // pred_check_branch
        %211 = sbr.rel (%p209) target = $region20
      $region19: #{_lambda_.9} parent=11 // pred_region
        _
      $region20: #{_lambda_.9} parent=11 // pred_fallthru
        _
      // Predicated region
      $region21: #{_lambda_.9} parent=11 // pred_check
        %p212 = pneg %p102
      $region22: #{_lambda_.9} parent=11 // pred_check_branch
        %214 = sbr.rel (%p212) target = $region24
      $region23: #{_lambda_.9} parent=11 // pred_region
        _
      $region24: #{_lambda_.9} parent=11 // pred_fallthru
        _
      // Predicated region
      $region25: #{_lambda_.9} parent=11 // pred_check
        %p215 = pneg %p123
      $region26: #{_lambda_.9} parent=11 // pred_check_branch
        %217 = sbr.rel (%p215) target = $region28
      $region27: #{_lambda_.9} parent=11 // pred_region
        _
      $region28: #{_lambda_.9} parent=11 // pred_fallthru
        _
      // Predicated region
      $region29: #{_lambda_.9} parent=11 // pred_check
        %p218 = pneg %p144
      $region30: #{_lambda_.9} parent=11 // pred_check_branch
        %220 = sbr.rel (%p218) target = $region32
      $region31: #{_lambda_.9} parent=11 // pred_region
        _
      $region32: #{_lambda_.9} parent=11 // pred_fallthru
        _
      // Predicated region
      $region33: #{_lambda_.9} parent=11 // pred_check
        %p221 = pneg %p165
      $region34: #{_lambda_.9} parent=11 // pred_check_branch
        %223 = sbr.rel (%p221) target = $region36
      $region35: #{_lambda_.9} parent=11 // pred_region
        _
      $region36: #{_lambda_.9} parent=11 // pred_fallthru
        _
    $region12: #{_lambda_.9} parent=5 // pred_fallthru
      _
    %p224 = scmp.lt.s32.totalorder %s13, 2
    // Predicated region
    $region37: #{_lambda_.9} parent=5 // pred_check
      %p225 = pneg %p224
    $region38: #{_lambda_.9} parent=5 // pred_check_branch
      %227 = sbr.rel (%p225) target = $region40
    $region39: #{_lambda_.9} parent=5 // pred_region
      // Predicated region
      $region41: #{_lambda_.9} parent=39 // pred_check
        %p228 = pneg %p33
      $region42: #{_lambda_.9} parent=39 // pred_check_branch
        %230 = sbr.rel (%p228) target = $region44
      $region43: #{_lambda_.9} parent=39 // pred_region
        %s231 = smul.u32 2, %s13
        %p232 = scmp.lt.s32.totalorder %s231, 3
        %s233 = scalar_select %p232, %s231, 3
        %s234 = smul.addr %s233, 4
        %s235 = scalar_lea.vmem %s0, %s234
        %s236 = smul.u32 2, %s13
      $region44: #{_lambda_.9} parent=39 // pred_fallthru
        _
    $region40: #{_lambda_.9} parent=5 // pred_fallthru
      _
    %p237 = scmp.le.s32.totalorder 1, %s13
    %p238 = scmp.lt.s32.totalorder %s13, 3
    %p239 = pnand %p237, %p238
    %p240 = pneg %p239
    // Predicated region
    $region45: #{_lambda_.9} parent=5 // pred_check
      _
    $region46: #{_lambda_.9} parent=5 // pred_check_branch
      %242 = sbr.rel (%p239) target = $region48
    $region47: #{_lambda_.9} parent=5 // pred_region
      %s243 = ssub.s32 %s13, 1
      %s244 = smul.u32 2, %s18
      %p245 = scmp.lt.s32.totalorder %s244, 3
      %s246 = scalar_select %p245, %s244, 3
      %s247 = smul.addr %s246, 4
      %s248 = scalar_lea.vmem %s0, %s247
      %p249 = pneg %p39
      %p250 = pneg %p36
      %p251 = pneg %p60
      %p252 = pneg %p57
      %p253 = pneg %p81
      %p254 = pneg %p78
      %p255 = pneg %p102
      %p256 = pneg %p99
      %p257 = pneg %p123
      %p258 = pneg %p120
      %p259 = pneg %p144
      %p260 = pneg %p141
      %p261 = pneg %p165
      %p262 = pneg %p162
      %p263 = pneg %p191
      %p264 = pneg %p188
      %s265 = smul.u32 2, %s18
      %p266 = scmp.lt.s32.totalorder %s265, 3
      %s267 = scalar_select %p266, %s265, 3
      %s268 = smul.addr %s267, 4
      %s269 = scalar_lea.vmem %s7, %s268
      %s270 = smul.u32 2, %s18
      %p271 = scmp.lt.s32.totalorder %s270, 3
      %s272 = scalar_select %p271, %s270, 3
      %s273 = smul.addr %s272, 4
      %s274 = scalar_lea.vmem %s0, %s273
      %s275 = smul.u32 2, %s18
      %s276 = smul.u32 2, %s18
      %p277 = scmp.lt.s32.totalorder %s276, 3
      %s278 = scalar_select %p277, %s276, 3
      %s279 = smul.addr %s278, 4
      %s280 = scalar_lea.vmem %s7, %s279
      %s281 = smul.u32 2, %s18
      %v283 = vld [vmem:[%s274] sm:$0xf]
      %v284 = vld [vmem:[%s274 + $0x4] sm:$0xf]
      %v285 = vunpack.c.l.bf16 %v283
      %v286 = vunpack.c.l.bf16 %v284
      %vm287 = vcmask 261120
      %v288 = vsel %vm287, %v285, 0.0
      %289 = vadd.xlane.f32.xlu0 %v288
      %v290 = vpop.xlane.xlu0 %289
      %v291 = vsel %vm287, %v286, 0.0
      %292 = vadd.xlane.f32.xlu0 %v291
      %v293 = vpop.xlane.xlu0 %292
      %v294 = vrcp.pop 32.0
      %v295 = vmul.f32 %v290, %v294
      %v296 = vmul.f32 %v293, %v294
      %v297 = vsub.f32 %v285, %v295
      %v298 = vsub.f32 %v286, %v296
      %v299 = vmul.f32 %v297, %v297
      %v300 = vmul.f32 %v298, %v298
      %v301 = vsel %vm287, %v299, 0.0
      %302 = vadd.xlane.f32.xlu0 %v301
      %v303 = vpop.xlane.xlu0 %302
      %v304 = vsel %vm287, %v300, 0.0
      %305 = vadd.xlane.f32.xlu0 %v304
      %v306 = vpop.xlane.xlu0 %305
      %v307 = vmul.f32 %v303, %v294
      %v308 = vmul.f32 %v306, %v294
      %v309 = vadd.f32 %v307, 1e-05
      %v310 = vadd.f32 %v308, 1e-05
      %v311 = vrsqrt.pop %v309
      %v312 = vrsqrt.pop %v310
      %v313 = vmul.f32 %v297, %v311
      %v314 = vmul.f32 %v298, %v312
      %v315 = vld [vmem:[%s1] sm:$0x1]
      %v317 = vlaneseq
      %v318 = vshrl.u32 %v317, 7
      %v319 = vsub.s32 0, %v318
      %v320 = vrot.slane %v315, %v319
      %v322 = vmul.f32 %v313, %v320
      %v323 = vmul.f32 %v314, %v320
      %v324 = vld [vmem:[%s2] sm:$0x1]
      %v326 = vlaneseq
      %v327 = vshrl.u32 %v326, 7
      %v328 = vsub.s32 0, %v327
      %v329 = vrot.slane %v324, %v328
      %v331 = vadd.f32 %v322, %v329
      %v332 = vadd.f32 %v323, %v329
      %v333 = vpack.c.bf16 %v332, %v331
      %v334 = vld [vmem:[%s3] sm:$0xf]
      %v335 = vld [vmem:[%s3 + $0x4] sm:$0xf]
      %v336 = vld [vmem:[%s3 + $0x8] sm:$0xf]
      %v337 = vld [vmem:[%s3 + $0xc] sm:$0xf]
      %v338 = vld [vmem:[%s4] sm:$0x1]
      %v340 = vlaneseq
      %v341 = vshrl.u32 %v340, 7
      %v342 = vsub.s32 0, %v341
      %v343 = vrot.slane %v338, %v342
      %v349 = vunpack.c.l.b16 %v334
      %v350 = vunpack.c.l.b16 %v335
      %v351 = vunpack.c.l.b16 %v336
      %v352 = vunpack.c.l.b16 %v337
      %v353 = vpack.c.b16 %v350, %v349
      %v354 = vpack.c.b16 %v352, %v351
      %v358 = vsel %vm287, %v333, 0
      %360 = vmatprep.subr.bf16.mxu0 0
      %361 = vmatpush1.bf16.msra.mxu0 %v353
      %362 = vmatprep.subr.bf16.mxu0 0
      %363 = vmatpush1.bf16.msra.mxu0 %v354
      %364 = vmatprep.subr.bf16.mxu0 0
      %365 = vmatpush1.bf16.msra.mxu0 0
      %366 = vmatprep.subr.bf16.mxu0 0
      %367 = vmatpush1.bf16.msra.mxu0 0
      %368 = vmatprep.subr.bf16.mxu0 0
      %369 = vmatpush1.bf16.msra.mxu0 0
      %370 = vmatprep.subr.bf16.mxu0 0
      %371 = vmatpush1.bf16.msra.mxu0 0
      %372 = vmatprep.subr.bf16.mxu0 0
      %373 = vmatpush1.bf16.msra.mxu0 0
      %374 = vmatprep.subr.bf16.mxu0 0
      %375 = vmatpush1.bf16.msra.mxu0 0
      %376 = vmatprep.subr.bf16.mxu0 0
      %377 = vmatpush1.bf16.msra.mxu0 0
      %378 = vmatprep.subr.bf16.mxu0 0
      %379 = vmatpush1.bf16.msra.mxu0 0
      %380 = vmatprep.subr.bf16.mxu0 0
      %381 = vmatpush1.bf16.msra.mxu0 0
      %382 = vmatprep.subr.bf16.mxu0 0
      %383 = vmatpush1.bf16.msra.mxu0 0
      %384 = vmatprep.subr.bf16.mxu0 0
      %385 = vmatpush1.bf16.msra.mxu0 0
      %386 = vmatprep.subr.bf16.mxu0 0
      %387 = vmatpush1.bf16.msra.mxu0 0
      %388 = vmatprep.subr.bf16.mxu0 0
      %389 = vmatpush1.bf16.msra.mxu0 0
      %390 = vmatprep.subr.bf16.mxu0 0
      %391 = vmatpush1.bf16.msra.mxu0 0
      %392 = vmatprep.mubr.bf16.mxu0 0
      %393 = vmatmul.mubr.bf16.gmra.mrb[0].mxu0 %v358
      %v394 = vpop.f32.mrb[0].mxu0
      %v395 = vadd.f32 %v343, %v394
      %v396 = vpop.f32.mrb[0].mxu0
      %v397 = vpop.f32.mrb[0].mxu0
      %v398 = vadd.f32 %v343, %v397
      %v399 = vpop.f32.mrb[0].mxu0
      %400 = vdwg.mxu0
      %v401 = vmul.f32 %v395, 0.5
      %v402 = vmul.f32 %v398, 0.5
      %v403 = vmul.f32 %v395, 0.044715
      %v404 = vmul.f32 %v398, 0.044715
      %v405 = vmul.f32 %v403, %v395
      %v406 = vmul.f32 %v404, %v398
      %v407 = vmul.f32 %v405, %v395
      %v408 = vmul.f32 %v406, %v398
      %v409 = vadd.f32 %v395, %v407
      %v410 = vadd.f32 %v398, %v408
      %v411 = vmul.f32 %v409, 0.7978846
      %v412 = vmul.f32 %v410, 0.7978846
      %v413 = vtanh.pop %v411
      %v414 = vtanh.pop %v412
      %v415 = vadd.f32 %v413, 1.0
      %v416 = vadd.f32 %v414, 1.0
      %v417 = vmul.f32 %v401, %v415
      %v418 = vmul.f32 %v402, %v416
      %v419 = vpack.c.bf16 %v418, %v417
      %v420 = vld [vmem:[%s5] sm:$0xf]
      %v421 = vld [vmem:[%s5 + $0x4] sm:$0xf]
      %v422 = vld [vmem:[%s5 + $0x8] sm:$0xf]
      %v423 = vld [vmem:[%s5 + $0xc] sm:$0xf]
      %v424 = vld [vmem:[%s5 + $0x10] sm:$0xf]
      %v425 = vld [vmem:[%s5 + $0x14] sm:$0xf]
      %v426 = vld [vmem:[%s5 + $0x18] sm:$0xf]
      %v427 = vld [vmem:[%s5 + $0x1c] sm:$0xf]
      %v428 = vld [vmem:[%s5 + $0x20] sm:$0xf]
      %v429 = vld [vmem:[%s5 + $0x24] sm:$0xf]
      %v430 = vld [vmem:[%s5 + $0x28] sm:$0xf]
      %v431 = vld [vmem:[%s5 + $0x2c] sm:$0xf]
      %v432 = vld [vmem:[%s5 + $0x30] sm:$0xf]
      %v433 = vld [vmem:[%s5 + $0x34] sm:$0xf]
      %v434 = vld [vmem:[%s5 + $0x38] sm:$0xf]
      %v435 = vld [vmem:[%s5 + $0x3c] sm:$0xf]
      %v436 = vld [vmem:[%s6] sm:$0x1]
      %v438 = vlaneseq
      %v439 = vshrl.u32 %v438, 7
      %v440 = vsub.s32 0, %v439
      %v441 = vrot.slane %v436, %v440
      %v459 = vunpack.c.l.b16 %v420
      %v460 = vunpack.c.l.b16 %v421
      %v461 = vunpack.c.l.b16 %v422
      %v462 = vunpack.c.l.b16 %v423
      %v463 = vunpack.c.l.b16 %v424
      %v464 = vunpack.c.l.b16 %v425
      %v465 = vunpack.c.l.b16 %v426
      %v466 = vunpack.c.l.b16 %v427
      %v467 = vunpack.c.l.b16 %v428
      %v468 = vunpack.c.l.b16 %v429
      %v469 = vunpack.c.l.b16 %v430
      %v470 = vunpack.c.l.b16 %v431
      %v471 = vunpack.c.l.b16 %v432
      %v472 = vunpack.c.l.b16 %v433
      %v473 = vunpack.c.l.b16 %v434
      %v474 = vunpack.c.l.b16 %v435
      %v475 = vpack.c.b16 %v460, %v459
      %v476 = vpack.c.b16 %v462, %v461
      %v477 = vpack.c.b16 %v464, %v463
      %v478 = vpack.c.b16 %v466, %v465
      %v479 = vpack.c.b16 %v468, %v467
      %v480 = vpack.c.b16 %v470, %v469
      %v481 = vpack.c.b16 %v472, %v471
      %v482 = vpack.c.b16 %v474, %v473
      %491 = vmatprep.subr.bf16.mxu0 0
      %492 = vmatpush1.bf16.msra.mxu0 %v475
      %493 = vmatprep.subr.bf16.mxu0 0
      %494 = vmatpush1.bf16.msra.mxu0 %v476
      %495 = vmatprep.subr.bf16.mxu0 0
      %496 = vmatpush1.bf16.msra.mxu0 %v477
      %497 = vmatprep.subr.bf16.mxu0 0
      %498 = vmatpush1.bf16.msra.mxu0 %v478
      %499 = vmatprep.subr.bf16.mxu0 0
      %500 = vmatpush1.bf16.msra.mxu0 %v479
      %501 = vmatprep.subr.bf16.mxu0 0
      %502 = vmatpush1.bf16.msra.mxu0 %v480
      %503 = vmatprep.subr.bf16.mxu0 0
      %504 = vmatpush1.bf16.msra.mxu0 %v481
      %505 = vmatprep.subr.bf16.mxu0 0
      %506 = vmatpush1.bf16.msra.mxu0 %v482
      %507 = vmatprep.subr.bf16.mxu0 0
      %508 = vmatpush1.bf16.msra.mxu0 0
      %509 = vmatprep.subr.bf16.mxu0 0
      %510 = vmatpush1.bf16.msra.mxu0 0
      %511 = vmatprep.subr.bf16.mxu0 0
      %512 = vmatpush1.bf16.msra.mxu0 0
      %513 = vmatprep.subr.bf16.mxu0 0
      %514 = vmatpush1.bf16.msra.mxu0 0
      %515 = vmatprep.subr.bf16.mxu0 0
      %516 = vmatpush1.bf16.msra.mxu0 0
      %517 = vmatprep.subr.bf16.mxu0 0
      %518 = vmatpush1.bf16.msra.mxu0 0
      %519 = vmatprep.subr.bf16.mxu0 0
      %520 = vmatpush1.bf16.msra.mxu0 0
      %521 = vmatprep.subr.bf16.mxu0 0
      %522 = vmatpush1.bf16.msra.mxu0 0
      %523 = vmatprep.mubr.bf16.mxu0 0
      %524 = vmatmul.mubr.bf16.gmra.mrb[0].mxu0 %v419
      %v525 = vpop.f32.mrb[0].mxu0
      %v526 = vadd.f32 %v441, %v525
      %v527 = vpop.f32.mrb[0].mxu0
      %v528 = vpop.f32.mrb[0].mxu0
      %v529 = vadd.f32 %v441, %v528
      %v530 = vpop.f32.mrb[0].mxu0
      %531 = vdwg.mxu0
      %v532 = vadd.f32 %v285, %v526
      %v533 = vadd.f32 %v286, %v529
      %v534 = vpack.c.bf16 %v533, %v532
      %v536 = vunpack.c.l.b16 %v534
      %v537 = vunpack.c.h.b16 %v534
      %v538 = vpack.c.b16 %v536, %v536
      %v539 = vpack.c.b16 %v537, %v537
      %vm542 = vcmask 257024
      %543 = vst.msk [vmem:[%s280] sm:$0xf] %vm542, %v538
      %544 = vst.msk [vmem:[%s280 + $0x4] sm:$0xf] %vm542, %v539
      %s545 = smul.u32 2, %s18
      %p546 = scmp.lt.s32.totalorder %s545, 3
      %s547 = scalar_select %p546, %s545, 3
      %s548 = smul.addr %s547, 4
      %s549 = scalar_lea.vmem %s7, %s548
      // Predicated region
      $region49: #{_lambda_.9} parent=47 // pred_check
        %p550 = pneg %p188
      $region50: #{_lambda_.9} parent=47 // pred_check_branch
        %552 = sbr.rel (%p550) target = $region52
      $region51: #{_lambda_.9} parent=47 // pred_region
        %s553 = smul.u32 2, %s18
      $region52: #{_lambda_.9} parent=47 // pred_fallthru
        _
    $region48: #{_lambda_.9} parent=5 // pred_fallthru
      _
    %p554 = scmp.le.s32.totalorder 2, %s13
    // Predicated region
    $region53: #{_lambda_.9} parent=5 // pred_check
      %p555 = pneg %p554
    $region54: #{_lambda_.9} parent=5 // pred_check_branch
      %557 = sbr.rel (%p555) target = $region56
    $region55: #{_lambda_.9} parent=5 // pred_region
      %s558 = ssub.s32 %s13, 2
      // Predicated region
      $region57: #{_lambda_.9} parent=55 // pred_check
        %p559 = pneg %p194
      $region58: #{_lambda_.9} parent=55 // pred_check_branch
        %561 = sbr.rel (%p559) target = $region60
      $region59: #{_lambda_.9} parent=55 // pred_region
        %s562 = smul.u32 2, %s19
        %p563 = scmp.lt.s32.totalorder %s562, 3
        %s564 = scalar_select %p563, %s562, 3
        %s565 = smul.addr %s564, 4
        %s566 = scalar_lea.vmem %s7, %s565
      $region60: #{_lambda_.9} parent=55 // pred_fallthru
        _
    $region56: #{_lambda_.9} parent=5 // pred_fallthru
      _
  $region6: #{_lambda_.9} parent=0 // loop_footer
    %s17 = sadd.s32 1, %s13
  $region7: #{_lambda_.9} parent=0 // loop_footer_branch
    %12 = sbr.rel target = $region3
  $region8: #{_lambda_.9} parent=0 // loop_exit
    _

// kernel: _lambda_.8
$region0: #{_lambda_.8}
  #allocation0 [shape = 'u32[]', space=smem, size = 0x4, offset = 0x4, fixed_abs, tag = 'smem constant byte address 0x4 - core index']
  #allocation1 [shape = 'u32[144,128]{1,0:T(1,128)}', space=vmem, size = 0x12000, scoped, tag = 'internal scratch']
  %s0 = inlined_call_operand.vmem [shape: bf16[32,32], index: 0, kind: input, shape index: {}]
  %s1 = inlined_call_operand.vmem [shape: f32[1,32], index: 1, kind: input, shape index: {}]
  %s2 = inlined_call_operand.vmem [shape: f32[1,32], index: 2, kind: input, shape index: {}]
  %s3 = inlined_call_operand.vmem [shape: bf16[32,96], index: 3, kind: input, shape index: {}]
  %s4 = inlined_call_operand.vmem [shape: f32[1,96], index: 4, kind: input, shape index: {}]
  %s5 = inlined_call_operand.vmem [shape: bf16[4,8,32], index: 5, kind: input, shape index: {}]
  %s6 = inlined_call_operand.vmem [shape: f32[1,32], index: 6, kind: input, shape index: {}]
  %s7 = inlined_call_operand.vmem [shape: bf16[32,32], index: 7, kind: output, shape index: {}]
  %s8 = sld [smem:[#allocation0]]
  $region61: #{_lambda_.8} parent=0
    _
  %s10 = ssub.s32 1, %s8
  %s11 = scalar_select 0, %s10, %s8
  loop: start=0, step=1, limit=4
  $region2: #{_lambda_.8} parent=0 // loop_pre_header
    _
  $region3: #{_lambda_.8} parent=0 // loop_header
    %s13 = sphi 0, %s17
    %p14 = scmp.ge.s32.totalorder %s13, 4
    %s23 = sphi 0, %s25
    %s26 = sphi 0, %s23
    %s27 = sphi 0, %s26
    %s43 = sphi 0, %s27
    %s47 = sphi 0, %s47
    %s49 = sphi 0, %s47
    %s50 = sphi 0, %s49
    %s64 = sphi 0, %s50
    %s68 = sphi 0, %s68
    %s70 = sphi 0, %s68
    %s71 = sphi 0, %s70
    %s85 = sphi 0, %s71
    %s89 = sphi 0, %s89
    %s91 = sphi 0, %s89
    %s92 = sphi 0, %s91
    %s106 = sphi 0, %s92
    %s110 = sphi 0, %s110
    %s112 = sphi 0, %s110
    %s113 = sphi 0, %s112
    %s127 = sphi 0, %s113
    %s131 = sphi 0, %s131
    %s133 = sphi 0, %s131
    %s134 = sphi 0, %s133
    %s148 = sphi 0, %s134
    %s152 = sphi 0, %s152
    %s154 = sphi 0, %s152
    %s155 = sphi 0, %s154
    %s169 = sphi 0, %s155
    %s175 = sphi 0, %s177
    %s178 = sphi 0, %s175
    %s179 = sphi 0, %s178
    %s195 = sphi 0, %s179
  $region4: #{_lambda_.8} parent=0 // loop_header_branch
    %16 = sbr.rel (%p14) target = $region8
  $region5: #{_lambda_.8} parent=0 // loop_body
    %s18 = ssub.s32 %s13, 1
    %s19 = ssub.s32 %s13, 2
    %s20 = sadd.s32 %s13, 1
    %s21 = ssub.s32 %s13, %s20
    %p22 = scmp.eq.s32.totalorder %s21, 0
    %s24 = sadd.s32 %s23, 1
    %s25 = scalar_select %p22, %s23, %s24
    %p28 = pneg %p22
    %p29 = scmp.eq.s32.totalorder %s13, 1
    %p30 = por %p28, %p29
    %p31 = scmp.ne.s32.totalorder %s23, %s26
    %p32 = scmp.eq.s32.totalorder %s13, 0
    %p33 = por %p31, %p32
    %p34 = scmp.ne.s32.totalorder %s23, %s26
    %p35 = scmp.eq.s32.totalorder %s18, 1
    %p36 = por %p34, %p35
    %p37 = scmp.ne.s32.totalorder %s26, %s27
    %p38 = scmp.eq.s32.totalorder %s18, 0
    %p39 = por %p37, %p38
    %p40 = scmp.ne.s32.totalorder %s26, %s27
    %p41 = scmp.eq.s32.totalorder %s19, 1
    %p42 = por %p40, %p41
    %p44 = scmp.ne.s32.totalorder %s27, %s43
    %p45 = scmp.eq.s32.totalorder %s19, 0
    %p46 = por %p44, %p45
    %s48 = sadd.s32 %s47, 1
    %p51 = scmp.eq.s32.totalorder %s13, 1
    %p52 = scmp.ne.s32.totalorder %s47, %s49
    %p53 = scmp.eq.s32.totalorder %s13, 0
    %p54 = por %p52, %p53
    %p55 = scmp.ne.s32.totalorder %s47, %s49
    %p56 = scmp.eq.s32.totalorder %s18, 1
    %p57 = por %p55, %p56
    %p58 = scmp.ne.s32.totalorder %s49, %s50
    %p59 = scmp.eq.s32.totalorder %s18, 0
    %p60 = por %p58, %p59
    %p61 = scmp.ne.s32.totalorder %s49, %s50
    %p62 = scmp.eq.s32.totalorder %s19, 1
    %p63 = por %p61, %p62
    %p65 = scmp.ne.s32.totalorder %s50, %s64
    %p66 = scmp.eq.s32.totalorder %s19, 0
    %p67 = por %p65, %p66
    %s69 = sadd.s32 %s68, 1
    %p72 = scmp.eq.s32.totalorder %s13, 1
    %p73 = scmp.ne.s32.totalorder %s68, %s70
    %p74 = scmp.eq.s32.totalorder %s13, 0
    %p75 = por %p73, %p74
    %p76 = scmp.ne.s32.totalorder %s68, %s70
    %p77 = scmp.eq.s32.totalorder %s18, 1
    %p78 = por %p76, %p77
    %p79 = scmp.ne.s32.totalorder %s70, %s71
    %p80 = scmp.eq.s32.totalorder %s18, 0
    %p81 = por %p79, %p80
    %p82 = scmp.ne.s32.totalorder %s70, %s71
    %p83 = scmp.eq.s32.totalorder %s19, 1
    %p84 = por %p82, %p83
    %p86 = scmp.ne.s32.totalorder %s71, %s85
    %p87 = scmp.eq.s32.totalorder %s19, 0
    %p88 = por %p86, %p87
    %s90 = sadd.s32 %s89, 1
    %p93 = scmp.eq.s32.totalorder %s13, 1
    %p94 = scmp.ne.s32.totalorder %s89, %s91
    %p95 = scmp.eq.s32.totalorder %s13, 0
    %p96 = por %p94, %p95
    %p97 = scmp.ne.s32.totalorder %s89, %s91
    %p98 = scmp.eq.s32.totalorder %s18, 1
    %p99 = por %p97, %p98
    %p100 = scmp.ne.s32.totalorder %s91, %s92
    %p101 = scmp.eq.s32.totalorder %s18, 0
    %p102 = por %p100, %p101
    %p103 = scmp.ne.s32.totalorder %s91, %s92
    %p104 = scmp.eq.s32.totalorder %s19, 1
    %p105 = por %p103, %p104
    %p107 = scmp.ne.s32.totalorder %s92, %s106
    %p108 = scmp.eq.s32.totalorder %s19, 0
    %p109 = por %p107, %p108
    %s111 = sadd.s32 %s110, 1
    %p114 = scmp.eq.s32.totalorder %s13, 1
    %p115 = scmp.ne.s32.totalorder %s110, %s112
    %p116 = scmp.eq.s32.totalorder %s13, 0
    %p117 = por %p115, %p116
    %p118 = scmp.ne.s32.totalorder %s110, %s112
    %p119 = scmp.eq.s32.totalorder %s18, 1
    %p120 = por %p118, %p119
    %p121 = scmp.ne.s32.totalorder %s112, %s113
    %p122 = scmp.eq.s32.totalorder %s18, 0
    %p123 = por %p121, %p122
    %p124 = scmp.ne.s32.totalorder %s112, %s113
    %p125 = scmp.eq.s32.totalorder %s19, 1
    %p126 = por %p124, %p125
    %p128 = scmp.ne.s32.totalorder %s113, %s127
    %p129 = scmp.eq.s32.totalorder %s19, 0
    %p130 = por %p128, %p129
    %s132 = sadd.s32 %s131, 1
    %p135 = scmp.eq.s32.totalorder %s13, 1
    %p136 = scmp.ne.s32.totalorder %s131, %s133
    %p137 = scmp.eq.s32.totalorder %s13, 0
    %p138 = por %p136, %p137
    %p139 = scmp.ne.s32.totalorder %s131, %s133
    %p140 = scmp.eq.s32.totalorder %s18, 1
    %p141 = por %p139, %p140
    %p142 = scmp.ne.s32.totalorder %s133, %s134
    %p143 = scmp.eq.s32.totalorder %s18, 0
    %p144 = por %p142, %p143
    %p145 = scmp.ne.s32.totalorder %s133, %s134
    %p146 = scmp.eq.s32.totalorder %s19, 1
    %p147 = por %p145, %p146
    %p149 = scmp.ne.s32.totalorder %s134, %s148
    %p150 = scmp.eq.s32.totalorder %s19, 0
    %p151 = por %p149, %p150
    %s153 = sadd.s32 %s152, 1
    %p156 = scmp.eq.s32.totalorder %s13, 1
    %p157 = scmp.ne.s32.totalorder %s152, %s154
    %p158 = scmp.eq.s32.totalorder %s13, 0
    %p159 = por %p157, %p158
    %p160 = scmp.ne.s32.totalorder %s152, %s154
    %p161 = scmp.eq.s32.totalorder %s18, 1
    %p162 = por %p160, %p161
    %p163 = scmp.ne.s32.totalorder %s154, %s155
    %p164 = scmp.eq.s32.totalorder %s18, 0
    %p165 = por %p163, %p164
    %p166 = scmp.ne.s32.totalorder %s154, %s155
    %p167 = scmp.eq.s32.totalorder %s19, 1
    %p168 = por %p166, %p167
    %p170 = scmp.ne.s32.totalorder %s155, %s169
    %p171 = scmp.eq.s32.totalorder %s19, 0
    %p172 = por %p170, %p171
    %s173 = ssub.s32 %s13, %s20
    %p174 = scmp.eq.s32.totalorder %s173, 0
    %s176 = sadd.s32 %s175, 1
    %s177 = scalar_select %p174, %s175, %s176
    %p180 = pneg %p174
    %p181 = scmp.eq.s32.totalorder %s13, 1
    %p182 = por %p180, %p181
    %p183 = scmp.ne.s32.totalorder %s175, %s178
    %p184 = scmp.eq.s32.totalorder %s13, 0
    %p185 = por %p183, %p184
    %p186 = scmp.ne.s32.totalorder %s175, %s178
    %p187 = scmp.eq.s32.totalorder %s18, 1
    %p188 = por %p186, %p187
    %p189 = scmp.ne.s32.totalorder %s178, %s179
    %p190 = scmp.eq.s32.totalorder %s18, 0
    %p191 = por %p189, %p190
    %p192 = scmp.ne.s32.totalorder %s178, %s179
    %p193 = scmp.eq.s32.totalorder %s19, 1
    %p194 = por %p192, %p193
    %p196 = scmp.ne.s32.totalorder %s179, %s195
    %p197 = scmp.eq.s32.totalorder %s19, 0
    %p198 = por %p196, %p197
    %p199 = scmp.le.s32.totalorder 1, %s13
    %p200 = scmp.lt.s32.totalorder %s13, 3
    %p201 = pnand %p199, %p200
    %p202 = pneg %p201
    // Predicated region
    $region9: #{_lambda_.8} parent=5 // pred_check
      _
    $region10: #{_lambda_.8} parent=5 // pred_check_branch
      %204 = sbr.rel (%p201) target = $region12
    $region11: #{_lambda_.8} parent=5 // pred_region
      %s205 = ssub.s32 %s13, 1
      // Predicated region
      $region13: #{_lambda_.8} parent=11 // pred_check
        %p206 = pneg %p60
      $region14: #{_lambda_.8} parent=11 // pred_check_branch
        %208 = sbr.rel (%p206) target = $region16
      $region15: #{_lambda_.8} parent=11 // pred_region
        _
      $region16: #{_lambda_.8} parent=11 // pred_fallthru
        _
      // Predicated region
      $region17: #{_lambda_.8} parent=11 // pred_check
        %p209 = pneg %p81
      $region18: #{_lambda_.8} parent=11 // pred_check_branch
        %211 = sbr.rel (%p209) target = $region20
      $region19: #{_lambda_.8} parent=11 // pred_region
        _
      $region20: #{_lambda_.8} parent=11 // pred_fallthru
        _
      // Predicated region
      $region21: #{_lambda_.8} parent=11 // pred_check
        %p212 = pneg %p102
      $region22: #{_lambda_.8} parent=11 // pred_check_branch
        %214 = sbr.rel (%p212) target = $region24
      $region23: #{_lambda_.8} parent=11 // pred_region
        _
      $region24: #{_lambda_.8} parent=11 // pred_fallthru
        _
      // Predicated region
      $region25: #{_lambda_.8} parent=11 // pred_check
        %p215 = pneg %p123
      $region26: #{_lambda_.8} parent=11 // pred_check_branch
        %217 = sbr.rel (%p215) target = $region28
      $region27: #{_lambda_.8} parent=11 // pred_region
        _
      $region28: #{_lambda_.8} parent=11 // pred_fallthru
        _
      // Predicated region
      $region29: #{_lambda_.8} parent=11 // pred_check
        %p218 = pneg %p144
      $region30: #{_lambda_.8} parent=11 // pred_check_branch
        %220 = sbr.rel (%p218) target = $region32
      $region31: #{_lambda_.8} parent=11 // pred_region
        _
      $region32: #{_lambda_.8} parent=11 // pred_fallthru
        _
      // Predicated region
      $region33: #{_lambda_.8} parent=11 // pred_check
        %p221 = pneg %p165
      $region34: #{_lambda_.8} parent=11 // pred_check_branch
        %223 = sbr.rel (%p221) target = $region36
      $region35: #{_lambda_.8} parent=11 // pred_region
        _
      $region36: #{_lambda_.8} parent=11 // pred_fallthru
        _
    $region12: #{_lambda_.8} parent=5 // pred_fallthru
      _
    %p224 = scmp.lt.s32.totalorder %s13, 2
    // Predicated region
    $region37: #{_lambda_.8} parent=5 // pred_check
      %p225 = pneg %p224
    $region38: #{_lambda_.8} parent=5 // pred_check_branch
      %227 = sbr.rel (%p225) target = $region40
    $region39: #{_lambda_.8} parent=5 // pred_region
      // Predicated region
      $region41: #{_lambda_.8} parent=39 // pred_check
        %p228 = pneg %p33
      $region42: #{_lambda_.8} parent=39 // pred_check_branch
        %230 = sbr.rel (%p228) target = $region44
      $region43: #{_lambda_.8} parent=39 // pred_region
        %s231 = smul.u32 2, %s13
        %p232 = scmp.lt.s32.totalorder %s231, 3
        %s233 = scalar_select %p232, %s231, 3
        %s234 = smul.addr %s233, 4
        %s235 = scalar_lea.vmem %s0, %s234
        %s236 = smul.u32 2, %s13
      $region44: #{_lambda_.8} parent=39 // pred_fallthru
        _
    $region40: #{_lambda_.8} parent=5 // pred_fallthru
      _
    %p237 = scmp.le.s32.totalorder 1, %s13
    %p238 = scmp.lt.s32.totalorder %s13, 3
    %p239 = pnand %p237, %p238
    %p240 = pneg %p239
    // Predicated region
    $region45: #{_lambda_.8} parent=5 // pred_check
      _
    $region46: #{_lambda_.8} parent=5 // pred_check_branch
      %242 = sbr.rel (%p239) target = $region48
    $region47: #{_lambda_.8} parent=5 // pred_region
      %s243 = ssub.s32 %s13, 1
      %s244 = smul.u32 2, %s18
      %p245 = scmp.lt.s32.totalorder %s244, 3
      %s246 = scalar_select %p245, %s244, 3
      %s247 = smul.addr %s246, 4
      %s248 = scalar_lea.vmem %s0, %s247
      %p249 = pneg %p39
      %p250 = pneg %p36
      %p251 = pneg %p60
      %p252 = pneg %p57
      %p253 = pneg %p81
      %p254 = pneg %p78
      %p255 = pneg %p102
      %p256 = pneg %p99
      %p257 = pneg %p123
      %p258 = pneg %p120
      %p259 = pneg %p144
      %p260 = pneg %p141
      %p261 = pneg %p165
      %p262 = pneg %p162
      %p263 = pneg %p191
      %p264 = pneg %p188
      %s265 = smul.u32 2, %s18
      %p266 = scmp.lt.s32.totalorder %s265, 3
      %s267 = scalar_select %p266, %s265, 3
      %s268 = smul.addr %s267, 4
      %s269 = scalar_lea.vmem %s7, %s268
      %s270 = smul.u32 2, %s18
      %p271 = scmp.lt.s32.totalorder %s270, 3
      %s272 = scalar_select %p271, %s270, 3
      %s273 = smul.addr %s272, 4
      %s274 = scalar_lea.vmem %s0, %s273
      %s275 = smul.u32 2, %s18
      %s276 = smul.u32 2, %s18
      %p277 = scmp.lt.s32.totalorder %s276, 3
      %s278 = scalar_select %p277, %s276, 3
      %s279 = smul.addr %s278, 4
      %s280 = scalar_lea.vmem %s7, %s279
      %s281 = smul.u32 2, %s18
      %v283 = vld [vmem:[%s274] sm:$0xf]
      %v284 = vld [vmem:[%s274 + $0x4] sm:$0xf]
      %v285 = vunpack.c.l.bf16 %v283
      %v286 = vunpack.c.l.bf16 %v284
      %vm287 = vcmask 261120
      %v288 = vsel %vm287, %v285, 0.0
      %289 = vadd.xlane.f32.xlu0 %v288
      %v290 = vpop.xlane.xlu0 %289
      %v291 = vsel %vm287, %v286, 0.0
      %292 = vadd.xlane.f32.xlu0 %v291
      %v293 = vpop.xlane.xlu0 %292
      %v294 = vrcp.pop 32.0
      %v295 = vmul.f32 %v290, %v294
      %v296 = vmul.f32 %v293, %v294
      %v297 = vsub.f32 %v285, %v295
      %v298 = vsub.f32 %v286, %v296
      %v299 = vmul.f32 %v297, %v297
      %v300 = vmul.f32 %v298, %v298
      %v301 = vsel %vm287, %v299, 0.0
      %302 = vadd.xlane.f32.xlu0 %v301
      %v303 = vpop.xlane.xlu0 %302
      %v304 = vsel %vm287, %v300, 0.0
      %305 = vadd.xlane.f32.xlu0 %v304
      %v306 = vpop.xlane.xlu0 %305
      %v307 = vmul.f32 %v303, %v294
      %v308 = vmul.f32 %v306, %v294
      %v309 = vadd.f32 %v307, 1e-05
      %v310 = vadd.f32 %v308, 1e-05
      %v311 = vrsqrt.pop %v309
      %v312 = vrsqrt.pop %v310
      %v313 = vmul.f32 %v297, %v311
      %v314 = vmul.f32 %v298, %v312
      %v315 = vld [vmem:[%s1] sm:$0x1]
      %v317 = vlaneseq
      %v318 = vshrl.u32 %v317, 7
      %v319 = vsub.s32 0, %v318
      %v320 = vrot.slane %v315, %v319
      %v322 = vmul.f32 %v313, %v320
      %v323 = vmul.f32 %v314, %v320
      %v324 = vld [vmem:[%s2] sm:$0x1]
      %v326 = vlaneseq
      %v327 = vshrl.u32 %v326, 7
      %v328 = vsub.s32 0, %v327
      %v329 = vrot.slane %v324, %v328
      %v331 = vadd.f32 %v322, %v329
      %v332 = vadd.f32 %v323, %v329
      %v333 = vpack.c.bf16 %v332, %v331
      %v334 = vld [vmem:[%s3] sm:$0xf]
      %v335 = vld [vmem:[%s3 + $0x4] sm:$0xf]
      %v336 = vld [vmem:[%s3 + $0x8] sm:$0xf]
      %v337 = vld [vmem:[%s3 + $0xc] sm:$0xf]
      %v338 = vld [vmem:[%s4] sm:$0x1]
      %v340 = vlaneseq
      %v341 = vshrl.u32 %v340, 7
      %v342 = vsub.s32 0, %v341
      %v343 = vrot.slane %v338, %v342
      %v349 = vunpack.c.l.b16 %v334
      %v350 = vunpack.c.l.b16 %v335
      %v351 = vunpack.c.l.b16 %v336
      %v352 = vunpack.c.l.b16 %v337
      %v353 = vpack.c.b16 %v350, %v349
      %v354 = vpack.c.b16 %v352, %v351
      %v358 = vsel %vm287, %v333, 0
      %360 = vmatprep.subr.bf16.mxu0 0
      %361 = vmatpush1.bf16.msra.mxu0 %v353
      %362 = vmatprep.subr.bf16.mxu0 0
      %363 = vmatpush1.bf16.msra.mxu0 %v354
      %364 = vmatprep.subr.bf16.mxu0 0
      %365 = vmatpush1.bf16.msra.mxu0 0
      %366 = vmatprep.subr.bf16.mxu0 0
      %367 = vmatpush1.bf16.msra.mxu0 0
      %368 = vmatprep.subr.bf16.mxu0 0
      %369 = vmatpush1.bf16.msra.mxu0 0
      %370 = vmatprep.subr.bf16.mxu0 0
      %371 = vmatpush1.bf16.msra.mxu0 0
      %372 = vmatprep.subr.bf16.mxu0 0
      %373 = vmatpush1.bf16.msra.mxu0 0
      %374 = vmatprep.subr.bf16.mxu0 0
      %375 = vmatpush1.bf16.msra.mxu0 0
      %376 = vmatprep.subr.bf16.mxu0 0
      %377 = vmatpush1.bf16.msra.mxu0 0
      %378 = vmatprep.subr.bf16.mxu0 0
      %379 = vmatpush1.bf16.msra.mxu0 0
      %380 = vmatprep.subr.bf16.mxu0 0
      %381 = vmatpush1.bf16.msra.mxu0 0
      %382 = vmatprep.subr.bf16.mxu0 0
      %383 = vmatpush1.bf16.msra.mxu0 0
      %384 = vmatprep.subr.bf16.mxu0 0
      %385 = vmatpush1.bf16.msra.mxu0 0
      %386 = vmatprep.subr.bf16.mxu0 0
      %387 = vmatpush1.bf16.msra.mxu0 0
      %388 = vmatprep.subr.bf16.mxu0 0
      %389 = vmatpush1.bf16.msra.mxu0 0
      %390 = vmatprep.subr.bf16.mxu0 0
      %391 = vmatpush1.bf16.msra.mxu0 0
      %392 = vmatprep.mubr.bf16.mxu0 0
      %393 = vmatmul.mubr.bf16.gmra.mrb[0].mxu0 %v358
      %v394 = vpop.f32.mrb[0].mxu0
      %v395 = vadd.f32 %v343, %v394
      %v396 = vpop.f32.mrb[0].mxu0
      %v397 = vpop.f32.mrb[0].mxu0
      %v398 = vadd.f32 %v343, %v397
      %v399 = vpop.f32.mrb[0].mxu0
      %400 = vdwg.mxu0
      %v401 = vpack.c.bf16 %v398, %v395
      %403 = vrot.lane.b32.xlu0 %v401, 96
      %v404 = vpop.permute.xlu0 %403
      %vm405 = vcmask 64512
      %v407 = vsel %vm405, %v401, 0
      %v410 = vsel %vm405, %v404, 0
      %412 = vmatprep.subr.bf16.mxu0 0
      %413 = vmatpush1.bf16.xpose.msra.mxu0 %v410
      %414 = vmatprep.subr.bf16.mxu0 0
      %415 = vmatpush1.bf16.xpose.msra.mxu0 0
      %416 = vmatprep.subr.bf16.mxu0 0
      %417 = vmatpush1.bf16.xpose.msra.mxu0 0
      %418 = vmatprep.subr.bf16.mxu0 0
      %419 = vmatpush1.bf16.xpose.msra.mxu0 0
      %420 = vmatprep.subr.bf16.mxu0 0
      %421 = vmatpush1.bf16.xpose.msra.mxu0 0
      %422 = vmatprep.subr.bf16.mxu0 0
      %423 = vmatpush1.bf16.xpose.msra.mxu0 0
      %424 = vmatprep.subr.bf16.mxu0 0
      %425 = vmatpush1.bf16.xpose.msra.mxu0 0
      %426 = vmatprep.subr.bf16.mxu0 0
      %427 = vmatpush1.bf16.xpose.msra.mxu0 0
      %428 = vmatprep.subr.bf16.mxu0 0
      %429 = vmatpush1.bf16.xpose.msra.mxu0 0
      %430 = vmatprep.subr.bf16.mxu0 0
      %431 = vmatpush1.bf16.xpose.msra.mxu0 0
      %432 = vmatprep.subr.bf16.mxu0 0
      %433 = vmatpush1.bf16.xpose.msra.mxu0 0
      %434 = vmatprep.subr.bf16.mxu0 0
      %435 = vmatpush1.bf16.xpose.msra.mxu0 0
      %436 = vmatprep.subr.bf16.mxu0 0
      %437 = vmatpush1.bf16.xpose.msra.mxu0 0
      %438 = vmatprep.subr.bf16.mxu0 0
      %439 = vmatpush1.bf16.xpose.msra.mxu0 0
      %440 = vmatprep.subr.bf16.mxu0 0
      %441 = vmatpush1.bf16.xpose.msra.mxu0 0
      %442 = vmatprep.subr.bf16.mxu0 0
      %443 = vmatpush1.bf16.xpose.msra.mxu0 0
      %444 = vmatprep.mubr.bf16.mxu0 0
      %445 = vmatmul.mubr.bf16.gmra.mrb[0].mxu0 %v407
      %v446 = vpop.f32.mrb[0].mxu0
      %v447 = vadd.f32 0.0, %v446
      %v448 = vpop.f32.mrb[0].mxu0
      %v449 = vpop.f32.mrb[0].mxu0
      %v450 = vadd.f32 0.0, %v449
      %v451 = vpop.f32.mrb[0].mxu0
      %452 = vdwg.mxu0
      %v453 = vmul.f32 %v447, 0.35355338
      %v454 = vmul.f32 %v450, 0.35355338
      %vm455 = vcmask 130048
      %v456 = vsel %vm455, %v453, -inf
      %457 = vmax.xlane.f32.xlu0 %v456
      %v458 = vpop.xlane.xlu0 %457
      %v459 = vsel %vm455, %v454, -inf
      %460 = vmax.xlane.f32.xlu0 %v459
      %v461 = vpop.xlane.xlu0 %460
      %v462 = vsub.f32 %v453, %v458
      %v463 = vsub.f32 %v454, %v461
      %v464 = vmul.f32 %v462, 1.442695
      %v465 = vpow.pop %v464
      %v466 = vmul.f32 %v463, 1.442695
      %v467 = vpow.pop %v466
      %v468 = vsel %vm455, %v465, 0.0
      %469 = vadd.xlane.f32.xlu0 %v468
      %v470 = vpop.xlane.xlu0 %469
      %v471 = vsel %vm455, %v467, 0.0
      %472 = vadd.xlane.f32.xlu0 %v471
      %v473 = vpop.xlane.xlu0 %472
      %v474 = vrcp.pop %v470
      %v475 = vrcp.pop %v473
      %v476 = vmul.f32 %v465, %v474
      %v477 = vmul.f32 %v467, %v475
      %v478 = vpack.c.bf16 %v477, %v476
      %479 = vrot.lane.b32.xlu0 %v401, 64
      %v480 = vpop.permute.xlu0 %479
      %v483 = vsel %vm455, %v478, 0
      %485 = vmatprep.subr.bf16.mxu0 0
      %486 = vmatpush1.bf16.msra.mxu0 %v480
      %487 = vmatprep.subr.bf16.mxu0 0
      %488 = vmatpush1.bf16.msra.mxu0 0
      %489 = vmatprep.subr.bf16.mxu0 0
      %490 = vmatpush1.bf16.msra.mxu0 0
      %491 = vmatprep.subr.bf16.mxu0 0
      %492 = vmatpush1.bf16.msra.mxu0 0
      %493 = vmatprep.subr.bf16.mxu0 0
      %494 = vmatpush1.bf16.msra.mxu0 0
      %495 = vmatprep.subr.bf16.mxu0 0
      %496 = vmatpush1.bf16.msra.mxu0 0
      %497 = vmatprep.subr.bf16.mxu0 0
      %498 = vmatpush1.bf16.msra.mxu0 0
      %499 = vmatprep.subr.bf16.mxu0 0
      %500 = vmatpush1.bf16.msra.mxu0 0
      %501 = vmatprep.subr.bf16.mxu0 0
      %502 = vmatpush1.bf16.msra.mxu0 0
      %503 = vmatprep.subr.bf16.mxu0 0
      %504 = vmatpush1.bf16.msra.mxu0 0
      %505 = vmatprep.subr.bf16.mxu0 0
      %506 = vmatpush1.bf16.msra.mxu0 0
      %507 = vmatprep.subr.bf16.mxu0 0
      %508 = vmatpush1.bf16.msra.mxu0 0
      %509 = vmatprep.subr.bf16.mxu0 0
      %510 = vmatpush1.bf16.msra.mxu0 0
      %511 = vmatprep.subr.bf16.mxu0 0
      %512 = vmatpush1.bf16.msra.mxu0 0
      %513 = vmatprep.subr.bf16.mxu0 0
      %514 = vmatpush1.bf16.msra.mxu0 0
      %515 = vmatprep.subr.bf16.mxu0 0
      %516 = vmatpush1.bf16.msra.mxu0 0
      %517 = vmatprep.mubr.bf16.mxu0 0
      %518 = vmatmul.mubr.bf16.gmra.mrb[0].mxu0 %v483
      %v519 = vpop.f32.mrb[0].mxu0
      %v520 = vadd.f32 0.0, %v519
      %v521 = vpop.f32.mrb[0].mxu0
      %v522 = vpop.f32.mrb[0].mxu0
      %v523 = vadd.f32 0.0, %v522
      %v524 = vpop.f32.mrb[0].mxu0
      %525 = vdwg.mxu0
      %v526 = vpack.c.bf16 %v523, %v520
      %v527 = vld [vmem:[%s5] sm:$0xf]
      %528 = vrot.lane.b32.xlu0 %v401, 120
      %v529 = vpop.permute.xlu0 %528
      %530 = vrot.lane.b32.xlu0 %v401, 88
      %v531 = vpop.permute.xlu0 %530
      %v533 = vsel %vm405, %v529, 0
      %v536 = vsel %vm405, %v531, 0
      %538 = vmatprep.subr.bf16.mxu0 0
      %539 = vmatpush1.bf16.xpose.msra.mxu0 %v536
      %540 = vmatprep.subr.bf16.mxu0 0
      %541 = vmatpush1.bf16.xpose.msra.mxu0 0
      %542 = vmatprep.subr.bf16.mxu0 0
      %543 = vmatpush1.bf16.xpose.msra.mxu0 0
      %544 = vmatprep.subr.bf16.mxu0 0
      %545 = vmatpush1.bf16.xpose.msra.mxu0 0
      %546 = vmatprep.subr.bf16.mxu0 0
      %547 = vmatpush1.bf16.xpose.msra.mxu0 0
      %548 = vmatprep.subr.bf16.mxu0 0
      %549 = vmatpush1.bf16.xpose.msra.mxu0 0
      %550 = vmatprep.subr.bf16.mxu0 0
      %551 = vmatpush1.bf16.xpose.msra.mxu0 0
      %552 = vmatprep.subr.bf16.mxu0 0
      %553 = vmatpush1.bf16.xpose.msra.mxu0 0
      %554 = vmatprep.subr.bf16.mxu0 0
      %555 = vmatpush1.bf16.xpose.msra.mxu0 0
      %556 = vmatprep.subr.bf16.mxu0 0
      %557 = vmatpush1.bf16.xpose.msra.mxu0 0
      %558 = vmatprep.subr.bf16.mxu0 0
      %559 = vmatpush1.bf16.xpose.msra.mxu0 0
      %560 = vmatprep.subr.bf16.mxu0 0
      %561 = vmatpush1.bf16.xpose.msra.mxu0 0
      %562 = vmatprep.subr.bf16.mxu0 0
      %563 = vmatpush1.bf16.xpose.msra.mxu0 0
      %564 = vmatprep.subr.bf16.mxu0 0
      %565 = vmatpush1.bf16.xpose.msra.mxu0 0
      %566 = vmatprep.subr.bf16.mxu0 0
      %567 = vmatpush1.bf16.xpose.msra.mxu0 0
      %568 = vmatprep.subr.bf16.mxu0 0
      %569 = vmatpush1.bf16.xpose.msra.mxu0 0
      %570 = vmatprep.mubr.bf16.mxu0 0
      %571 = vmatmul.mubr.bf16.gmra.mrb[0].mxu0 %v533
      %v572 = vpop.f32.mrb[0].mxu0
      %v573 = vadd.f32 0.0, %v572
      %v574 = vpop.f32.mrb[0].mxu0
      %v575 = vpop.f32.mrb[0].mxu0
      %v576 = vadd.f32 0.0, %v575
      %v577 = vpop.f32.mrb[0].mxu0
      %578 = vdwg.mxu0
      %v579 = vmul.f32 %v573, 0.35355338
      %v580 = vmul.f32 %v576, 0.35355338
      %v581 = vsel %vm455, %v579, -inf
      %582 = vmax.xlane.f32.xlu0 %v581
      %v583 = vpop.xlane.xlu0 %582
      %v584 = vsel %vm455, %v580, -inf
      %585 = vmax.xlane.f32.xlu0 %v584
      %v586 = vpop.xlane.xlu0 %585
      %v587 = vsub.f32 %v579, %v583
      %v588 = vsub.f32 %v580, %v586
      %v589 = vmul.f32 %v587, 1.442695
      %v590 = vpow.pop %v589
      %v591 = vmul.f32 %v588, 1.442695
      %v592 = vpow.pop %v591
      %v593 = vsel %vm455, %v590, 0.0
      %594 = vadd.xlane.f32.xlu0 %v593
      %v595 = vpop.xlane.xlu0 %594
      %v596 = vsel %vm455, %v592, 0.0
      %597 = vadd.xlane.f32.xlu0 %v596
      %v598 = vpop.xlane.xlu0 %597
      %v599 = vrcp.pop %v595
      %v600 = vrcp.pop %v598
      %v601 = vmul.f32 %v590, %v599
      %v602 = vmul.f32 %v592, %v600
      %v603 = vpack.c.bf16 %v602, %v601
      %604 = vrot.lane.b32.xlu0 %v401, 56
      %v605 = vpop.permute.xlu0 %604
      %v608 = vsel %vm455, %v603, 0
      %610 = vmatprep.subr.bf16.mxu0 0
      %611 = vmatpush1.bf16.msra.mxu0 %v605
      %612 = vmatprep.subr.bf16.mxu0 0
      %613 = vmatpush1.bf16.msra.mxu0 0
      %614 = vmatprep.subr.bf16.mxu0 0
      %615 = vmatpush1.bf16.msra.mxu0 0
      %616 = vmatprep.subr.bf16.mxu0 0
      %617 = vmatpush1.bf16.msra.mxu0 0
      %618 = vmatprep.subr.bf16.mxu0 0
      %619 = vmatpush1.bf16.msra.mxu0 0
      %620 = vmatprep.subr.bf16.mxu0 0
      %621 = vmatpush1.bf16.msra.mxu0 0
      %622 = vmatprep.subr.bf16.mxu0 0
      %623 = vmatpush1.bf16.msra.mxu0 0
      %624 = vmatprep.subr.bf16.mxu0 0
      %625 = vmatpush1.bf16.msra.mxu0 0
      %626 = vmatprep.subr.bf16.mxu0 0
      %627 = vmatpush1.bf16.msra.mxu0 0
      %628 = vmatprep.subr.bf16.mxu0 0
      %629 = vmatpush1.bf16.msra.mxu0 0
      %630 = vmatprep.subr.bf16.mxu0 0
      %631 = vmatpush1.bf16.msra.mxu0 0
      %632 = vmatprep.subr.bf16.mxu0 0
      %633 = vmatpush1.bf16.msra.mxu0 0
      %634 = vmatprep.subr.bf16.mxu0 0
      %635 = vmatpush1.bf16.msra.mxu0 0
      %636 = vmatprep.subr.bf16.mxu0 0
      %637 = vmatpush1.bf16.msra.mxu0 0
      %638 = vmatprep.subr.bf16.mxu0 0
      %639 = vmatpush1.bf16.msra.mxu0 0
      %640 = vmatprep.subr.bf16.mxu0 0
      %641 = vmatpush1.bf16.msra.mxu0 0
      %642 = vmatprep.mubr.bf16.mxu0 0
      %643 = vmatmul.mubr.bf16.gmra.mrb[0].mxu0 %v608
      %v644 = vpop.f32.mrb[0].mxu0
      %v645 = vadd.f32 0.0, %v644
      %v646 = vpop.f32.mrb[0].mxu0
      %v647 = vpop.f32.mrb[0].mxu0
      %v648 = vadd.f32 0.0, %v647
      %v649 = vpop.f32.mrb[0].mxu0
      %650 = vdwg.mxu0
      %v651 = vpack.c.bf16 %v648, %v645
      %s652 = scalar_lea.vmem %s5, 4
      %v653 = vld [vmem:[%s652] sm:$0xf]
      %v655 = vsel %vm405, %v651, 0
      %vm657 = vcmask 1043456
      %v659 = vsel %vm657, %v653, 0
      %661 = vmatprep.subr.bf16.mxu0 0
      %662 = vmatpush1.bf16.msra.mxu0 %v659
      %663 = vmatprep.subr.bf16.mxu0 0
      %664 = vmatpush1.bf16.msra.mxu0 0
      %665 = vmatprep.subr.bf16.mxu0 0
      %666 = vmatpush1.bf16.msra.mxu0 0
      %667 = vmatprep.subr.bf16.mxu0 0
      %668 = vmatpush1.bf16.msra.mxu0 0
      %669 = vmatprep.subr.bf16.mxu0 0
      %670 = vmatpush1.bf16.msra.mxu0 0
      %671 = vmatprep.subr.bf16.mxu0 0
      %672 = vmatpush1.bf16.msra.mxu0 0
      %673 = vmatprep.subr.bf16.mxu0 0
      %674 = vmatpush1.bf16.msra.mxu0 0
      %675 = vmatprep.subr.bf16.mxu0 0
      %676 = vmatpush1.bf16.msra.mxu0 0
      %677 = vmatprep.subr.bf16.mxu0 0
      %678 = vmatpush1.bf16.msra.mxu0 0
      %679 = vmatprep.subr.bf16.mxu0 0
      %680 = vmatpush1.bf16.msra.mxu0 0
      %681 = vmatprep.subr.bf16.mxu0 0
      %682 = vmatpush1.bf16.msra.mxu0 0
      %683 = vmatprep.subr.bf16.mxu0 0
      %684 = vmatpush1.bf16.msra.mxu0 0
      %685 = vmatprep.subr.bf16.mxu0 0
      %686 = vmatpush1.bf16.msra.mxu0 0
      %687 = vmatprep.subr.bf16.mxu0 0
      %688 = vmatpush1.bf16.msra.mxu0 0
      %689 = vmatprep.subr.bf16.mxu0 0
      %690 = vmatpush1.bf16.msra.mxu0 0
      %691 = vmatprep.subr.bf16.mxu0 0
      %692 = vmatpush1.bf16.msra.mxu0 0
      %693 = vmatprep.mubr.bf16.mxu0 0
      %694 = vmatmul.mubr.bf16.gmra.mrb[0].mxu0 %v655
      %v695 = vpop.f32.mrb[0].mxu0
      %v696 = vadd.f32 0.0, %v695
      %v697 = vpop.f32.mrb[0].mxu0
      %v698 = vpop.f32.mrb[0].mxu0
      %v699 = vadd.f32 0.0, %v698
      %v700 = vpop.f32.mrb[0].mxu0
      %701 = vdwg.mxu0
      %v703 = vsel %vm405, %v526, 0
      %v706 = vsel %vm657, %v527, 0
      %708 = vmatprep.subr.bf16.mxu0 0
      %709 = vmatpush1.bf16.msra.mxu0 %v706
      %710 = vmatprep.subr.bf16.mxu0 0
      %711 = vmatpush1.bf16.msra.mxu0 0
      %712 = vmatprep.subr.bf16.mxu0 0
      %713 = vmatpush1.bf16.msra.mxu0 0
      %714 = vmatprep.subr.bf16.mxu0 0
      %715 = vmatpush1.bf16.msra.mxu0 0
      %716 = vmatprep.subr.bf16.mxu0 0
      %717 = vmatpush1.bf16.msra.mxu0 0
      %718 = vmatprep.subr.bf16.mxu0 0
      %719 = vmatpush1.bf16.msra.mxu0 0
      %720 = vmatprep.subr.bf16.mxu0 0
      %721 = vmatpush1.bf16.msra.mxu0 0
      %722 = vmatprep.subr.bf16.mxu0 0
      %723 = vmatpush1.bf16.msra.mxu0 0
      %724 = vmatprep.subr.bf16.mxu0 0
      %725 = vmatpush1.bf16.msra.mxu0 0
      %726 = vmatprep.subr.bf16.mxu0 0
      %727 = vmatpush1.bf16.msra.mxu0 0
      %728 = vmatprep.subr.bf16.mxu0 0
      %729 = vmatpush1.bf16.msra.mxu0 0
      %730 = vmatprep.subr.bf16.mxu0 0
      %731 = vmatpush1.bf16.msra.mxu0 0
      %732 = vmatprep.subr.bf16.mxu0 0
      %733 = vmatpush1.bf16.msra.mxu0 0
      %734 = vmatprep.subr.bf16.mxu0 0
      %735 = vmatpush1.bf16.msra.mxu0 0
      %736 = vmatprep.subr.bf16.mxu0 0
      %737 = vmatpush1.bf16.msra.mxu0 0
      %738 = vmatprep.subr.bf16.mxu0 0
      %739 = vmatpush1.bf16.msra.mxu0 0
      %740 = vmatprep.mubr.bf16.mxu0 0
      %741 = vmatmul.mubr.bf16.gmra.mrb[0].mxu0 %v703
      %v742 = vpop.f32.mrb[0].mxu0
      %v743 = vadd.f32 %v696, %v742
      %v744 = vpop.f32.mrb[0].mxu0
      %v745 = vpop.f32.mrb[0].mxu0
      %v746 = vadd.f32 %v699, %v745
      %v747 = vpop.f32.mrb[0].mxu0
      %748 = vdwg.mxu0
      %749 = vrot.lane.b32.xlu0 %v401, 112
      %v750 = vpop.permute.xlu0 %749
      %751 = vrot.lane.b32.xlu0 %v401, 80
      %v752 = vpop.permute.xlu0 %751
      %v754 = vsel %vm405, %v750, 0
      %v757 = vsel %vm405, %v752, 0
      %759 = vmatprep.subr.bf16.mxu0 0
      %760 = vmatpush1.bf16.xpose.msra.mxu0 %v757
      %761 = vmatprep.subr.bf16.mxu0 0
      %762 = vmatpush1.bf16.xpose.msra.mxu0 0
      %763 = vmatprep.subr.bf16.mxu0 0
      %764 = vmatpush1.bf16.xpose.msra.mxu0 0
      %765 = vmatprep.subr.bf16.mxu0 0
      %766 = vmatpush1.bf16.xpose.msra.mxu0 0
      %767 = vmatprep.subr.bf16.mxu0 0
      %768 = vmatpush1.bf16.xpose.msra.mxu0 0
      %769 = vmatprep.subr.bf16.mxu0 0
      %770 = vmatpush1.bf16.xpose.msra.mxu0 0
      %771 = vmatprep.subr.bf16.mxu0 0
      %772 = vmatpush1.bf16.xpose.msra.mxu0 0
      %773 = vmatprep.subr.bf16.mxu0 0
      %774 = vmatpush1.bf16.xpose.msra.mxu0 0
      %775 = vmatprep.subr.bf16.mxu0 0
      %776 = vmatpush1.bf16.xpose.msra.mxu0 0
      %777 = vmatprep.subr.bf16.mxu0 0
      %778 = vmatpush1.bf16.xpose.msra.mxu0 0
      %779 = vmatprep.subr.bf16.mxu0 0
      %780 = vmatpush1.bf16.xpose.msra.mxu0 0
      %781 = vmatprep.subr.bf16.mxu0 0
      %782 = vmatpush1.bf16.xpose.msra.mxu0 0
      %783 = vmatprep.subr.bf16.mxu0 0
      %784 = vmatpush1.bf16.xpose.msra.mxu0 0
      %785 = vmatprep.subr.bf16.mxu0 0
      %786 = vmatpush1.bf16.xpose.msra.mxu0 0
      %787 = vmatprep.subr.bf16.mxu0 0
      %788 = vmatpush1.bf16.xpose.msra.mxu0 0
      %789 = vmatprep.subr.bf16.mxu0 0
      %790 = vmatpush1.bf16.xpose.msra.mxu0 0
      %791 = vmatprep.mubr.bf16.mxu0 0
      %792 = vmatmul.mubr.bf16.gmra.mrb[0].mxu0 %v754
      %v793 = vpop.f32.mrb[0].mxu0
      %v794 = vadd.f32 0.0, %v793
      %v795 = vpop.f32.mrb[0].mxu0
      %v796 = vpop.f32.mrb[0].mxu0
      %v797 = vadd.f32 0.0, %v796
      %v798 = vpop.f32.mrb[0].mxu0
      %799 = vdwg.mxu0
      %v800 = vmul.f32 %v794, 0.35355338
      %v801 = vmul.f32 %v797, 0.35355338
      %v802 = vsel %vm455, %v800, -inf
      %803 = vmax.xlane.f32.xlu0 %v802
      %v804 = vpop.xlane.xlu0 %803
      %v805 = vsel %vm455, %v801, -inf
      %806 = vmax.xlane.f32.xlu0 %v805
      %v807 = vpop.xlane.xlu0 %806
      %v808 = vsub.f32 %v800, %v804
      %v809 = vsub.f32 %v801, %v807
      %v810 = vmul.f32 %v808, 1.442695
      %v811 = vpow.pop %v810
      %v812 = vmul.f32 %v809, 1.442695
      %v813 = vpow.pop %v812
      %v814 = vsel %vm455, %v811, 0.0
      %815 = vadd.xlane.f32.xlu0 %v814
      %v816 = vpop.xlane.xlu0 %815
      %v817 = vsel %vm455, %v813, 0.0
      %818 = vadd.xlane.f32.xlu0 %v817
      %v819 = vpop.xlane.xlu0 %818
      %v820 = vrcp.pop %v816
      %v821 = vrcp.pop %v819
      %v822 = vmul.f32 %v811, %v820
      %v823 = vmul.f32 %v813, %v821
      %v824 = vpack.c.bf16 %v823, %v822
      %825 = vrot.lane.b32.xlu0 %v401, 48
      %v826 = vpop.permute.xlu0 %825
      %v829 = vsel %vm455, %v824, 0
      %831 = vmatprep.subr.bf16.mxu0 0
      %832 = vmatpush1.bf16.msra.mxu0 %v826
      %833 = vmatprep.subr.bf16.mxu0 0
      %834 = vmatpush1.bf16.msra.mxu0 0
      %835 = vmatprep.subr.bf16.mxu0 0
      %836 = vmatpush1.bf16.msra.mxu0 0
      %837 = vmatprep.subr.bf16.mxu0 0
      %838 = vmatpush1.bf16.msra.mxu0 0
      %839 = vmatprep.subr.bf16.mxu0 0
      %840 = vmatpush1.bf16.msra.mxu0 0
      %841 = vmatprep.subr.bf16.mxu0 0
      %842 = vmatpush1.bf16.msra.mxu0 0
      %843 = vmatprep.subr.bf16.mxu0 0
      %844 = vmatpush1.bf16.msra.mxu0 0
      %845 = vmatprep.subr.bf16.mxu0 0
      %846 = vmatpush1.bf16.msra.mxu0 0
      %847 = vmatprep.subr.bf16.mxu0 0
      %848 = vmatpush1.bf16.msra.mxu0 0
      %849 = vmatprep.subr.bf16.mxu0 0
      %850 = vmatpush1.bf16.msra.mxu0 0
      %851 = vmatprep.subr.bf16.mxu0 0
      %852 = vmatpush1.bf16.msra.mxu0 0
      %853 = vmatprep.subr.bf16.mxu0 0
      %854 = vmatpush1.bf16.msra.mxu0 0
      %855 = vmatprep.subr.bf16.mxu0 0
      %856 = vmatpush1.bf16.msra.mxu0 0
      %857 = vmatprep.subr.bf16.mxu0 0
      %858 = vmatpush1.bf16.msra.mxu0 0
      %859 = vmatprep.subr.bf16.mxu0 0
      %860 = vmatpush1.bf16.msra.mxu0 0
      %861 = vmatprep.subr.bf16.mxu0 0
      %862 = vmatpush1.bf16.msra.mxu0 0
      %863 = vmatprep.mubr.bf16.mxu0 0
      %864 = vmatmul.mubr.bf16.gmra.mrb[0].mxu0 %v829
      %v865 = vpop.f32.mrb[0].mxu0
      %v866 = vadd.f32 0.0, %v865
      %v867 = vpop.f32.mrb[0].mxu0
      %v868 = vpop.f32.mrb[0].mxu0
      %v869 = vadd.f32 0.0, %v868
      %v870 = vpop.f32.mrb[0].mxu0
      %871 = vdwg.mxu0
      %v872 = vpack.c.bf16 %v869, %v866
      %s873 = scalar_lea.vmem %s5, 8
      %v874 = vld [vmem:[%s873] sm:$0xf]
      %v876 = vsel %vm405, %v872, 0
      %v879 = vsel %vm657, %v874, 0
      %881 = vmatprep.subr.bf16.mxu0 0
      %882 = vmatpush1.bf16.msra.mxu0 %v879
      %883 = vmatprep.subr.bf16.mxu0 0
      %884 = vmatpush1.bf16.msra.mxu0 0
      %885 = vmatprep.subr.bf16.mxu0 0
      %886 = vmatpush1.bf16.msra.mxu0 0
      %887 = vmatprep.subr.bf16.mxu0 0
      %888 = vmatpush1.bf16.msra.mxu0 0
      %889 = vmatprep.subr.bf16.mxu0 0
      %890 = vmatpush1.bf16.msra.mxu0 0
      %891 = vmatprep.subr.bf16.mxu0 0
      %892 = vmatpush1.bf16.msra.mxu0 0
      %893 = vmatprep.subr.bf16.mxu0 0
      %894 = vmatpush1.bf16.msra.mxu0 0
      %895 = vmatprep.subr.bf16.mxu0 0
      %896 = vmatpush1.bf16.msra.mxu0 0
      %897 = vmatprep.subr.bf16.mxu0 0
      %898 = vmatpush1.bf16.msra.mxu0 0
      %899 = vmatprep.subr.bf16.mxu0 0
      %900 = vmatpush1.bf16.msra.mxu0 0
      %901 = vmatprep.subr.bf16.mxu0 0
      %902 = vmatpush1.bf16.msra.mxu0 0
      %903 = vmatprep.subr.bf16.mxu0 0
      %904 = vmatpush1.bf16.msra.mxu0 0
      %905 = vmatprep.subr.bf16.mxu0 0
      %906 = vmatpush1.bf16.msra.mxu0 0
      %907 = vmatprep.subr.bf16.mxu0 0
      %908 = vmatpush1.bf16.msra.mxu0 0
      %909 = vmatprep.subr.bf16.mxu0 0
      %910 = vmatpush1.bf16.msra.mxu0 0
      %911 = vmatprep.subr.bf16.mxu0 0
      %912 = vmatpush1.bf16.msra.mxu0 0
      %913 = vmatprep.mubr.bf16.mxu0 0
      %914 = vmatmul.mubr.bf16.gmra.mrb[0].mxu0 %v876
      %v915 = vpop.f32.mrb[0].mxu0
      %v916 = vadd.f32 0.0, %v915
      %v917 = vpop.f32.mrb[0].mxu0
      %v918 = vpop.f32.mrb[0].mxu0
      %v919 = vadd.f32 0.0, %v918
      %v920 = vpop.f32.mrb[0].mxu0
      %921 = vdwg.mxu0
      %v922 = vadd.f32 %v743, %v916
      %v923 = vadd.f32 %v746, %v919
      %924 = vrot.lane.b32.xlu0 %v401, 104
      %v925 = vpop.permute.xlu0 %924
      %926 = vrot.lane.b32.xlu0 %v401, 72
      %v927 = vpop.permute.xlu0 %926
      %v929 = vsel %vm405, %v925, 0
      %v932 = vsel %vm405, %v927, 0
      %934 = vmatprep.subr.bf16.mxu0 0
      %935 = vmatpush1.bf16.xpose.msra.mxu0 %v932
      %936 = vmatprep.subr.bf16.mxu0 0
      %937 = vmatpush1.bf16.xpose.msra.mxu0 0
      %938 = vmatprep.subr.bf16.mxu0 0
      %939 = vmatpush1.bf16.xpose.msra.mxu0 0
      %940 = vmatprep.subr.bf16.mxu0 0
      %941 = vmatpush1.bf16.xpose.msra.mxu0 0
      %942 = vmatprep.subr.bf16.mxu0 0
      %943 = vmatpush1.bf16.xpose.msra.mxu0 0
      %944 = vmatprep.subr.bf16.mxu0 0
      %945 = vmatpush1.bf16.xpose.msra.mxu0 0
      %946 = vmatprep.subr.bf16.mxu0 0
      %947 = vmatpush1.bf16.xpose.msra.mxu0 0
      %948 = vmatprep.subr.bf16.mxu0 0
      %949 = vmatpush1.bf16.xpose.msra.mxu0 0
      %950 = vmatprep.subr.bf16.mxu0 0
      %951 = vmatpush1.bf16.xpose.msra.mxu0 0
      %952 = vmatprep.subr.bf16.mxu0 0
      %953 = vmatpush1.bf16.xpose.msra.mxu0 0
      %954 = vmatprep.subr.bf16.mxu0 0
      %955 = vmatpush1.bf16.xpose.msra.mxu0 0
      %956 = vmatprep.subr.bf16.mxu0 0
      %957 = vmatpush1.bf16.xpose.msra.mxu0 0
      %958 = vmatprep.subr.bf16.mxu0 0
      %959 = vmatpush1.bf16.xpose.msra.mxu0 0
      %960 = vmatprep.subr.bf16.mxu0 0
      %961 = vmatpush1.bf16.xpose.msra.mxu0 0
      %962 = vmatprep.subr.bf16.mxu0 0
      %963 = vmatpush1.bf16.xpose.msra.mxu0 0
      %964 = vmatprep.subr.bf16.mxu0 0
      %965 = vmatpush1.bf16.xpose.msra.mxu0 0
      %966 = vmatprep.mubr.bf16.mxu0 0
      %967 = vmatmul.mubr.bf16.gmra.mrb[0].mxu0 %v929
      %v968 = vpop.f32.mrb[0].mxu0
      %v969 = vadd.f32 0.0, %v968
      %v970 = vpop.f32.mrb[0].mxu0
      %v971 = vpop.f32.mrb[0].mxu0
      %v972 = vadd.f32 0.0, %v971
      %v973 = vpop.f32.mrb[0].mxu0
      %974 = vdwg.mxu0
      %v975 = vmul.f32 %v969, 0.35355338
      %v976 = vmul.f32 %v972, 0.35355338
      %v977 = vsel %vm455, %v975, -inf
      %978 = vmax.xlane.f32.xlu0 %v977
      %v979 = vpop.xlane.xlu0 %978
      %v980 = vsel %vm455, %v976, -inf
      %981 = vmax.xlane.f32.xlu0 %v980
      %v982 = vpop.xlane.xlu0 %981
      %v983 = vsub.f32 %v975, %v979
      %v984 = vsub.f32 %v976, %v982
      %v985 = vmul.f32 %v983, 1.442695
      %v986 = vpow.pop %v985
      %v987 = vmul.f32 %v984, 1.442695
      %v988 = vpow.pop %v987
      %v989 = vsel %vm455, %v986, 0.0
      %990 = vadd.xlane.f32.xlu0 %v989
      %v991 = vpop.xlane.xlu0 %990
      %v992 = vsel %vm455, %v988, 0.0
      %993 = vadd.xlane.f32.xlu0 %v992
      %v994 = vpop.xlane.xlu0 %993
      %v995 = vrcp.pop %v991
      %v996 = vrcp.pop %v994
      %v997 = vmul.f32 %v986, %v995
      %v998 = vmul.f32 %v988, %v996
      %v999 = vpack.c.bf16 %v998, %v997
      %1000 = vrot.lane.b32.xlu0 %v401, 40
      %v1001 = vpop.permute.xlu0 %1000
      %v1004 = vsel %vm455, %v999, 0
      %1006 = vmatprep.subr.bf16.mxu0 0
      %1007 = vmatpush1.bf16.msra.mxu0 %v1001
      %1008 = vmatprep.subr.bf16.mxu0 0
      %1009 = vmatpush1.bf16.msra.mxu0 0
      %1010 = vmatprep.subr.bf16.mxu0 0
      %1011 = vmatpush1.bf16.msra.mxu0 0
      %1012 = vmatprep.subr.bf16.mxu0 0
      %1013 = vmatpush1.bf16.msra.mxu0 0
      %1014 = vmatprep.subr.bf16.mxu0 0
      %1015 = vmatpush1.bf16.msra.mxu0 0
      %1016 = vmatprep.subr.bf16.mxu0 0
      %1017 = vmatpush1.bf16.msra.mxu0 0
      %1018 = vmatprep.subr.bf16.mxu0 0
      %1019 = vmatpush1.bf16.msra.mxu0 0
      %1020 = vmatprep.subr.bf16.mxu0 0
      %1021 = vmatpush1.bf16.msra.mxu0 0
      %1022 = vmatprep.subr.bf16.mxu0 0
      %1023 = vmatpush1.bf16.msra.mxu0 0
      %1024 = vmatprep.subr.bf16.mxu0 0
      %1025 = vmatpush1.bf16.msra.mxu0 0
      %1026 = vmatprep.subr.bf16.mxu0 0
      %1027 = vmatpush1.bf16.msra.mxu0 0
      %1028 = vmatprep.subr.bf16.mxu0 0
      %1029 = vmatpush1.bf16.msra.mxu0 0
      %1030 = vmatprep.subr.bf16.mxu0 0
      %1031 = vmatpush1.bf16.msra.mxu0 0
      %1032 = vmatprep.subr.bf16.mxu0 0
      %1033 = vmatpush1.bf16.msra.mxu0 0
      %1034 = vmatprep.subr.bf16.mxu0 0
      %1035 = vmatpush1.bf16.msra.mxu0 0
      %1036 = vmatprep.subr.bf16.mxu0 0
      %1037 = vmatpush1.bf16.msra.mxu0 0
      %1038 = vmatprep.mubr.bf16.mxu0 0
      %1039 = vmatmul.mubr.bf16.gmra.mrb[0].mxu0 %v1004
      %v1040 = vpop.f32.mrb[0].mxu0
      %v1041 = vadd.f32 0.0, %v1040
      %v1042 = vpop.f32.mrb[0].mxu0
      %v1043 = vpop.f32.mrb[0].mxu0
      %v1044 = vadd.f32 0.0, %v1043
      %v1045 = vpop.f32.mrb[0].mxu0
      %1046 = vdwg.mxu0
      %v1047 = vpack.c.bf16 %v1044, %v1041
      %s1048 = scalar_lea.vmem %s5, 12
      %v1049 = vld [vmem:[%s1048] sm:$0xf]
      %v1051 = vsel %vm405, %v1047, 0
      %v1054 = vsel %vm657, %v1049, 0
      %1056 = vmatprep.subr.bf16.mxu0 0
      %1057 = vmatpush1.bf16.msra.mxu0 %v1054
      %1058 = vmatprep.subr.bf16.mxu0 0
      %1059 = vmatpush1.bf16.msra.mxu0 0
      %1060 = vmatprep.subr.bf16.mxu0 0
      %1061 = vmatpush1.bf16.msra.mxu0 0
      %1062 = vmatprep.subr.bf16.mxu0 0
      %1063 = vmatpush1.bf16.msra.mxu0 0
      %1064 = vmatprep.subr.bf16.mxu0 0
      %1065 = vmatpush1.bf16.msra.mxu0 0
      %1066 = vmatprep.subr.bf16.mxu0 0
      %1067 = vmatpush1.bf16.msra.mxu0 0
      %1068 = vmatprep.subr.bf16.mxu0 0
      %1069 = vmatpush1.bf16.msra.mxu0 0
      %1070 = vmatprep.subr.bf16.mxu0 0
      %1071 = vmatpush1.bf16.msra.mxu0 0
      %1072 = vmatprep.subr.bf16.mxu0 0
      %1073 = vmatpush1.bf16.msra.mxu0 0
      %1074 = vmatprep.subr.bf16.mxu0 0
      %1075 = vmatpush1.bf16.msra.mxu0 0
      %1076 = vmatprep.subr.bf16.mxu0 0
      %1077 = vmatpush1.bf16.msra.mxu0 0
      %1078 = vmatprep.subr.bf16.mxu0 0
      %1079 = vmatpush1.bf16.msra.mxu0 0
      %1080 = vmatprep.subr.bf16.mxu0 0
      %1081 = vmatpush1.bf16.msra.mxu0 0
      %1082 = vmatprep.subr.bf16.mxu0 0
      %1083 = vmatpush1.bf16.msra.mxu0 0
      %1084 = vmatprep.subr.bf16.mxu0 0
      %1085 = vmatpush1.bf16.msra.mxu0 0
      %1086 = vmatprep.subr.bf16.mxu0 0
      %1087 = vmatpush1.bf16.msra.mxu0 0
      %1088 = vmatprep.mubr.bf16.mxu0 0
      %1089 = vmatmul.mubr.bf16.gmra.mrb[0].mxu0 %v1051
      %v1090 = vpop.f32.mrb[0].mxu0
      %v1091 = vadd.f32 0.0, %v1090
      %v1092 = vpop.f32.mrb[0].mxu0
      %v1093 = vpop.f32.mrb[0].mxu0
      %v1094 = vadd.f32 0.0, %v1093
      %v1095 = vpop.f32.mrb[0].mxu0
      %1096 = vdwg.mxu0
      %v1097 = vadd.f32 %v922, %v1091
      %v1098 = vadd.f32 %v923, %v1094
      %v1099 = vadd.f32 %v285, %v1097
      %v1100 = vadd.f32 %v286, %v1098
      %v1101 = vld [vmem:[%s6] sm:$0x1]
      %v1103 = vlaneseq
      %v1104 = vshrl.u32 %v1103, 7
      %v1105 = vsub.s32 0, %v1104
      %v1106 = vrot.slane %v1101, %v1105
      %v1108 = vadd.f32 %v1099, %v1106
      %v1109 = vadd.f32 %v1100, %v1106
      %v1110 = vpack.c.bf16 %v1109, %v1108
      %v1112 = vunpack.c.l.b16 %v1110
      %v1113 = vunpack.c.h.b16 %v1110
      %v1114 = vpack.c.b16 %v1112, %v1112
      %v1115 = vpack.c.b16 %v1113, %v1113
      %vm1118 = vcmask 257024
      %1119 = vst.msk [vmem:[%s280] sm:$0xf] %vm1118, %v1114
      %1120 = vst.msk [vmem:[%s280 + $0x4] sm:$0xf] %vm1118, %v1115
      %s1121 = smul.u32 2, %s18
      %p1122 = scmp.lt.s32.totalorder %s1121, 3
      %s1123 = scalar_select %p1122, %s1121, 3
      %s1124 = smul.addr %s1123, 4
      %s1125 = scalar_lea.vmem %s7, %s1124
      // Predicated region
      $region49: #{_lambda_.8} parent=47 // pred_check
        %p1126 = pneg %p188
      $region50: #{_lambda_.8} parent=47 // pred_check_branch
        %1128 = sbr.rel (%p1126) target = $region52
      $region51: #{_lambda_.8} parent=47 // pred_region
        %s1129 = smul.u32 2, %s18
      $region52: #{_lambda_.8} parent=47 // pred_fallthru
        _
    $region48: #{_lambda_.8} parent=5 // pred_fallthru
      _
    %p1130 = scmp.le.s32.totalorder 2, %s13
    // Predicated region
    $region53: #{_lambda_.8} parent=5 // pred_check
      %p1131 = pneg %p1130
    $region54: #{_lambda_.8} parent=5 // pred_check_branch
      %1133 = sbr.rel (%p1131) target = $region56
    $region55: #{_lambda_.8} parent=5 // pred_region
      %s1134 = ssub.s32 %s13, 2
      // Predicated region
      $region57: #{_lambda_.8} parent=55 // pred_check
        %p1135 = pneg %p194
      $region58: #{_lambda_.8} parent=55 // pred_check_branch
        %1137 = sbr.rel (%p1135) target = $region60
      $region59: #{_lambda_.8} parent=55 // pred_region
        %s1138 = smul.u32 2, %s19
        %p1139 = scmp.lt.s32.totalorder %s1138, 3
        %s1140 = scalar_select %p1139, %s1138, 3
        %s1141 = smul.addr %s1140, 4
        %s1142 = scalar_lea.vmem %s7, %s1141
      $region60: #{_lambda_.8} parent=55 // pred_fallthru
        _
    $region56: #{_lambda_.8} parent=5 // pred_fallthru
      _
  $region6: #{_lambda_.8} parent=0 // loop_footer
    %s17 = sadd.s32 1, %s13
  $region7: #{_lambda_.8} parent=0 // loop_footer_branch
    %12 = sbr.rel target = $region3
  $region8: #{_lambda_.8} parent=0 // loop_exit
    _

// kernel: _lambda_.13
$region0: #{_lambda_.13}
  #allocation0 [shape = 'u32[]', space=smem, size = 0x4, offset = 0x4, fixed_abs, tag = 'smem constant byte address 0x4 - core index']
  #allocation1 [shape = 'u32[144,128]{1,0:T(1,128)}', space=vmem, size = 0x12000, scoped, tag = 'internal scratch']
  %s0 = inlined_call_operand.vmem [shape: bf16[3,98], index: 0, kind: input, shape index: {}]
  %s1 = inlined_call_operand.vmem [shape: bf16[98,512], index: 1, kind: input, shape index: {}]
  %s2 = inlined_call_operand.vmem [shape: f32[3,1], index: 2, kind: input, shape index: {}]
  %s3 = inlined_call_operand.vmem [shape: f32[3,512], index: 3, kind: output, shape index: {}]
  %s4 = sld [smem:[#allocation0]]
  $region83: #{_lambda_.13} parent=0
    _
  %s6 = ssub.s32 1, %s4
  %s7 = scalar_select 0, %s6, %s4
  $region1: #{_lambda_.13} parent=0
    #allocation2 [shape = 'u8[106496]{0}', space=vmem, size = 0x1a000, scoped, tag = 'input window, operand 1']
    loop: start=0, step=1, limit=4
    $region2: #{_lambda_.13} parent=1 // loop_pre_header
      _
    $region3: #{_lambda_.13} parent=1 // loop_header
      %s9 = sphi 0, %s13
      %p10 = scmp.ge.s32.totalorder %s9, 4
      %s17 = sphi 0, %s17
      %s19 = sphi 0, %s17
      %s20 = sphi 0, %s19
      %s34 = sphi 0, %s20
      %s40 = sphi 0, %s42
      %s43 = sphi 0, %s40
      %s44 = sphi 0, %s43
      %s60 = sphi 0, %s44
      %s64 = sphi 0, %s64
      %s66 = sphi 0, %s64
      %s67 = sphi 0, %s66
      %s81 = sphi 0, %s67
      %s87 = sphi 0, %s89
      %s90 = sphi 0, %s87
      %s91 = sphi 0, %s90
      %s107 = sphi 0, %s91
    $region4: #{_lambda_.13} parent=1 // loop_header_branch
      %12 = sbr.rel (%p10) target = $region8
    $region5: #{_lambda_.13} parent=1 // loop_body
      %s14 = ssub.s32 %s9, 1
      %s15 = ssub.s32 %s9, 2
      %s16 = sadd.s32 %s9, 1
      %s18 = sadd.s32 %s17, 1
      %p21 = scmp.eq.s32.totalorder %s9, 1
      %p22 = scmp.ne.s32.totalorder %s17, %s19
      %p23 = scmp.eq.s32.totalorder %s9, 0
      %p24 = por %p22, %p23
      %p25 = scmp.ne.s32.totalorder %s17, %s19
      %p26 = scmp.eq.s32.totalorder %s14, 1
      %p27 = por %p25, %p26
      %p28 = scmp.ne.s32.totalorder %s19, %s20
      %p29 = scmp.eq.s32.totalorder %s14, 0
      %p30 = por %p28, %p29
      %p31 = scmp.ne.s32.totalorder %s19, %s20
      %p32 = scmp.eq.s32.totalorder %s15, 1
      %p33 = por %p31, %p32
      %p35 = scmp.ne.s32.totalorder %s20, %s34
      %p36 = scmp.eq.s32.totalorder %s15, 0
      %p37 = por %p35, %p36
      %s38 = ssub.s32 %s9, %s16
      %p39 = scmp.eq.s32.totalorder %s38, 0
      %s41 = sadd.s32 %s40, 1
      %s42 = scalar_select %p39, %s40, %s41
      %p45 = pneg %p39
      %p46 = scmp.eq.s32.totalorder %s9, 1
      %p47 = por %p45, %p46
      %p48 = scmp.ne.s32.totalorder %s40, %s43
      %p49 = scmp.eq.s32.totalorder %s9, 0
      %p50 = por %p48, %p49
      %p51 = scmp.ne.s32.totalorder %s40, %s43
      %p52 = scmp.eq.s32.totalorder %s14, 1
      %p53 = por %p51, %p52
      %p54 = scmp.ne.s32.totalorder %s43, %s44
      %p55 = scmp.eq.s32.totalorder %s14, 0
      %p56 = por %p54, %p55
      %p57 = scmp.ne.s32.totalorder %s43, %s44
      %p58 = scmp.eq.s32.totalorder %s15, 1
      %p59 = por %p57, %p58
      %p61 = scmp.ne.s32.totalorder %s44, %s60
      %p62 = scmp.eq.s32.totalorder %s15, 0
      %p63 = por %p61, %p62
      %s65 = sadd.s32 %s64, 1
      %p68 = scmp.eq.s32.totalorder %s9, 1
      %p69 = scmp.ne.s32.totalorder %s64, %s66
      %p70 = scmp.eq.s32.totalorder %s9, 0
      %p71 = por %p69, %p70
      %p72 = scmp.ne.s32.totalorder %s64, %s66
      %p73 = scmp.eq.s32.totalorder %s14, 1
      %p74 = por %p72, %p73
      %p75 = scmp.ne.s32.totalorder %s66, %s67
      %p76 = scmp.eq.s32.totalorder %s14, 0
      %p77 = por %p75, %p76
      %p78 = scmp.ne.s32.totalorder %s66, %s67
      %p79 = scmp.eq.s32.totalorder %s15, 1
      %p80 = por %p78, %p79
      %p82 = scmp.ne.s32.totalorder %s67, %s81
      %p83 = scmp.eq.s32.totalorder %s15, 0
      %p84 = por %p82, %p83
      %s85 = ssub.s32 %s9, %s16
      %p86 = scmp.eq.s32.totalorder %s85, 0
      %s88 = sadd.s32 %s87, 1
      %s89 = scalar_select %p86, %s87, %s88
      %p92 = pneg %p86
      %p93 = scmp.eq.s32.totalorder %s9, 1
      %p94 = por %p92, %p93
      %p95 = scmp.ne.s32.totalorder %s87, %s90
      %p96 = scmp.eq.s32.totalorder %s9, 0
      %p97 = por %p95, %p96
      %p98 = scmp.ne.s32.totalorder %s87, %s90
      %p99 = scmp.eq.s32.totalorder %s14, 1
      %p100 = por %p98, %p99
      %p101 = scmp.ne.s32.totalorder %s90, %s91
      %p102 = scmp.eq.s32.totalorder %s14, 0
      %p103 = por %p101, %p102
      %p104 = scmp.ne.s32.totalorder %s90, %s91
      %p105 = scmp.eq.s32.totalorder %s15, 1
      %p106 = por %p104, %p105
      %p108 = scmp.ne.s32.totalorder %s91, %s107
      %p109 = scmp.eq.s32.totalorder %s15, 0
      %p110 = por %p108, %p109
      %p111 = scmp.le.s32.totalorder 1, %s9
      %p112 = scmp.lt.s32.totalorder %s9, 3
      %p113 = pnand %p111, %p112
      %p114 = pneg %p113
      // Predicated region
      $region9: #{_lambda_.13} parent=5 // pred_check
        _
      $region10: #{_lambda_.13} parent=5 // pred_check_branch
        %116 = sbr.rel (%p113) target = $region12
      $region11: #{_lambda_.13} parent=5 // pred_region
        %s117 = ssub.s32 %s9, 1
        // Predicated region
        $region13: #{_lambda_.13} parent=11 // pred_check
          %p118 = pneg %p30
        $region14: #{_lambda_.13} parent=11 // pred_check_branch
          %120 = sbr.rel (%p118) target = $region16
        $region15: #{_lambda_.13} parent=11 // pred_region
          _
        $region16: #{_lambda_.13} parent=11 // pred_fallthru
          _
        // Predicated region
        $region17: #{_lambda_.13} parent=11 // pred_check
          %p121 = pneg %p77
        $region18: #{_lambda_.13} parent=11 // pred_check_branch
          %123 = sbr.rel (%p121) target = $region20
        $region19: #{_lambda_.13} parent=11 // pred_region
          _
        $region20: #{_lambda_.13} parent=11 // pred_fallthru
          _
      $region12: #{_lambda_.13} parent=5 // pred_fallthru
        _
      %p124 = scmp.lt.s32.totalorder %s9, 2
      // Predicated region
      $region21: #{_lambda_.13} parent=5 // pred_check
        %p125 = pneg %p124
      $region22: #{_lambda_.13} parent=5 // pred_check_branch
        %127 = sbr.rel (%p125) target = $region24
      $region23: #{_lambda_.13} parent=5 // pred_region
        // Predicated region
        $region25: #{_lambda_.13} parent=23 // pred_check
          %p128 = pneg %p50
        $region26: #{_lambda_.13} parent=23 // pred_check_branch
          %130 = sbr.rel (%p128) target = $region28
        $region27: #{_lambda_.13} parent=23 // pred_region
          %s131 = sand.u32 %s40, 1
          %s132 = sand.u32 %s40, 1
          %s133 = smul.addr %s132, 104
          %s134 = scalar_lea.vmem [#allocation2], %s133
          %s135 = smul.u32 2, %s9
          %s136 = smul.addr %s135, 4
          %s137 = scalar_lea.vmem %s1, %s136
          // Predicated region
          $region29: #{_lambda_.13} parent=27 // pred_check
            _
          $region30: #{_lambda_.13} parent=27 // pred_check_branch
            %139 = sbr.rel (0) target = $region32
          $region31: #{_lambda_.13} parent=27 // pred_region
            // Predicated region
            $region33: #{_lambda_.13} parent=31 // pred_check
              _
            $region34: #{_lambda_.13} parent=31 // pred_check_branch
              %141 = sbr.rel (0) target = $region36
            $region35: #{_lambda_.13} parent=31 // pred_region
              // Predicated region
              $region48: #{_lambda_.13} parent=35 // pred_check
                _
              $region49: #{_lambda_.13} parent=35 // pred_check_branch
                %180 = sbr.rel (0) target = $region51
              $region50: #{_lambda_.13} parent=35 // pred_region
                loop: start=0, step=1, limit=1
                $region52: #{_lambda_.13} parent=50 // loop_pre_header
                  _
                $region53: #{_lambda_.13} parent=50 // loop_header
                  %s182 = sphi 0, %s186
                  %p183 = scmp.ge.s32.totalorder %s182, 1
                  %s187 = sphi %s137, %s137
                  %s188 = sphi %s134, %s134
                $region54: #{_lambda_.13} parent=50 // loop_header_branch
                  %185 = sbr.rel (%p183) target = $region58
                $region55: #{_lambda_.13} parent=50 // loop_body
                  %v189 = vld [vmem:[%s187] sm:$0xff]
                  %190 = vst [vmem:[%s188] sm:$0xff] %v189
                  %v191 = vld [vmem:[%s187 + $0x10] sm:$0xff]
                  %192 = vst [vmem:[%s188 + $0x8] sm:$0xff] %v191
                  %v193 = vld [vmem:[%s187 + $0x20] sm:$0xff]
                  %194 = vst [vmem:[%s188 + $0x10] sm:$0xff] %v193
                  %v195 = vld [vmem:[%s187 + $0x30] sm:$0xff]
                  %196 = vst [vmem:[%s188 + $0x18] sm:$0xff] %v195
                  %v197 = vld [vmem:[%s187 + $0x40] sm:$0xff]
                  %198 = vst [vmem:[%s188 + $0x20] sm:$0xff] %v197
                  %v199 = vld [vmem:[%s187 + $0x50] sm:$0xff]
                  %200 = vst [vmem:[%s188 + $0x28] sm:$0xff] %v199
                  %v201 = vld [vmem:[%s187 + $0x60] sm:$0xff]
                  %202 = vst [vmem:[%s188 + $0x30] sm:$0xff] %v201
                  %v203 = vld [vmem:[%s187 + $0x70] sm:$0xff]
                  %204 = vst [vmem:[%s188 + $0x38] sm:$0xff] %v203
                  %v205 = vld [vmem:[%s187 + $0x80] sm:$0xff]
                  %206 = vst [vmem:[%s188 + $0x40] sm:$0xff] %v205
                  %v207 = vld [vmem:[%s187 + $0x90] sm:$0xff]
                  %208 = vst [vmem:[%s188 + $0x48] sm:$0xff] %v207
                  %v209 = vld [vmem:[%s187 + $0xa0] sm:$0xff]
                  %210 = vst [vmem:[%s188 + $0x50] sm:$0xff] %v209
                  %v211 = vld [vmem:[%s187 + $0xb0] sm:$0xff]
                  %212 = vst [vmem:[%s188 + $0x58] sm:$0xff] %v211
                  %v213 = vld [vmem:[%s187 + $0xc0] sm:$0xff]
                  %214 = vst [vmem:[%s188 + $0x60] sm:$0xff] %v213
                $region56: #{_lambda_.13} parent=50 // loop_footer
                  %s186 = sadd.s32 1, %s182
                $region57: #{_lambda_.13} parent=50 // loop_footer_branch
                  %181 = sbr.rel target = $region53
                $region58: #{_lambda_.13} parent=50 // loop_exit
                  _
              $region51: #{_lambda_.13} parent=35 // pred_fallthru
                _
              // Predicated region
              $region59: #{_lambda_.13} parent=35 // pred_check
                _
              $region60: #{_lambda_.13} parent=35 // pred_check_branch
                %216 = sbr.rel target = $region62
              $region61: #{_lambda_.13} parent=35 // pred_region
                _
              $region62: #{_lambda_.13} parent=35 // pred_fallthru
                _
            $region36: #{_lambda_.13} parent=31 // pred_fallthru
              _
            // Predicated region
            $region37: #{_lambda_.13} parent=31 // pred_check
              _
            $region38: #{_lambda_.13} parent=31 // pred_check_branch
              %143 = sbr.rel target = $region40
            $region39: #{_lambda_.13} parent=31 // pred_region
              loop: start=0, step=1, limit=1
              $region41: #{_lambda_.13} parent=39 // loop_pre_header
                _
              $region42: #{_lambda_.13} parent=39 // loop_header
                %s146 = sphi 0, %s150
                %p147 = scmp.ge.s32.totalorder %s146, 1
                %s151 = sphi %s137, %s137
                %s152 = sphi %s134, %s134
              $region43: #{_lambda_.13} parent=39 // loop_header_branch
                %149 = sbr.rel (%p147) target = $region47
              $region44: #{_lambda_.13} parent=39 // loop_body
                %v153 = vld [vmem:[%s151] sm:$0xff]
                %154 = vst [vmem:[%s152] sm:$0xff] %v153
                %v155 = vld [vmem:[%s151 + $0x10] sm:$0xff]
                %156 = vst [vmem:[%s152 + $0x8] sm:$0xff] %v155
                %v157 = vld [vmem:[%s151 + $0x20] sm:$0xff]
                %158 = vst [vmem:[%s152 + $0x10] sm:$0xff] %v157
                %v159 = vld [vmem:[%s151 + $0x30] sm:$0xff]
                %160 = vst [vmem:[%s152 + $0x18] sm:$0xff] %v159
                %v161 = vld [vmem:[%s151 + $0x40] sm:$0xff]
                %162 = vst [vmem:[%s152 + $0x20] sm:$0xff] %v161
                %v163 = vld [vmem:[%s151 + $0x50] sm:$0xff]
                %164 = vst [vmem:[%s152 + $0x28] sm:$0xff] %v163
                %v165 = vld [vmem:[%s151 + $0x60] sm:$0xff]
                %166 = vst [vmem:[%s152 + $0x30] sm:$0xff] %v165
                %v167 = vld [vmem:[%s151 + $0x70] sm:$0xff]
                %168 = vst [vmem:[%s152 + $0x38] sm:$0xff] %v167
                %v169 = vld [vmem:[%s151 + $0x80] sm:$0xff]
                %170 = vst [vmem:[%s152 + $0x40] sm:$0xff] %v169
                %v171 = vld [vmem:[%s151 + $0x90] sm:$0xff]
                %172 = vst [vmem:[%s152 + $0x48] sm:$0xff] %v171
                %v173 = vld [vmem:[%s151 + $0xa0] sm:$0xff]
                %174 = vst [vmem:[%s152 + $0x50] sm:$0xff] %v173
                %v175 = vld [vmem:[%s151 + $0xb0] sm:$0xff]
                %176 = vst [vmem:[%s152 + $0x58] sm:$0xff] %v175
                %v177 = vld [vmem:[%s151 + $0xc0] sm:$0xff]
                %178 = vst [vmem:[%s152 + $0x60] sm:$0xff] %v177
              $region45: #{_lambda_.13} parent=39 // loop_footer
                %s150 = sadd.s32 1, %s146
              $region46: #{_lambda_.13} parent=39 // loop_footer_branch
                %145 = sbr.rel target = $region42
              $region47: #{_lambda_.13} parent=39 // loop_exit
                _
            $region40: #{_lambda_.13} parent=31 // pred_fallthru
              _
          $region32: #{_lambda_.13} parent=27 // pred_fallthru
            _
          %217 = vnop
        $region28: #{_lambda_.13} parent=23 // pred_fallthru
          _
      $region24: #{_lambda_.13} parent=5 // pred_fallthru
        _
      %p218 = scmp.le.s32.totalorder 1, %s9
      %p219 = scmp.lt.s32.totalorder %s9, 3
      %p220 = pnand %p218, %p219
      %p221 = pneg %p220
      // Predicated region
      $region63: #{_lambda_.13} parent=5 // pred_check
        _
      $region64: #{_lambda_.13} parent=5 // pred_check_branch
        %223 = sbr.rel (%p220) target = $region66
      $region65: #{_lambda_.13} parent=5 // pred_region
        %s224 = ssub.s32 %s9, 1
        %s225 = sand.u32 %s43, 1
        %s226 = sand.u32 %s43, 1
        %s227 = smul.addr %s226, 104
        %s228 = scalar_lea.vmem [#allocation2], %s227
        // Predicated region
        $region67: #{_lambda_.13} parent=65 // pred_check
          %p229 = pneg %p56
        $region68: #{_lambda_.13} parent=65 // pred_check_branch
          %231 = sbr.rel (%p229) target = $region70
        $region69: #{_lambda_.13} parent=65 // pred_region
          _
        $region70: #{_lambda_.13} parent=65 // pred_fallthru
          _
        %p232 = pneg %p30
        %p233 = pneg %p27
        %s234 = sand.u32 %s43, 1
        %s235 = sand.u32 %s43, 1
        %s236 = smul.addr %s235, 104
        %s237 = scalar_lea.vmem [#allocation2], %s236
        %p238 = pneg %p56
        %p239 = pneg %p53
        %p240 = pneg %p77
        %p241 = pneg %p74
        %p242 = pneg %p103
        %p243 = pneg %p100
        %s244 = smul.u32 2, %s14
        %p245 = scmp.lt.s32.totalorder %s244, 3
        %s246 = scalar_select %p245, %s244, 3
        %s247 = smul.addr %s246, 4
        %s248 = scalar_lea.vmem %s3, %s247
        %s249 = smul.u32 2, %s14
        %s250 = smul.u32 2, %s14
        %p251 = scmp.lt.s32.totalorder %s250, 3
        %s252 = scalar_select %p251, %s250, 3
        %s253 = smul.addr %s252, 4
        %s254 = scalar_lea.vmem %s3, %s253
        %s255 = smul.u32 2, %s14
        %v257 = vld [vmem:[%s0] sm:$0x3]
        %v258 = vld [vmem:[%s228] sm:$0xff]
        %v259 = vld [vmem:[%s228 + $0x8] sm:$0xff]
        %v260 = vld [vmem:[%s228 + $0x10] sm:$0xff]
        %v261 = vld [vmem:[%s228 + $0x18] sm:$0xff]
        %v262 = vld [vmem:[%s228 + $0x20] sm:$0xff]
        %v263 = vld [vmem:[%s228 + $0x28] sm:$0xff]
        %v264 = vld [vmem:[%s228 + $0x30] sm:$0xff]
        %v265 = vld [vmem:[%s228 + $0x38] sm:$0xff]
        %v266 = vld [vmem:[%s228 + $0x40] sm:$0xff]
        %v267 = vld [vmem:[%s228 + $0x48] sm:$0xff]
        %v268 = vld [vmem:[%s228 + $0x50] sm:$0xff]
        %v269 = vld [vmem:[%s228 + $0x58] sm:$0xff]
        %v270 = vld [vmem:[%s228 + $0x60] sm:$0x11]
        %v271 = vld [vmem:[%s2] sm:$0x7]
        %273 = vset.pattern.permute.xlu0 0
        %274 = vperm.xlu0 %273, %v271
        %v275 = vpop.permute.xlu0 %274
        %v290 = vunpack.c.l.b16 %v258
        %v291 = vunpack.c.h.b16 %v258
        %v292 = vunpack.c.l.b16 %v259
        %v293 = vunpack.c.h.b16 %v259
        %v294 = vunpack.c.l.b16 %v260
        %v295 = vunpack.c.h.b16 %v260
        %v296 = vunpack.c.l.b16 %v261
        %v297 = vunpack.c.h.b16 %v261
        %v298 = vunpack.c.l.b16 %v262
        %v299 = vunpack.c.h.b16 %v262
        %v300 = vunpack.c.l.b16 %v263
        %v301 = vunpack.c.h.b16 %v263
        %v302 = vunpack.c.l.b16 %v264
        %v303 = vunpack.c.h.b16 %v264
        %v304 = vunpack.c.l.b16 %v265
        %v305 = vunpack.c.h.b16 %v265
        %v306 = vunpack.c.l.b16 %v266
        %v307 = vunpack.c.h.b16 %v266
        %v308 = vunpack.c.l.b16 %v267
        %v309 = vunpack.c.h.b16 %v267
        %v310 = vunpack.c.l.b16 %v268
        %v311 = vunpack.c.h.b16 %v268
        %v312 = vunpack.c.l.b16 %v269
        %v313 = vunpack.c.h.b16 %v269
        %v314 = vunpack.c.l.b16 %v270
        %v315 = vunpack.c.h.b16 %v270
        %v316 = vpack.c.b16 %v292, %v290
        %v317 = vpack.c.b16 %v293, %v291
        %v318 = vpack.c.b16 %v296, %v294
        %v319 = vpack.c.b16 %v297, %v295
        %v320 = vpack.c.b16 %v300, %v298
        %v321 = vpack.c.b16 %v301, %v299
        %v322 = vpack.c.b16 %v304, %v302
        %v323 = vpack.c.b16 %v305, %v303
        %v324 = vpack.c.b16 %v308, %v306
        %v325 = vpack.c.b16 %v309, %v307
        %v326 = vpack.c.b16 %v312, %v310
        %v327 = vpack.c.b16 %v313, %v311
        %v328 = vpack.c.b16 %v314, %v314
        %v329 = vpack.c.b16 %v315, %v315
        %vm342 = vcmask 801792
        %v344 = vsel %vm342, %v257, 0
        %vm346 = vcmask 1040384
        %v348 = vsel %vm346, %v328, 0
        %v351 = vsel %vm346, %v329, 0
        %353 = vmatprep.subr.bf16.mxu0 %v317
        %354 = vmatpush1.bf16.msra.mxu0 %v316
        %355 = vmatprep.subr.bf16.mxu0 %v319
        %356 = vmatpush1.bf16.msra.mxu0 %v318
        %357 = vmatprep.subr.bf16.mxu0 %v321
        %358 = vmatpush1.bf16.msra.mxu0 %v320
        %359 = vmatprep.subr.bf16.mxu0 %v323
        %360 = vmatpush1.bf16.msra.mxu0 %v322
        %361 = vmatprep.subr.bf16.mxu0 %v325
        %362 = vmatpush1.bf16.msra.mxu0 %v324
        %363 = vmatprep.subr.bf16.mxu0 %v327
        %364 = vmatpush1.bf16.msra.mxu0 %v326
        %365 = vmatprep.subr.bf16.mxu0 %v351
        %366 = vmatpush1.bf16.msra.mxu0 %v348
        %367 = vmatprep.subr.bf16.mxu0 0
        %368 = vmatpush1.bf16.msra.mxu0 0
        %369 = vmatprep.subr.bf16.mxu0 0
        %370 = vmatpush1.bf16.msra.mxu0 0
        %371 = vmatprep.subr.bf16.mxu0 0
        %372 = vmatpush1.bf16.msra.mxu0 0
        %373 = vmatprep.subr.bf16.mxu0 0
        %374 = vmatpush1.bf16.msra.mxu0 0
        %375 = vmatprep.subr.bf16.mxu0 0
        %376 = vmatpush1.bf16.msra.mxu0 0
        %377 = vmatprep.subr.bf16.mxu0 0
        %378 = vmatpush1.bf16.msra.mxu0 0
        %379 = vmatprep.subr.bf16.mxu0 0
        %380 = vmatpush1.bf16.msra.mxu0 0
        %381 = vmatprep.subr.bf16.mxu0 0
        %382 = vmatpush1.bf16.msra.mxu0 0
        %383 = vmatprep.subr.bf16.mxu0 0
        %384 = vmatpush1.bf16.msra.mxu0 0
        %385 = vmatprep.mubr.bf16.mxu0 0
        %386 = vmatmul.mubr.bf16.gmra.mrb[0].mxu0 %v344
        %v387 = vpop.f32.mrb[0].mxu0
        %v388 = vadd.f32 %v275, %v387
        %v389 = vpop.f32.mrb[0].mxu0
        %v390 = vadd.f32 %v275, %v389
        %v391 = vpop.f32.mrb[0].mxu0
        %v392 = vpop.f32.mrb[0].mxu0
        %393 = vdwg.mxu0
        %v396 = vcombine.low %v388, %v390
        %398 = vst [vmem:[%s254] sm:$0x77] %v396
        %s399 = smul.u32 2, %s14
        %p400 = scmp.lt.s32.totalorder %s399, 3
        %s401 = scalar_select %p400, %s399, 3
        %s402 = smul.addr %s401, 4
        %s403 = scalar_lea.vmem %s3, %s402
        // Predicated region
        $region71: #{_lambda_.13} parent=65 // pred_check
          %p404 = pneg %p100
        $region72: #{_lambda_.13} parent=65 // pred_check_branch
          %406 = sbr.rel (%p404) target = $region74
        $region73: #{_lambda_.13} parent=65 // pred_region
          %s407 = smul.u32 2, %s14
        $region74: #{_lambda_.13} parent=65 // pred_fallthru
          _
      $region66: #{_lambda_.13} parent=5 // pred_fallthru
        _
      %p408 = scmp.le.s32.totalorder 2, %s9
      // Predicated region
      $region75: #{_lambda_.13} parent=5 // pred_check
        %p409 = pneg %p408
      $region76: #{_lambda_.13} parent=5 // pred_check_branch
        %411 = sbr.rel (%p409) target = $region78
      $region77: #{_lambda_.13} parent=5 // pred_region
        %s412 = ssub.s32 %s9, 2
        // Predicated region
        $region79: #{_lambda_.13} parent=77 // pred_check
          %p413 = pneg %p106
        $region80: #{_lambda_.13} parent=77 // pred_check_branch
          %415 = sbr.rel (%p413) target = $region82
        $region81: #{_lambda_.13} parent=77 // pred_region
          %s416 = smul.u32 2, %s15
          %p417 = scmp.lt.s32.totalorder %s416, 3
          %s418 = scalar_select %p417, %s416, 3
          %s419 = smul.addr %s418, 4
          %s420 = scalar_lea.vmem %s3, %s419
        $region82: #{_lambda_.13} parent=77 // pred_fallthru
          _
      $region78: #{_lambda_.13} parent=5 // pred_fallthru
        _
    $region6: #{_lambda_.13} parent=1 // loop_footer
      %s13 = sadd.s32 1, %s9
    $region7: #{_lambda_.13} parent=1 // loop_footer_branch
      %8 = sbr.rel target = $region3
    $region8: #{_lambda_.13} parent=1 // loop_exit
      _

</llo_original>
